<compile_context>
chip_gen: v7x
topology: tpu7x:2x2x1
jax: 0.10.0
libtpu: 0.0.40
codegen_flags: <defaults>
</compile_context>

<pallas_src>
import jax
import jax.numpy as jnp
import numpy as np
from jax import lax
from jax.experimental import pallas as pl
from jax.experimental.pallas import tpu as pltpu


def _gru_bidir_kernel(len_ref, gif_ref, gib_ref, whh_ref, bhh_ref,
                      of_ref, ob_ref, hnf_ref, hnb_ref, hf_sc, hb_sc):
  """One grid step == one chunk of TT time steps, both directions.

  Forward consumes absolute times [c*TT, c*TT+TT); backward consumes the
  mirrored chunk [(nc-1-c)*TT, ...) in reverse local order (handled by the
  BlockSpec index maps + in-kernel reversed indexing).  hf_sc / hb_sc are
  VMEM scratch carrying the hidden state across chunks.
  """
  c = pl.program_id(0)
  nc = pl.num_programs(0)
  TT, B, G3 = gif_ref.shape
  H = G3 // 3

  @pl.when(c == 0)
  def _():
    hf_sc[...] = jnp.zeros_like(hf_sc)
    hb_sc[...] = jnp.zeros_like(hb_sc)

  lengths = len_ref[...]     # (B, 1) int32, resident
  whh = whh_ref[...]         # (2H, 6H) block-diagonal [Whh_f^T | Whh_b^T]
  bhh = bhh_ref[...]         # (1, 6H)

  def gates(gi, gh_d, h):
    r = jax.nn.sigmoid(gi[:, 0:H] + gh_d[:, 0:H])
    z = jax.nn.sigmoid(gi[:, H:2 * H] + gh_d[:, H:2 * H])
    n = jnp.tanh(gi[:, 2 * H:3 * H] + r * gh_d[:, 2 * H:3 * H])
    return (1.0 - z) * n + z * h

  def step(j, carry):
    hf, hb = carry                                        # (B, H) each, f32
    # Single recurrent matmul for both directions.
    h_cat = jnp.concatenate([hf, hb], axis=-1)            # (B, 2H)
    gh = jnp.dot(h_cat, whh, preferred_element_type=jnp.float32) + bhh  # (B,6H)

    gi_f = gif_ref[j]                                     # abs time c*TT + j
    gi_b = gib_ref[TT - 1 - j]                            # abs time below

    h_new_f = gates(gi_f, gh[:, :3 * H], hf)
    h_new_b = gates(gi_b, gh[:, 3 * H:], hb)

    t_f = c * TT + j
    t_b = (nc - 1 - c) * TT + (TT - 1 - j)
    m_f = (t_f < lengths).astype(jnp.float32)             # (B, 1)
    m_b = (t_b < lengths).astype(jnp.float32)

    # Packed-sequence semantics: zero output / frozen hidden past length.
    of_ref[j] = (m_f * h_new_f).astype(of_ref.dtype)
    ob_ref[TT - 1 - j] = (m_b * h_new_b).astype(ob_ref.dtype)

    hf_next = m_f * h_new_f + (1.0 - m_f) * hf
    hb_next = m_b * h_new_b + (1.0 - m_b) * hb
    return hf_next, hb_next

  hfT, hbT = lax.fori_loop(0, TT, step, (hf_sc[...], hb_sc[...]), unroll=True)
  hf_sc[...] = hfT
  hb_sc[...] = hbT

  @pl.when(c == nc - 1)
  def _():
    hnf_ref[...] = hfT.astype(hnf_ref.dtype)
    hnb_ref[...] = hbT.astype(hnb_ref.dtype)


def recurrent_context_forward(x_bti, lengths, params, *, tt=8):
  """Equivalent of RecurrentContext.forward.

  Args:
    x_bti:   (B, T, input_size) float32, batch-first like torch.
    lengths: (B,) int32, sorted descending (pack_padded_sequence default).
    params:  dict with torch-layout GRU params (gate order r, z, n).
    tt:      time-steps per grid iteration (chunk size). For long sequences
             use 16-32 and raise vmem_limit_bytes (smaller on v7x: 64 MiB VMEM).
  Returns:
    outputs: (B, T, 2*H) zero-padded past each length.
    hidden:  (2, B, H)   [forward final, backward final].
  """
  B, T, I = x_bti.shape
  H = params["w_hh_f"].shape[0] // 3
  dtype = x_bti.dtype

  TT = int(max(1, min(tt, T)))
  nc = -(-T // TT)                 # ceil div (python int)
  T_pad = nc * TT

  # time-major for the kernel; pad time to a multiple of TT (mask handles it)
  x_tbi = jnp.transpose(x_bti, (1, 0, 2))                 # (T, B, I)
  if T_pad != T:
    x_tbi = jnp.pad(x_tbi, ((0, T_pad - T), (0, 0), (0, 0)))

  # ---- hoisted input projection: one big matmul for both directions ----
  w_ih_cat = jnp.concatenate(
      [jnp.transpose(params["w_ih_f"]), jnp.transpose(params["w_ih_b"])],
      axis=1)                                             # (I, 6H)
  b_ih_cat = jnp.concatenate(
      [params["b_ih_f"], params["b_ih_b"]])[None, :]      # (1, 6H)
  gi_all = (x_tbi.reshape(T_pad * B, I) @ w_ih_cat + b_ih_cat).astype(dtype)
  gi_all = gi_all.reshape(T_pad, B, 6 * H)
  gi_f = gi_all[..., :3 * H]                              # (T_pad, B, 3H)
  gi_b = gi_all[..., 3 * H:]                              # (T_pad, B, 3H)

  # ---- block-diagonal recurrent weights: one h-matmul per step ----
  w_hh_blk = jnp.zeros((2 * H, 6 * H), dtype)
  w_hh_blk = w_hh_blk.at[:H, :3 * H].set(jnp.transpose(params["w_hh_f"]).astype(dtype))
  w_hh_blk = w_hh_blk.at[H:, 3 * H:].set(jnp.transpose(params["w_hh_b"]).astype(dtype))
  b_hh_cat = jnp.concatenate(
      [params["b_hh_f"], params["b_hh_b"]])[None, :].astype(dtype)  # (1, 6H)

  len_b1 = lengths.astype(jnp.int32).reshape(B, 1)

  const2d = lambda shape: pl.BlockSpec(shape, lambda c: (0, 0))
  fwd3d = lambda shape: pl.BlockSpec(shape, lambda c: (c, 0, 0))
  bwd3d = lambda shape: pl.BlockSpec(shape, lambda c: (nc - 1 - c, 0, 0))

  grid_spec = pltpu.PrefetchScalarGridSpec(
      num_scalar_prefetch=0,
      grid=(nc,),
      in_specs=[
          const2d((B, 1)),                 # lengths (resident)
          fwd3d((TT, B, 3 * H)),           # precomputed Gi, forward chunks
          bwd3d((TT, B, 3 * H)),           # precomputed Gi, reversed chunks
          const2d((2 * H, 6 * H)),         # block-diag W_hh^T (both dirs)
          const2d((1, 6 * H)),             # concat b_hh (both dirs)
      ],
      out_specs=[
          fwd3d((TT, B, H)),               # forward outputs, chunk c
          bwd3d((TT, B, H)),               # backward outputs, chunk nc-1-c
          const2d((B, H)),                 # final forward hidden
          const2d((B, H)),                 # final backward hidden
      ],
      scratch_shapes=[pltpu.VMEM((B, H), jnp.float32),
                      pltpu.VMEM((B, H), jnp.float32)],
  )

  out_f, out_b, hn_f, hn_b = pl.pallas_call(
      _gru_bidir_kernel,
      grid_spec=grid_spec,
      out_shape=(
          jax.ShapeDtypeStruct((T_pad, B, H), dtype),
          jax.ShapeDtypeStruct((T_pad, B, H), dtype),
          jax.ShapeDtypeStruct((B, H), dtype),
          jax.ShapeDtypeStruct((B, H), dtype),
      ),
      compiler_params=pltpu.CompilerParams(
          dimension_semantics=("arbitrary",)),   # sequential recurrence
  )(len_b1, gi_f, gi_b, w_hh_blk, b_hh_cat)

  # TODO(synk): on v7x the two directions could be split across the two
  # TensorCores (leading "parallel" direction axis); kept single-core here.
  outputs = jnp.transpose(
      jnp.concatenate([out_f[:T], out_b[:T]], axis=-1), (1, 0, 2))  # (B, T, 2H)
  hidden = jnp.stack([hn_f, hn_b], axis=0)                          # (2, B, H)
  return outputs, hidden


# ----------------------- pure-JAX reference (for checking) -----------------
def _reference(x_bti, lengths, params):
  B, T, I = x_bti.shape
  H = params["w_hh_f"].shape[0] // 3
  mask = (jnp.arange(T)[:, None] < lengths[None, :]).astype(x_bti.dtype)

  def direction(d, time_order):
    w_ih, w_hh = params[f"w_ih_{d}"], params[f"w_hh_{d}"]
    b_ih, b_hh = params[f"b_ih_{d}"], params[f"b_hh_{d}"]

    def step(h, t):
      x = x_bti[:, t, :]
      m = mask[t][:, None]
      gi = x @ w_ih.T + b_ih
      gh = h @ w_hh.T + b_hh
      r = jax.nn.sigmoid(gi[:, :H] + gh[:, :H])
      z = jax.nn.sigmoid(gi[:, H:2 * H] + gh[:, H:2 * H])
      n = jnp.tanh(gi[:, 2 * H:] + r * gh[:, 2 * H:])
      h_new = (1 - z) * n + z * h
      h_next = m * h_new + (1 - m) * h
      return h_next, m * h_new

    h0 = jnp.zeros((B, H), x_bti.dtype)
    hT, outs = lax.scan(step, h0, time_order)
    outs_abs = jnp.zeros((T, B, H), x_bti.dtype).at[time_order].set(outs)
    return jnp.transpose(outs_abs, (1, 0, 2)), hT

  of, hf = direction("f", jnp.arange(T))
  ob, hb = direction("b", jnp.arange(T)[::-1])
  return jnp.concatenate([of, ob], axis=-1), jnp.stack([hf, hb], axis=0)


if __name__ == "__main__":
  B, T, INPUT, HIDDEN = 4, 8, 16, 32

  key = jax.random.PRNGKey(0)
  keys = jax.random.split(key, 9)
  scale = 1.0 / np.sqrt(HIDDEN)  # torch nn.GRU default init: U(-1/sqrt(H), 1/sqrt(H))
  u = lambda k, shape: jax.random.uniform(
      k, shape, jnp.float32, minval=-scale, maxval=scale)

  params = {
      "w_ih_f": u(keys[0], (3 * HIDDEN, INPUT)),
      "w_hh_f": u(keys[1], (3 * HIDDEN, HIDDEN)),
      "b_ih_f": u(keys[2], (3 * HIDDEN,)),
      "b_hh_f": u(keys[3], (3 * HIDDEN,)),
      "w_ih_b": u(keys[4], (3 * HIDDEN, INPUT)),
      "w_hh_b": u(keys[5], (3 * HIDDEN, HIDDEN)),
      "b_ih_b": u(keys[6], (3 * HIDDEN,)),
      "b_hh_b": u(keys[7], (3 * HIDDEN,)),
  }

  x = jax.random.normal(keys[8], (B, T, INPUT), jnp.float32)
  # pack_padded_sequence default enforce_sorted=True -> lengths sorted descending
  lengths = jnp.array([8, 6, 5, 3], dtype=jnp.int32)

  ref_out, ref_hid = _reference(x, lengths, params)

  # Exercise both the single-chunk path (tt=8, nc=1) and the multi-chunk path
  # with time padding (tt=3 -> T_pad=9, nc=3, reversed backward chunk order).
  for tt in (8, 3):
    outputs, hidden = recurrent_context_forward(x, lengths, params, tt=tt)
    outputs = jax.block_until_ready(outputs)
    hidden = jax.block_until_ready(hidden)

    np.testing.assert_allclose(np.asarray(outputs), np.asarray(ref_out),
                               rtol=1e-5, atol=2e-5)
    np.testing.assert_allclose(np.asarray(hidden), np.asarray(ref_hid),
                               rtol=1e-5, atol=2e-5)
    assert outputs.shape == (B, T, 2 * HIDDEN)
    assert hidden.shape == (2, B, HIDDEN)

  print("KERNEL_OK")
</pallas_src>

<mosaic_0001>
module attributes {stable_mosaic.version = 11 : i64} {
  func.func @_gru_bidir_kernel(%arg0: i32, %arg1: memref<4x1xi32, #tpu.memory_space<vmem>>, %arg2: memref<8x4x96xf32, #tpu.memory_space<vmem>>, %arg3: memref<8x4x96xf32, #tpu.memory_space<vmem>>, %arg4: memref<64x192xf32, #tpu.memory_space<vmem>>, %arg5: memref<1x192xf32, #tpu.memory_space<vmem>>, %arg6: memref<8x4x32xf32, #tpu.memory_space<vmem>>, %arg7: memref<8x4x32xf32, #tpu.memory_space<vmem>>, %arg8: memref<4x32xf32, #tpu.memory_space<vmem>>, %arg9: memref<4x32xf32, #tpu.memory_space<vmem>>, %arg10: memref<4x32xf32, #tpu.memory_space<vmem>>, %arg11: memref<4x32xf32, #tpu.memory_space<vmem>>) attributes {dimension_semantics = [#tpu.dimension_semantics<arbitrary>], iteration_bounds = array<i64: 1>, scalar_prefetch = 0 : i64, scratch_operands = 2 : i64, tpu.core_type = #tpu.core_type<tc>, window_params = [{pipeline_mode = #tpu.pipeline_mode<synchronous>, transform_indices = @transform_0, window_bounds = array<i64: 4, 1>}, {transform_indices = @transform_1, window_bounds = array<i64: 8, 4, 96>}, {transform_indices = @transform_2, window_bounds = array<i64: 8, 4, 96>}, {pipeline_mode = #tpu.pipeline_mode<synchronous>, transform_indices = @transform_3, window_bounds = array<i64: 64, 192>}, {pipeline_mode = #tpu.pipeline_mode<synchronous>, transform_indices = @transform_4, window_bounds = array<i64: 1, 192>}, {transform_indices = @transform_5, window_bounds = array<i64: 8, 4, 32>}, {transform_indices = @transform_6, window_bounds = array<i64: 8, 4, 32>}, {pipeline_mode = #tpu.pipeline_mode<synchronous>, transform_indices = @transform_7, window_bounds = array<i64: 4, 32>}, {pipeline_mode = #tpu.pipeline_mode<synchronous>, transform_indices = @transform_8, window_bounds = array<i64: 4, 32>}]} {
    %c0_i32 = arith.constant 0 : i32
    %0 = arith.cmpi eq, %arg0, %c0_i32 : i32
    %1 = arith.extui %0 : i1 to i32
    %c0_i32_0 = arith.constant 0 : i32
    %2 = arith.cmpi ne, %1, %c0_i32_0 : i32
    scf.if %2 {
      %cst_200 = arith.constant 0.000000e+00 : f32
      %861 = vector.broadcast %cst_200 : f32 to vector<4x32xf32>
      %c0_201 = arith.constant 0 : index
      %c0_202 = arith.constant 0 : index
      %862 = vector.load %arg10[%c0_201, %c0_202] : memref<4x32xf32, #tpu.memory_space<vmem>>, vector<4x32xf32>
      tpu.vector_store %arg10[%c0_201, %c0_202], %861 {strides = array<i32>} : memref<4x32xf32, #tpu.memory_space<vmem>>, vector<4x32xf32>,
      %cst_203 = arith.constant 0.000000e+00 : f32
      %863 = vector.broadcast %cst_203 : f32 to vector<4x32xf32>
      %c0_204 = arith.constant 0 : index
      %c0_205 = arith.constant 0 : index
      %864 = vector.load %arg11[%c0_204, %c0_205] : memref<4x32xf32, #tpu.memory_space<vmem>>, vector<4x32xf32>
      tpu.vector_store %arg11[%c0_204, %c0_205], %863 {strides = array<i32>} : memref<4x32xf32, #tpu.memory_space<vmem>>, vector<4x32xf32>,
    } else {
    }
    %c0 = arith.constant 0 : index
    %c0_1 = arith.constant 0 : index
    %3 = vector.load %arg1[%c0, %c0_1] : memref<4x1xi32, #tpu.memory_space<vmem>>, vector<4x1xi32>
    %c0_2 = arith.constant 0 : index
    %c0_3 = arith.constant 0 : index
    %4 = vector.load %arg4[%c0_2, %c0_3] : memref<64x192xf32, #tpu.memory_space<vmem>>, vector<64x192xf32>
    %c0_4 = arith.constant 0 : index
    %c0_5 = arith.constant 0 : index
    %5 = vector.load %arg5[%c0_4, %c0_5] : memref<1x192xf32, #tpu.memory_space<vmem>>, vector<1x192xf32>
    %c0_6 = arith.constant 0 : index
    %c0_7 = arith.constant 0 : index
    %6 = vector.load %arg10[%c0_6, %c0_7] : memref<4x32xf32, #tpu.memory_space<vmem>>, vector<4x32xf32>
    %c0_8 = arith.constant 0 : index
    %c0_9 = arith.constant 0 : index
    %7 = vector.load %arg11[%c0_8, %c0_9] : memref<4x32xf32, #tpu.memory_space<vmem>>, vector<4x32xf32>
    %c0_i32_10 = arith.constant 0 : i32
    %8 = tpu.concatenate %6, %7 in 1 : vector<4x32xf32>, vector<4x32xf32> -> vector<4x64xf32>
    %cst = arith.constant dense<0.000000e+00> : vector<4x192xf32>
    %9 = tpu.matmul %8, %4, %cst {dimension_numbers = #tpu.dot_dimension_numbers<[1], [0], [0], [1], [0, 0, 1, 1], [], []>} : vector<4x64xf32>, vector<64x192xf32>, vector<4x192xf32> -> vector<4x192xf32>
    %10 = vector.broadcast %5 : vector<1x192xf32> to vector<4x192xf32>
    %11 = arith.addf %9, %10 : vector<4x192xf32>
    %12 = arith.index_cast %c0_i32_10 : i32 to index
    %c0_11 = arith.constant 0 : index
    %c0_12 = arith.constant 0 : index
    %13 = vector.load %arg2[%12, %c0_11, %c0_12] : memref<8x4x96xf32, #tpu.memory_space<vmem>>, vector<1x4x96xf32>
    %14 = vector.shape_cast %13 : vector<1x4x96xf32> to vector<4x96xf32>
    %c7_i32 = arith.constant 7 : i32
    %15 = arith.subi %c7_i32, %c0_i32_10 : i32
    %16 = arith.index_cast %15 : i32 to index
    %c0_13 = arith.constant 0 : index
    %c0_14 = arith.constant 0 : index
    %17 = vector.load %arg3[%16, %c0_13, %c0_14] : memref<8x4x96xf32, #tpu.memory_space<vmem>>, vector<1x4x96xf32>
    %18 = vector.shape_cast %17 : vector<1x4x96xf32> to vector<4x96xf32>
    %19 = vector.extract_strided_slice %11 {offsets = [0, 0], sizes = [4, 96], strides = [1, 1]} : vector<4x192xf32> to vector<4x96xf32>
    %20 = vector.extract_strided_slice %14 {offsets = [0, 0], sizes = [4, 32], strides = [1, 1]} : vector<4x96xf32> to vector<4x32xf32>
    %21 = vector.extract_strided_slice %19 {offsets = [0, 0], sizes = [4, 32], strides = [1, 1]} : vector<4x96xf32> to vector<4x32xf32>
    %22 = arith.addf %20, %21 : vector<4x32xf32>
    %23 = arith.negf %22 : vector<4x32xf32>
    %24 = math.exp %23 : vector<4x32xf32>
    %cst_15 = arith.constant 1.000000e+00 : f32
    %25 = vector.broadcast %cst_15 : f32 to vector<4x32xf32>
    %26 = arith.addf %25, %24 : vector<4x32xf32>
    %27 = arith.divf %25, %26 : vector<4x32xf32>
    %28 = vector.extract_strided_slice %14 {offsets = [0, 32], sizes = [4, 32], strides = [1, 1]} : vector<4x96xf32> to vector<4x32xf32>
    %29 = vector.extract_strided_slice %19 {offsets = [0, 32], sizes = [4, 32], strides = [1, 1]} : vector<4x96xf32> to vector<4x32xf32>
    %30 = arith.addf %28, %29 : vector<4x32xf32>
    %31 = arith.negf %30 : vector<4x32xf32>
    %32 = math.exp %31 : vector<4x32xf32>
    %cst_16 = arith.constant 1.000000e+00 : f32
    %33 = vector.broadcast %cst_16 : f32 to vector<4x32xf32>
    %34 = arith.addf %33, %32 : vector<4x32xf32>
    %35 = arith.divf %33, %34 : vector<4x32xf32>
    %36 = vector.extract_strided_slice %14 {offsets = [0, 64], sizes = [4, 32], strides = [1, 1]} : vector<4x96xf32> to vector<4x32xf32>
    %37 = vector.extract_strided_slice %19 {offsets = [0, 64], sizes = [4, 32], strides = [1, 1]} : vector<4x96xf32> to vector<4x32xf32>
    %38 = arith.mulf %27, %37 : vector<4x32xf32>
    %39 = arith.addf %36, %38 : vector<4x32xf32>
    %40 = math.tanh %39 : vector<4x32xf32>
    %cst_17 = arith.constant 1.000000e+00 : f32
    %41 = vector.broadcast %cst_17 : f32 to vector<4x32xf32>
    %42 = arith.subf %41, %35 : vector<4x32xf32>
    %43 = arith.mulf %42, %40 : vector<4x32xf32>
    %44 = arith.mulf %35, %6 : vector<4x32xf32>
    %45 = arith.addf %43, %44 : vector<4x32xf32>
    %46 = vector.extract_strided_slice %11 {offsets = [0, 96], sizes = [4, 96], strides = [1, 1]} : vector<4x192xf32> to vector<4x96xf32>
    %47 = vector.extract_strided_slice %18 {offsets = [0, 0], sizes = [4, 32], strides = [1, 1]} : vector<4x96xf32> to vector<4x32xf32>
    %48 = vector.extract_strided_slice %46 {offsets = [0, 0], sizes = [4, 32], strides = [1, 1]} : vector<4x96xf32> to vector<4x32xf32>
    %49 = arith.addf %47, %48 : vector<4x32xf32>
    %50 = arith.negf %49 : vector<4x32xf32>
    %51 = math.exp %50 : vector<4x32xf32>
    %cst_18 = arith.constant 1.000000e+00 : f32
    %52 = vector.broadcast %cst_18 : f32 to vector<4x32xf32>
    %53 = arith.addf %52, %51 : vector<4x32xf32>
    %54 = arith.divf %52, %53 : vector<4x32xf32>
    %55 = vector.extract_strided_slice %18 {offsets = [0, 32], sizes = [4, 32], strides = [1, 1]} : vector<4x96xf32> to vector<4x32xf32>
    %56 = vector.extract_strided_slice %46 {offsets = [0, 32], sizes = [4, 32], strides = [1, 1]} : vector<4x96xf32> to vector<4x32xf32>
    %57 = arith.addf %55, %56 : vector<4x32xf32>
    %58 = arith.negf %57 : vector<4x32xf32>
    %59 = math.exp %58 : vector<4x32xf32>
    %cst_19 = arith.constant 1.000000e+00 : f32
    %60 = vector.broadcast %cst_19 : f32 to vector<4x32xf32>
    %61 = arith.addf %60, %59 : vector<4x32xf32>
    %62 = arith.divf %60, %61 : vector<4x32xf32>
    %63 = vector.extract_strided_slice %18 {offsets = [0, 64], sizes = [4, 32], strides = [1, 1]} : vector<4x96xf32> to vector<4x32xf32>
    %64 = vector.extract_strided_slice %46 {offsets = [0, 64], sizes = [4, 32], strides = [1, 1]} : vector<4x96xf32> to vector<4x32xf32>
    %65 = arith.mulf %54, %64 : vector<4x32xf32>
    %66 = arith.addf %63, %65 : vector<4x32xf32>
    %67 = math.tanh %66 : vector<4x32xf32>
    %cst_20 = arith.constant 1.000000e+00 : f32
    %68 = vector.broadcast %cst_20 : f32 to vector<4x32xf32>
    %69 = arith.subf %68, %62 : vector<4x32xf32>
    %70 = arith.mulf %69, %67 : vector<4x32xf32>
    %71 = arith.mulf %62, %7 : vector<4x32xf32>
    %72 = arith.addf %70, %71 : vector<4x32xf32>
    %c8_i32 = arith.constant 8 : i32
    %73 = arith.muli %arg0, %c8_i32 : i32
    %74 = arith.addi %73, %c0_i32_10 : i32
    %c0_i32_21 = arith.constant 0 : i32
    %75 = arith.subi %c0_i32_21, %arg0 : i32
    %c8_i32_22 = arith.constant 8 : i32
    %76 = arith.muli %75, %c8_i32_22 : i32
    %c7_i32_23 = arith.constant 7 : i32
    %77 = arith.subi %c7_i32_23, %c0_i32_10 : i32
    %78 = arith.addi %76, %77 : i32
    %79 = vector.broadcast %74 : i32 to vector<4x1xi32>
    %80 = arith.cmpi slt, %79, %3 : vector<4x1xi32>
    %81 = arith.extui %80 : vector<4x1xi1> to vector<4x1xi32>
    %82 = arith.sitofp %81 : vector<4x1xi32> to vector<4x1xf32>
    %83 = vector.broadcast %78 : i32 to vector<4x1xi32>
    %84 = arith.cmpi slt, %83, %3 : vector<4x1xi32>
    %85 = arith.extui %84 : vector<4x1xi1> to vector<4x1xi32>
    %86 = arith.sitofp %85 : vector<4x1xi32> to vector<4x1xf32>
    %87 = vector.broadcast %82 : vector<4x1xf32> to vector<4x32xf32>
    %88 = arith.mulf %87, %45 : vector<4x32xf32>
    %89 = arith.index_cast %c0_i32_10 : i32 to index
    %c0_24 = arith.constant 0 : index
    %c0_25 = arith.constant 0 : index
    %90 = vector.load %arg6[%89, %c0_24, %c0_25] : memref<8x4x32xf32, #tpu.memory_space<vmem>>, vector<1x4x32xf32>
    %91 = vector.shape_cast %90 : vector<1x4x32xf32> to vector<4x32xf32>
    %92 = vector.shape_cast %88 : vector<4x32xf32> to vector<1x4x32xf32>
    tpu.vector_store %arg6[%89, %c0_24, %c0_25], %92 {strides = array<i32>} : memref<8x4x32xf32, #tpu.memory_space<vmem>>, vector<1x4x32xf32>,
    %93 = vector.broadcast %86 : vector<4x1xf32> to vector<4x32xf32>
    %94 = arith.mulf %93, %72 : vector<4x32xf32>
    %c7_i32_26 = arith.constant 7 : i32
    %95 = arith.subi %c7_i32_26, %c0_i32_10 : i32
    %96 = arith.index_cast %95 : i32 to index
    %c0_27 = arith.constant 0 : index
    %c0_28 = arith.constant 0 : index
    %97 = vector.load %arg7[%96, %c0_27, %c0_28] : memref<8x4x32xf32, #tpu.memory_space<vmem>>, vector<1x4x32xf32>
    %98 = vector.shape_cast %97 : vector<1x4x32xf32> to vector<4x32xf32>
    %99 = vector.shape_cast %94 : vector<4x32xf32> to vector<1x4x32xf32>
    tpu.vector_store %arg7[%96, %c0_27, %c0_28], %99 {strides = array<i32>} : memref<8x4x32xf32, #tpu.memory_space<vmem>>, vector<1x4x32xf32>,
    %100 = vector.broadcast %82 : vector<4x1xf32> to vector<4x32xf32>
    %101 = arith.mulf %100, %45 : vector<4x32xf32>
    %cst_29 = arith.constant 1.000000e+00 : f32
    %102 = vector.broadcast %cst_29 : f32 to vector<4x1xf32>
    %103 = arith.subf %102, %82 : vector<4x1xf32>
    %104 = vector.broadcast %103 : vector<4x1xf32> to vector<4x32xf32>
    %105 = arith.mulf %104, %6 : vector<4x32xf32>
    %106 = arith.addf %101, %105 : vector<4x32xf32>
    %107 = vector.broadcast %86 : vector<4x1xf32> to vector<4x32xf32>
    %108 = arith.mulf %107, %72 : vector<4x32xf32>
    %cst_30 = arith.constant 1.000000e+00 : f32
    %109 = vector.broadcast %cst_30 : f32 to vector<4x1xf32>
    %110 = arith.subf %109, %86 : vector<4x1xf32>
    %111 = vector.broadcast %110 : vector<4x1xf32> to vector<4x32xf32>
    %112 = arith.mulf %111, %7 : vector<4x32xf32>
    %113 = arith.addf %108, %112 : vector<4x32xf32>
    %c1_i32 = arith.constant 1 : i32
    %114 = tpu.concatenate %106, %113 in 1 : vector<4x32xf32>, vector<4x32xf32> -> vector<4x64xf32>
    %cst_31 = arith.constant dense<0.000000e+00> : vector<4x192xf32>
    %115 = tpu.matmul %114, %4, %cst_31 {dimension_numbers = #tpu.dot_dimension_numbers<[1], [0], [0], [1], [0, 0, 1, 1], [], []>} : vector<4x64xf32>, vector<64x192xf32>, vector<4x192xf32> -> vector<4x192xf32>
    %116 = vector.broadcast %5 : vector<1x192xf32> to vector<4x192xf32>
    %117 = arith.addf %115, %116 : vector<4x192xf32>
    %118 = arith.index_cast %c1_i32 : i32 to index
    %c0_32 = arith.constant 0 : index
    %c0_33 = arith.constant 0 : index
    %119 = vector.load %arg2[%118, %c0_32, %c0_33] : memref<8x4x96xf32, #tpu.memory_space<vmem>>, vector<1x4x96xf32>
    %120 = vector.shape_cast %119 : vector<1x4x96xf32> to vector<4x96xf32>
    %c7_i32_34 = arith.constant 7 : i32
    %121 = arith.subi %c7_i32_34, %c1_i32 : i32
    %122 = arith.index_cast %121 : i32 to index
    %c0_35 = arith.constant 0 : index
    %c0_36 = arith.constant 0 : index
    %123 = vector.load %arg3[%122, %c0_35, %c0_36] : memref<8x4x96xf32, #tpu.memory_space<vmem>>, vector<1x4x96xf32>
    %124 = vector.shape_cast %123 : vector<1x4x96xf32> to vector<4x96xf32>
    %125 = vector.extract_strided_slice %117 {offsets = [0, 0], sizes = [4, 96], strides = [1, 1]} : vector<4x192xf32> to vector<4x96xf32>
    %126 = vector.extract_strided_slice %120 {offsets = [0, 0], sizes = [4, 32], strides = [1, 1]} : vector<4x96xf32> to vector<4x32xf32>
    %127 = vector.extract_strided_slice %125 {offsets = [0, 0], sizes = [4, 32], strides = [1, 1]} : vector<4x96xf32> to vector<4x32xf32>
    %128 = arith.addf %126, %127 : vector<4x32xf32>
    %129 = arith.negf %128 : vector<4x32xf32>
    %130 = math.exp %129 : vector<4x32xf32>
    %cst_37 = arith.constant 1.000000e+00 : f32
    %131 = vector.broadcast %cst_37 : f32 to vector<4x32xf32>
    %132 = arith.addf %131, %130 : vector<4x32xf32>
    %133 = arith.divf %131, %132 : vector<4x32xf32>
    %134 = vector.extract_strided_slice %120 {offsets = [0, 32], sizes = [4, 32], strides = [1, 1]} : vector<4x96xf32> to vector<4x32xf32>
    %135 = vector.extract_strided_slice %125 {offsets = [0, 32], sizes = [4, 32], strides = [1, 1]} : vector<4x96xf32> to vector<4x32xf32>
    %136 = arith.addf %134, %135 : vector<4x32xf32>
    %137 = arith.negf %136 : vector<4x32xf32>
    %138 = math.exp %137 : vector<4x32xf32>
    %cst_38 = arith.constant 1.000000e+00 : f32
    %139 = vector.broadcast %cst_38 : f32 to vector<4x32xf32>
    %140 = arith.addf %139, %138 : vector<4x32xf32>
    %141 = arith.divf %139, %140 : vector<4x32xf32>
    %142 = vector.extract_strided_slice %120 {offsets = [0, 64], sizes = [4, 32], strides = [1, 1]} : vector<4x96xf32> to vector<4x32xf32>
    %143 = vector.extract_strided_slice %125 {offsets = [0, 64], sizes = [4, 32], strides = [1, 1]} : vector<4x96xf32> to vector<4x32xf32>
    %144 = arith.mulf %133, %143 : vector<4x32xf32>
    %145 = arith.addf %142, %144 : vector<4x32xf32>
    %146 = math.tanh %145 : vector<4x32xf32>
    %cst_39 = arith.constant 1.000000e+00 : f32
    %147 = vector.broadcast %cst_39 : f32 to vector<4x32xf32>
    %148 = arith.subf %147, %141 : vector<4x32xf32>
    %149 = arith.mulf %148, %146 : vector<4x32xf32>
    %150 = arith.mulf %141, %106 : vector<4x32xf32>
    %151 = arith.addf %149, %150 : vector<4x32xf32>
    %152 = vector.extract_strided_slice %117 {offsets = [0, 96], sizes = [4, 96], strides = [1, 1]} : vector<4x192xf32> to vector<4x96xf32>
    %153 = vector.extract_strided_slice %124 {offsets = [0, 0], sizes = [4, 32], strides = [1, 1]} : vector<4x96xf32> to vector<4x32xf32>
    %154 = vector.extract_strided_slice %152 {offsets = [0, 0], sizes = [4, 32], strides = [1, 1]} : vector<4x96xf32> to vector<4x32xf32>
    %155 = arith.addf %153, %154 : vector<4x32xf32>
    %156 = arith.negf %155 : vector<4x32xf32>
    %157 = math.exp %156 : vector<4x32xf32>
    %cst_40 = arith.constant 1.000000e+00 : f32
    %158 = vector.broadcast %cst_40 : f32 to vector<4x32xf32>
    %159 = arith.addf %158, %157 : vector<4x32xf32>
    %160 = arith.divf %158, %159 : vector<4x32xf32>
    %161 = vector.extract_strided_slice %124 {offsets = [0, 32], sizes = [4, 32], strides = [1, 1]} : vector<4x96xf32> to vector<4x32xf32>
    %162 = vector.extract_strided_slice %152 {offsets = [0, 32], sizes = [4, 32], strides = [1, 1]} : vector<4x96xf32> to vector<4x32xf32>
    %163 = arith.addf %161, %162 : vector<4x32xf32>
    %164 = arith.negf %163 : vector<4x32xf32>
    %165 = math.exp %164 : vector<4x32xf32>
    %cst_41 = arith.constant 1.000000e+00 : f32
    %166 = vector.broadcast %cst_41 : f32 to vector<4x32xf32>
    %167 = arith.addf %166, %165 : vector<4x32xf32>
    %168 = arith.divf %166, %167 : vector<4x32xf32>
    %169 = vector.extract_strided_slice %124 {offsets = [0, 64], sizes = [4, 32], strides = [1, 1]} : vector<4x96xf32> to vector<4x32xf32>
    %170 = vector.extract_strided_slice %152 {offsets = [0, 64], sizes = [4, 32], strides = [1, 1]} : vector<4x96xf32> to vector<4x32xf32>
    %171 = arith.mulf %160, %170 : vector<4x32xf32>
    %172 = arith.addf %169, %171 : vector<4x32xf32>
    %173 = math.tanh %172 : vector<4x32xf32>
    %cst_42 = arith.constant 1.000000e+00 : f32
    %174 = vector.broadcast %cst_42 : f32 to vector<4x32xf32>
    %175 = arith.subf %174, %168 : vector<4x32xf32>
    %176 = arith.mulf %175, %173 : vector<4x32xf32>
    %177 = arith.mulf %168, %113 : vector<4x32xf32>
    %178 = arith.addf %176, %177 : vector<4x32xf32>
    %c8_i32_43 = arith.constant 8 : i32
    %179 = arith.muli %arg0, %c8_i32_43 : i32
    %180 = arith.addi %179, %c1_i32 : i32
    %c0_i32_44 = arith.constant 0 : i32
    %181 = arith.subi %c0_i32_44, %arg0 : i32
    %c8_i32_45 = arith.constant 8 : i32
    %182 = arith.muli %181, %c8_i32_45 : i32
    %c7_i32_46 = arith.constant 7 : i32
    %183 = arith.subi %c7_i32_46, %c1_i32 : i32
    %184 = arith.addi %182, %183 : i32
    %185 = vector.broadcast %180 : i32 to vector<4x1xi32>
    %186 = arith.cmpi slt, %185, %3 : vector<4x1xi32>
    %187 = arith.extui %186 : vector<4x1xi1> to vector<4x1xi32>
    %188 = arith.sitofp %187 : vector<4x1xi32> to vector<4x1xf32>
    %189 = vector.broadcast %184 : i32 to vector<4x1xi32>
    %190 = arith.cmpi slt, %189, %3 : vector<4x1xi32>
    %191 = arith.extui %190 : vector<4x1xi1> to vector<4x1xi32>
    %192 = arith.sitofp %191 : vector<4x1xi32> to vector<4x1xf32>
    %193 = vector.broadcast %188 : vector<4x1xf32> to vector<4x32xf32>
    %194 = arith.mulf %193, %151 : vector<4x32xf32>
    %195 = arith.index_cast %c1_i32 : i32 to index
    %c0_47 = arith.constant 0 : index
    %c0_48 = arith.constant 0 : index
    %196 = vector.load %arg6[%195, %c0_47, %c0_48] : memref<8x4x32xf32, #tpu.memory_space<vmem>>, vector<1x4x32xf32>
    %197 = vector.shape_cast %196 : vector<1x4x32xf32> to vector<4x32xf32>
    %198 = vector.shape_cast %194 : vector<4x32xf32> to vector<1x4x32xf32>
    tpu.vector_store %arg6[%195, %c0_47, %c0_48], %198 {strides = array<i32>} : memref<8x4x32xf32, #tpu.memory_space<vmem>>, vector<1x4x32xf32>,
    %199 = vector.broadcast %192 : vector<4x1xf32> to vector<4x32xf32>
    %200 = arith.mulf %199, %178 : vector<4x32xf32>
    %c7_i32_49 = arith.constant 7 : i32
    %201 = arith.subi %c7_i32_49, %c1_i32 : i32
    %202 = arith.index_cast %201 : i32 to index
    %c0_50 = arith.constant 0 : index
    %c0_51 = arith.constant 0 : index
    %203 = vector.load %arg7[%202, %c0_50, %c0_51] : memref<8x4x32xf32, #tpu.memory_space<vmem>>, vector<1x4x32xf32>
    %204 = vector.shape_cast %203 : vector<1x4x32xf32> to vector<4x32xf32>
    %205 = vector.shape_cast %200 : vector<4x32xf32> to vector<1x4x32xf32>
    tpu.vector_store %arg7[%202, %c0_50, %c0_51], %205 {strides = array<i32>} : memref<8x4x32xf32, #tpu.memory_space<vmem>>, vector<1x4x32xf32>,
    %206 = vector.broadcast %188 : vector<4x1xf32> to vector<4x32xf32>
    %207 = arith.mulf %206, %151 : vector<4x32xf32>
    %cst_52 = arith.constant 1.000000e+00 : f32
    %208 = vector.broadcast %cst_52 : f32 to vector<4x1xf32>
    %209 = arith.subf %208, %188 : vector<4x1xf32>
    %210 = vector.broadcast %209 : vector<4x1xf32> to vector<4x32xf32>
    %211 = arith.mulf %210, %106 : vector<4x32xf32>
    %212 = arith.addf %207, %211 : vector<4x32xf32>
    %213 = vector.broadcast %192 : vector<4x1xf32> to vector<4x32xf32>
    %214 = arith.mulf %213, %178 : vector<4x32xf32>
    %cst_53 = arith.constant 1.000000e+00 : f32
    %215 = vector.broadcast %cst_53 : f32 to vector<4x1xf32>
    %216 = arith.subf %215, %192 : vector<4x1xf32>
    %217 = vector.broadcast %216 : vector<4x1xf32> to vector<4x32xf32>
    %218 = arith.mulf %217, %113 : vector<4x32xf32>
    %219 = arith.addf %214, %218 : vector<4x32xf32>
    %c2_i32 = arith.constant 2 : i32
    %220 = tpu.concatenate %212, %219 in 1 : vector<4x32xf32>, vector<4x32xf32> -> vector<4x64xf32>
    %cst_54 = arith.constant dense<0.000000e+00> : vector<4x192xf32>
    %221 = tpu.matmul %220, %4, %cst_54 {dimension_numbers = #tpu.dot_dimension_numbers<[1], [0], [0], [1], [0, 0, 1, 1], [], []>} : vector<4x64xf32>, vector<64x192xf32>, vector<4x192xf32> -> vector<4x192xf32>
    %222 = vector.broadcast %5 : vector<1x192xf32> to vector<4x192xf32>
    %223 = arith.addf %221, %222 : vector<4x192xf32>
    %224 = arith.index_cast %c2_i32 : i32 to index
    %c0_55 = arith.constant 0 : index
    %c0_56 = arith.constant 0 : index
    %225 = vector.load %arg2[%224, %c0_55, %c0_56] : memref<8x4x96xf32, #tpu.memory_space<vmem>>, vector<1x4x96xf32>
    %226 = vector.shape_cast %225 : vector<1x4x96xf32> to vector<4x96xf32>
    %c7_i32_57 = arith.constant 7 : i32
    %227 = arith.subi %c7_i32_57, %c2_i32 : i32
    %228 = arith.index_cast %227 : i32 to index
    %c0_58 = arith.constant 0 : index
    %c0_59 = arith.constant 0 : index
    %229 = vector.load %arg3[%228, %c0_58, %c0_59] : memref<8x4x96xf32, #tpu.memory_space<vmem>>, vector<1x4x96xf32>
    %230 = vector.shape_cast %229 : vector<1x4x96xf32> to vector<4x96xf32>
    %231 = vector.extract_strided_slice %223 {offsets = [0, 0], sizes = [4, 96], strides = [1, 1]} : vector<4x192xf32> to vector<4x96xf32>
    %232 = vector.extract_strided_slice %226 {offsets = [0, 0], sizes = [4, 32], strides = [1, 1]} : vector<4x96xf32> to vector<4x32xf32>
    %233 = vector.extract_strided_slice %231 {offsets = [0, 0], sizes = [4, 32], strides = [1, 1]} : vector<4x96xf32> to vector<4x32xf32>
    %234 = arith.addf %232, %233 : vector<4x32xf32>
    %235 = arith.negf %234 : vector<4x32xf32>
    %236 = math.exp %235 : vector<4x32xf32>
    %cst_60 = arith.constant 1.000000e+00 : f32
    %237 = vector.broadcast %cst_60 : f32 to vector<4x32xf32>
    %238 = arith.addf %237, %236 : vector<4x32xf32>
    %239 = arith.divf %237, %238 : vector<4x32xf32>
    %240 = vector.extract_strided_slice %226 {offsets = [0, 32], sizes = [4, 32], strides = [1, 1]} : vector<4x96xf32> to vector<4x32xf32>
    %241 = vector.extract_strided_slice %231 {offsets = [0, 32], sizes = [4, 32], strides = [1, 1]} : vector<4x96xf32> to vector<4x32xf32>
    %242 = arith.addf %240, %241 : vector<4x32xf32>
    %243 = arith.negf %242 : vector<4x32xf32>
    %244 = math.exp %243 : vector<4x32xf32>
    %cst_61 = arith.constant 1.000000e+00 : f32
    %245 = vector.broadcast %cst_61 : f32 to vector<4x32xf32>
    %246 = arith.addf %245, %244 : vector<4x32xf32>
    %247 = arith.divf %245, %246 : vector<4x32xf32>
    %248 = vector.extract_strided_slice %226 {offsets = [0, 64], sizes = [4, 32], strides = [1, 1]} : vector<4x96xf32> to vector<4x32xf32>
    %249 = vector.extract_strided_slice %231 {offsets = [0, 64], sizes = [4, 32], strides = [1, 1]} : vector<4x96xf32> to vector<4x32xf32>
    %250 = arith.mulf %239, %249 : vector<4x32xf32>
    %251 = arith.addf %248, %250 : vector<4x32xf32>
    %252 = math.tanh %251 : vector<4x32xf32>
    %cst_62 = arith.constant 1.000000e+00 : f32
    %253 = vector.broadcast %cst_62 : f32 to vector<4x32xf32>
    %254 = arith.subf %253, %247 : vector<4x32xf32>
    %255 = arith.mulf %254, %252 : vector<4x32xf32>
    %256 = arith.mulf %247, %212 : vector<4x32xf32>
    %257 = arith.addf %255, %256 : vector<4x32xf32>
    %258 = vector.extract_strided_slice %223 {offsets = [0, 96], sizes = [4, 96], strides = [1, 1]} : vector<4x192xf32> to vector<4x96xf32>
    %259 = vector.extract_strided_slice %230 {offsets = [0, 0], sizes = [4, 32], strides = [1, 1]} : vector<4x96xf32> to vector<4x32xf32>
    %260 = vector.extract_strided_slice %258 {offsets = [0, 0], sizes = [4, 32], strides = [1, 1]} : vector<4x96xf32> to vector<4x32xf32>
    %261 = arith.addf %259, %260 : vector<4x32xf32>
    %262 = arith.negf %261 : vector<4x32xf32>
    %263 = math.exp %262 : vector<4x32xf32>
    %cst_63 = arith.constant 1.000000e+00 : f32
    %264 = vector.broadcast %cst_63 : f32 to vector<4x32xf32>
    %265 = arith.addf %264, %263 : vector<4x32xf32>
    %266 = arith.divf %264, %265 : vector<4x32xf32>
    %267 = vector.extract_strided_slice %230 {offsets = [0, 32], sizes = [4, 32], strides = [1, 1]} : vector<4x96xf32> to vector<4x32xf32>
    %268 = vector.extract_strided_slice %258 {offsets = [0, 32], sizes = [4, 32], strides = [1, 1]} : vector<4x96xf32> to vector<4x32xf32>
    %269 = arith.addf %267, %268 : vector<4x32xf32>
    %270 = arith.negf %269 : vector<4x32xf32>
    %271 = math.exp %270 : vector<4x32xf32>
    %cst_64 = arith.constant 1.000000e+00 : f32
    %272 = vector.broadcast %cst_64 : f32 to vector<4x32xf32>
    %273 = arith.addf %272, %271 : vector<4x32xf32>
    %274 = arith.divf %272, %273 : vector<4x32xf32>
    %275 = vector.extract_strided_slice %230 {offsets = [0, 64], sizes = [4, 32], strides = [1, 1]} : vector<4x96xf32> to vector<4x32xf32>
    %276 = vector.extract_strided_slice %258 {offsets = [0, 64], sizes = [4, 32], strides = [1, 1]} : vector<4x96xf32> to vector<4x32xf32>
    %277 = arith.mulf %266, %276 : vector<4x32xf32>
    %278 = arith.addf %275, %277 : vector<4x32xf32>
    %279 = math.tanh %278 : vector<4x32xf32>
    %cst_65 = arith.constant 1.000000e+00 : f32
    %280 = vector.broadcast %cst_65 : f32 to vector<4x32xf32>
    %281 = arith.subf %280, %274 : vector<4x32xf32>
    %282 = arith.mulf %281, %279 : vector<4x32xf32>
    %283 = arith.mulf %274, %219 : vector<4x32xf32>
    %284 = arith.addf %282, %283 : vector<4x32xf32>
    %c8_i32_66 = arith.constant 8 : i32
    %285 = arith.muli %arg0, %c8_i32_66 : i32
    %286 = arith.addi %285, %c2_i32 : i32
    %c0_i32_67 = arith.constant 0 : i32
    %287 = arith.subi %c0_i32_67, %arg0 : i32
    %c8_i32_68 = arith.constant 8 : i32
    %288 = arith.muli %287, %c8_i32_68 : i32
    %c7_i32_69 = arith.constant 7 : i32
    %289 = arith.subi %c7_i32_69, %c2_i32 : i32
    %290 = arith.addi %288, %289 : i32
    %291 = vector.broadcast %286 : i32 to vector<4x1xi32>
    %292 = arith.cmpi slt, %291, %3 : vector<4x1xi32>
    %293 = arith.extui %292 : vector<4x1xi1> to vector<4x1xi32>
    %294 = arith.sitofp %293 : vector<4x1xi32> to vector<4x1xf32>
    %295 = vector.broadcast %290 : i32 to vector<4x1xi32>
    %296 = arith.cmpi slt, %295, %3 : vector<4x1xi32>
    %297 = arith.extui %296 : vector<4x1xi1> to vector<4x1xi32>
    %298 = arith.sitofp %297 : vector<4x1xi32> to vector<4x1xf32>
    %299 = vector.broadcast %294 : vector<4x1xf32> to vector<4x32xf32>
    %300 = arith.mulf %299, %257 : vector<4x32xf32>
    %301 = arith.index_cast %c2_i32 : i32 to index
    %c0_70 = arith.constant 0 : index
    %c0_71 = arith.constant 0 : index
    %302 = vector.load %arg6[%301, %c0_70, %c0_71] : memref<8x4x32xf32, #tpu.memory_space<vmem>>, vector<1x4x32xf32>
    %303 = vector.shape_cast %302 : vector<1x4x32xf32> to vector<4x32xf32>
    %304 = vector.shape_cast %300 : vector<4x32xf32> to vector<1x4x32xf32>
    tpu.vector_store %arg6[%301, %c0_70, %c0_71], %304 {strides = array<i32>} : memref<8x4x32xf32, #tpu.memory_space<vmem>>, vector<1x4x32xf32>,
    %305 = vector.broadcast %298 : vector<4x1xf32> to vector<4x32xf32>
    %306 = arith.mulf %305, %284 : vector<4x32xf32>
    %c7_i32_72 = arith.constant 7 : i32
    %307 = arith.subi %c7_i32_72, %c2_i32 : i32
    %308 = arith.index_cast %307 : i32 to index
    %c0_73 = arith.constant 0 : index
    %c0_74 = arith.constant 0 : index
    %309 = vector.load %arg7[%308, %c0_73, %c0_74] : memref<8x4x32xf32, #tpu.memory_space<vmem>>, vector<1x4x32xf32>
    %310 = vector.shape_cast %309 : vector<1x4x32xf32> to vector<4x32xf32>
    %311 = vector.shape_cast %306 : vector<4x32xf32> to vector<1x4x32xf32>
    tpu.vector_store %arg7[%308, %c0_73, %c0_74], %311 {strides = array<i32>} : memref<8x4x32xf32, #tpu.memory_space<vmem>>, vector<1x4x32xf32>,
    %312 = vector.broadcast %294 : vector<4x1xf32> to vector<4x32xf32>
    %313 = arith.mulf %312, %257 : vector<4x32xf32>
    %cst_75 = arith.constant 1.000000e+00 : f32
    %314 = vector.broadcast %cst_75 : f32 to vector<4x1xf32>
    %315 = arith.subf %314, %294 : vector<4x1xf32>
    %316 = vector.broadcast %315 : vector<4x1xf32> to vector<4x32xf32>
    %317 = arith.mulf %316, %212 : vector<4x32xf32>
    %318 = arith.addf %313, %317 : vector<4x32xf32>
    %319 = vector.broadcast %298 : vector<4x1xf32> to vector<4x32xf32>
    %320 = arith.mulf %319, %284 : vector<4x32xf32>
    %cst_76 = arith.constant 1.000000e+00 : f32
    %321 = vector.broadcast %cst_76 : f32 to vector<4x1xf32>
    %322 = arith.subf %321, %298 : vector<4x1xf32>
    %323 = vector.broadcast %322 : vector<4x1xf32> to vector<4x32xf32>
    %324 = arith.mulf %323, %219 : vector<4x32xf32>
    %325 = arith.addf %320, %324 : vector<4x32xf32>
    %c3_i32 = arith.constant 3 : i32
    %326 = tpu.concatenate %318, %325 in 1 : vector<4x32xf32>, vector<4x32xf32> -> vector<4x64xf32>
    %cst_77 = arith.constant dense<0.000000e+00> : vector<4x192xf32>
    %327 = tpu.matmul %326, %4, %cst_77 {dimension_numbers = #tpu.dot_dimension_numbers<[1], [0], [0], [1], [0, 0, 1, 1], [], []>} : vector<4x64xf32>, vector<64x192xf32>, vector<4x192xf32> -> vector<4x192xf32>
    %328 = vector.broadcast %5 : vector<1x192xf32> to vector<4x192xf32>
    %329 = arith.addf %327, %328 : vector<4x192xf32>
    %330 = arith.index_cast %c3_i32 : i32 to index
    %c0_78 = arith.constant 0 : index
    %c0_79 = arith.constant 0 : index
    %331 = vector.load %arg2[%330, %c0_78, %c0_79] : memref<8x4x96xf32, #tpu.memory_space<vmem>>, vector<1x4x96xf32>
    %332 = vector.shape_cast %331 : vector<1x4x96xf32> to vector<4x96xf32>
    %c7_i32_80 = arith.constant 7 : i32
    %333 = arith.subi %c7_i32_80, %c3_i32 : i32
    %334 = arith.index_cast %333 : i32 to index
    %c0_81 = arith.constant 0 : index
    %c0_82 = arith.constant 0 : index
    %335 = vector.load %arg3[%334, %c0_81, %c0_82] : memref<8x4x96xf32, #tpu.memory_space<vmem>>, vector<1x4x96xf32>
    %336 = vector.shape_cast %335 : vector<1x4x96xf32> to vector<4x96xf32>
    %337 = vector.extract_strided_slice %329 {offsets = [0, 0], sizes = [4, 96], strides = [1, 1]} : vector<4x192xf32> to vector<4x96xf32>
    %338 = vector.extract_strided_slice %332 {offsets = [0, 0], sizes = [4, 32], strides = [1, 1]} : vector<4x96xf32> to vector<4x32xf32>
    %339 = vector.extract_strided_slice %337 {offsets = [0, 0], sizes = [4, 32], strides = [1, 1]} : vector<4x96xf32> to vector<4x32xf32>
    %340 = arith.addf %338, %339 : vector<4x32xf32>
    %341 = arith.negf %340 : vector<4x32xf32>
    %342 = math.exp %341 : vector<4x32xf32>
    %cst_83 = arith.constant 1.000000e+00 : f32
    %343 = vector.broadcast %cst_83 : f32 to vector<4x32xf32>
    %344 = arith.addf %343, %342 : vector<4x32xf32>
    %345 = arith.divf %343, %344 : vector<4x32xf32>
    %346 = vector.extract_strided_slice %332 {offsets = [0, 32], sizes = [4, 32], strides = [1, 1]} : vector<4x96xf32> to vector<4x32xf32>
    %347 = vector.extract_strided_slice %337 {offsets = [0, 32], sizes = [4, 32], strides = [1, 1]} : vector<4x96xf32> to vector<4x32xf32>
    %348 = arith.addf %346, %347 : vector<4x32xf32>
    %349 = arith.negf %348 : vector<4x32xf32>
    %350 = math.exp %349 : vector<4x32xf32>
    %cst_84 = arith.constant 1.000000e+00 : f32
    %351 = vector.broadcast %cst_84 : f32 to vector<4x32xf32>
    %352 = arith.addf %351, %350 : vector<4x32xf32>
    %353 = arith.divf %351, %352 : vector<4x32xf32>
    %354 = vector.extract_strided_slice %332 {offsets = [0, 64], sizes = [4, 32], strides = [1, 1]} : vector<4x96xf32> to vector<4x32xf32>
    %355 = vector.extract_strided_slice %337 {offsets = [0, 64], sizes = [4, 32], strides = [1, 1]} : vector<4x96xf32> to vector<4x32xf32>
    %356 = arith.mulf %345, %355 : vector<4x32xf32>
    %357 = arith.addf %354, %356 : vector<4x32xf32>
    %358 = math.tanh %357 : vector<4x32xf32>
    %cst_85 = arith.constant 1.000000e+00 : f32
    %359 = vector.broadcast %cst_85 : f32 to vector<4x32xf32>
    %360 = arith.subf %359, %353 : vector<4x32xf32>
    %361 = arith.mulf %360, %358 : vector<4x32xf32>
    %362 = arith.mulf %353, %318 : vector<4x32xf32>
    %363 = arith.addf %361, %362 : vector<4x32xf32>
    %364 = vector.extract_strided_slice %329 {offsets = [0, 96], sizes = [4, 96], strides = [1, 1]} : vector<4x192xf32> to vector<4x96xf32>
    %365 = vector.extract_strided_slice %336 {offsets = [0, 0], sizes = [4, 32], strides = [1, 1]} : vector<4x96xf32> to vector<4x32xf32>
    %366 = vector.extract_strided_slice %364 {offsets = [0, 0], sizes = [4, 32], strides = [1, 1]} : vector<4x96xf32> to vector<4x32xf32>
    %367 = arith.addf %365, %366 : vector<4x32xf32>
    %368 = arith.negf %367 : vector<4x32xf32>
    %369 = math.exp %368 : vector<4x32xf32>
    %cst_86 = arith.constant 1.000000e+00 : f32
    %370 = vector.broadcast %cst_86 : f32 to vector<4x32xf32>
    %371 = arith.addf %370, %369 : vector<4x32xf32>
    %372 = arith.divf %370, %371 : vector<4x32xf32>
    %373 = vector.extract_strided_slice %336 {offsets = [0, 32], sizes = [4, 32], strides = [1, 1]} : vector<4x96xf32> to vector<4x32xf32>
    %374 = vector.extract_strided_slice %364 {offsets = [0, 32], sizes = [4, 32], strides = [1, 1]} : vector<4x96xf32> to vector<4x32xf32>
    %375 = arith.addf %373, %374 : vector<4x32xf32>
    %376 = arith.negf %375 : vector<4x32xf32>
    %377 = math.exp %376 : vector<4x32xf32>
    %cst_87 = arith.constant 1.000000e+00 : f32
    %378 = vector.broadcast %cst_87 : f32 to vector<4x32xf32>
    %379 = arith.addf %378, %377 : vector<4x32xf32>
    %380 = arith.divf %378, %379 : vector<4x32xf32>
    %381 = vector.extract_strided_slice %336 {offsets = [0, 64], sizes = [4, 32], strides = [1, 1]} : vector<4x96xf32> to vector<4x32xf32>
    %382 = vector.extract_strided_slice %364 {offsets = [0, 64], sizes = [4, 32], strides = [1, 1]} : vector<4x96xf32> to vector<4x32xf32>
    %383 = arith.mulf %372, %382 : vector<4x32xf32>
    %384 = arith.addf %381, %383 : vector<4x32xf32>
    %385 = math.tanh %384 : vector<4x32xf32>
    %cst_88 = arith.constant 1.000000e+00 : f32
    %386 = vector.broadcast %cst_88 : f32 to vector<4x32xf32>
    %387 = arith.subf %386, %380 : vector<4x32xf32>
    %388 = arith.mulf %387, %385 : vector<4x32xf32>
    %389 = arith.mulf %380, %325 : vector<4x32xf32>
    %390 = arith.addf %388, %389 : vector<4x32xf32>
    %c8_i32_89 = arith.constant 8 : i32
    %391 = arith.muli %arg0, %c8_i32_89 : i32
    %392 = arith.addi %391, %c3_i32 : i32
    %c0_i32_90 = arith.constant 0 : i32
    %393 = arith.subi %c0_i32_90, %arg0 : i32
    %c8_i32_91 = arith.constant 8 : i32
    %394 = arith.muli %393, %c8_i32_91 : i32
    %c7_i32_92 = arith.constant 7 : i32
    %395 = arith.subi %c7_i32_92, %c3_i32 : i32
    %396 = arith.addi %394, %395 : i32
    %397 = vector.broadcast %392 : i32 to vector<4x1xi32>
    %398 = arith.cmpi slt, %397, %3 : vector<4x1xi32>
    %399 = arith.extui %398 : vector<4x1xi1> to vector<4x1xi32>
    %400 = arith.sitofp %399 : vector<4x1xi32> to vector<4x1xf32>
    %401 = vector.broadcast %396 : i32 to vector<4x1xi32>
    %402 = arith.cmpi slt, %401, %3 : vector<4x1xi32>
    %403 = arith.extui %402 : vector<4x1xi1> to vector<4x1xi32>
    %404 = arith.sitofp %403 : vector<4x1xi32> to vector<4x1xf32>
    %405 = vector.broadcast %400 : vector<4x1xf32> to vector<4x32xf32>
    %406 = arith.mulf %405, %363 : vector<4x32xf32>
    %407 = arith.index_cast %c3_i32 : i32 to index
    %c0_93 = arith.constant 0 : index
    %c0_94 = arith.constant 0 : index
    %408 = vector.load %arg6[%407, %c0_93, %c0_94] : memref<8x4x32xf32, #tpu.memory_space<vmem>>, vector<1x4x32xf32>
    %409 = vector.shape_cast %408 : vector<1x4x32xf32> to vector<4x32xf32>
    %410 = vector.shape_cast %406 : vector<4x32xf32> to vector<1x4x32xf32>
    tpu.vector_store %arg6[%407, %c0_93, %c0_94], %410 {strides = array<i32>} : memref<8x4x32xf32, #tpu.memory_space<vmem>>, vector<1x4x32xf32>,
    %411 = vector.broadcast %404 : vector<4x1xf32> to vector<4x32xf32>
    %412 = arith.mulf %411, %390 : vector<4x32xf32>
    %c7_i32_95 = arith.constant 7 : i32
    %413 = arith.subi %c7_i32_95, %c3_i32 : i32
    %414 = arith.index_cast %413 : i32 to index
    %c0_96 = arith.constant 0 : index
    %c0_97 = arith.constant 0 : index
    %415 = vector.load %arg7[%414, %c0_96, %c0_97] : memref<8x4x32xf32, #tpu.memory_space<vmem>>, vector<1x4x32xf32>
    %416 = vector.shape_cast %415 : vector<1x4x32xf32> to vector<4x32xf32>
    %417 = vector.shape_cast %412 : vector<4x32xf32> to vector<1x4x32xf32>
    tpu.vector_store %arg7[%414, %c0_96, %c0_97], %417 {strides = array<i32>} : memref<8x4x32xf32, #tpu.memory_space<vmem>>, vector<1x4x32xf32>,
    %418 = vector.broadcast %400 : vector<4x1xf32> to vector<4x32xf32>
    %419 = arith.mulf %418, %363 : vector<4x32xf32>
    %cst_98 = arith.constant 1.000000e+00 : f32
    %420 = vector.broadcast %cst_98 : f32 to vector<4x1xf32>
    %421 = arith.subf %420, %400 : vector<4x1xf32>
    %422 = vector.broadcast %421 : vector<4x1xf32> to vector<4x32xf32>
    %423 = arith.mulf %422, %318 : vector<4x32xf32>
    %424 = arith.addf %419, %423 : vector<4x32xf32>
    %425 = vector.broadcast %404 : vector<4x1xf32> to vector<4x32xf32>
    %426 = arith.mulf %425, %390 : vector<4x32xf32>
    %cst_99 = arith.constant 1.000000e+00 : f32
    %427 = vector.broadcast %cst_99 : f32 to vector<4x1xf32>
    %428 = arith.subf %427, %404 : vector<4x1xf32>
    %429 = vector.broadcast %428 : vector<4x1xf32> to vector<4x32xf32>
    %430 = arith.mulf %429, %325 : vector<4x32xf32>
    %431 = arith.addf %426, %430 : vector<4x32xf32>
    %c4_i32 = arith.constant 4 : i32
    %432 = tpu.concatenate %424, %431 in 1 : vector<4x32xf32>, vector<4x32xf32> -> vector<4x64xf32>
    %cst_100 = arith.constant dense<0.000000e+00> : vector<4x192xf32>
    %433 = tpu.matmul %432, %4, %cst_100 {dimension_numbers = #tpu.dot_dimension_numbers<[1], [0], [0], [1], [0, 0, 1, 1], [], []>} : vector<4x64xf32>, vector<64x192xf32>, vector<4x192xf32> -> vector<4x192xf32>
    %434 = vector.broadcast %5 : vector<1x192xf32> to vector<4x192xf32>
    %435 = arith.addf %433, %434 : vector<4x192xf32>
    %436 = arith.index_cast %c4_i32 : i32 to index
    %c0_101 = arith.constant 0 : index
    %c0_102 = arith.constant 0 : index
    %437 = vector.load %arg2[%436, %c0_101, %c0_102] : memref<8x4x96xf32, #tpu.memory_space<vmem>>, vector<1x4x96xf32>
    %438 = vector.shape_cast %437 : vector<1x4x96xf32> to vector<4x96xf32>
    %c7_i32_103 = arith.constant 7 : i32
    %439 = arith.subi %c7_i32_103, %c4_i32 : i32
    %440 = arith.index_cast %439 : i32 to index
    %c0_104 = arith.constant 0 : index
    %c0_105 = arith.constant 0 : index
    %441 = vector.load %arg3[%440, %c0_104, %c0_105] : memref<8x4x96xf32, #tpu.memory_space<vmem>>, vector<1x4x96xf32>
    %442 = vector.shape_cast %441 : vector<1x4x96xf32> to vector<4x96xf32>
    %443 = vector.extract_strided_slice %435 {offsets = [0, 0], sizes = [4, 96], strides = [1, 1]} : vector<4x192xf32> to vector<4x96xf32>
    %444 = vector.extract_strided_slice %438 {offsets = [0, 0], sizes = [4, 32], strides = [1, 1]} : vector<4x96xf32> to vector<4x32xf32>
    %445 = vector.extract_strided_slice %443 {offsets = [0, 0], sizes = [4, 32], strides = [1, 1]} : vector<4x96xf32> to vector<4x32xf32>
    %446 = arith.addf %444, %445 : vector<4x32xf32>
    %447 = arith.negf %446 : vector<4x32xf32>
    %448 = math.exp %447 : vector<4x32xf32>
    %cst_106 = arith.constant 1.000000e+00 : f32
    %449 = vector.broadcast %cst_106 : f32 to vector<4x32xf32>
    %450 = arith.addf %449, %448 : vector<4x32xf32>
    %451 = arith.divf %449, %450 : vector<4x32xf32>
    %452 = vector.extract_strided_slice %438 {offsets = [0, 32], sizes = [4, 32], strides = [1, 1]} : vector<4x96xf32> to vector<4x32xf32>
    %453 = vector.extract_strided_slice %443 {offsets = [0, 32], sizes = [4, 32], strides = [1, 1]} : vector<4x96xf32> to vector<4x32xf32>
    %454 = arith.addf %452, %453 : vector<4x32xf32>
    %455 = arith.negf %454 : vector<4x32xf32>
    %456 = math.exp %455 : vector<4x32xf32>
    %cst_107 = arith.constant 1.000000e+00 : f32
    %457 = vector.broadcast %cst_107 : f32 to vector<4x32xf32>
    %458 = arith.addf %457, %456 : vector<4x32xf32>
    %459 = arith.divf %457, %458 : vector<4x32xf32>
    %460 = vector.extract_strided_slice %438 {offsets = [0, 64], sizes = [4, 32], strides = [1, 1]} : vector<4x96xf32> to vector<4x32xf32>
    %461 = vector.extract_strided_slice %443 {offsets = [0, 64], sizes = [4, 32], strides = [1, 1]} : vector<4x96xf32> to vector<4x32xf32>
    %462 = arith.mulf %451, %461 : vector<4x32xf32>
    %463 = arith.addf %460, %462 : vector<4x32xf32>
    %464 = math.tanh %463 : vector<4x32xf32>
    %cst_108 = arith.constant 1.000000e+00 : f32
    %465 = vector.broadcast %cst_108 : f32 to vector<4x32xf32>
    %466 = arith.subf %465, %459 : vector<4x32xf32>
    %467 = arith.mulf %466, %464 : vector<4x32xf32>
    %468 = arith.mulf %459, %424 : vector<4x32xf32>
    %469 = arith.addf %467, %468 : vector<4x32xf32>
    %470 = vector.extract_strided_slice %435 {offsets = [0, 96], sizes = [4, 96], strides = [1, 1]} : vector<4x192xf32> to vector<4x96xf32>
    %471 = vector.extract_strided_slice %442 {offsets = [0, 0], sizes = [4, 32], strides = [1, 1]} : vector<4x96xf32> to vector<4x32xf32>
    %472 = vector.extract_strided_slice %470 {offsets = [0, 0], sizes = [4, 32], strides = [1, 1]} : vector<4x96xf32> to vector<4x32xf32>
    %473 = arith.addf %471, %472 : vector<4x32xf32>
    %474 = arith.negf %473 : vector<4x32xf32>
    %475 = math.exp %474 : vector<4x32xf32>
    %cst_109 = arith.constant 1.000000e+00 : f32
    %476 = vector.broadcast %cst_109 : f32 to vector<4x32xf32>
    %477 = arith.addf %476, %475 : vector<4x32xf32>
    %478 = arith.divf %476, %477 : vector<4x32xf32>
    %479 = vector.extract_strided_slice %442 {offsets = [0, 32], sizes = [4, 32], strides = [1, 1]} : vector<4x96xf32> to vector<4x32xf32>
    %480 = vector.extract_strided_slice %470 {offsets = [0, 32], sizes = [4, 32], strides = [1, 1]} : vector<4x96xf32> to vector<4x32xf32>
    %481 = arith.addf %479, %480 : vector<4x32xf32>
    %482 = arith.negf %481 : vector<4x32xf32>
    %483 = math.exp %482 : vector<4x32xf32>
    %cst_110 = arith.constant 1.000000e+00 : f32
    %484 = vector.broadcast %cst_110 : f32 to vector<4x32xf32>
    %485 = arith.addf %484, %483 : vector<4x32xf32>
    %486 = arith.divf %484, %485 : vector<4x32xf32>
    %487 = vector.extract_strided_slice %442 {offsets = [0, 64], sizes = [4, 32], strides = [1, 1]} : vector<4x96xf32> to vector<4x32xf32>
    %488 = vector.extract_strided_slice %470 {offsets = [0, 64], sizes = [4, 32], strides = [1, 1]} : vector<4x96xf32> to vector<4x32xf32>
    %489 = arith.mulf %478, %488 : vector<4x32xf32>
    %490 = arith.addf %487, %489 : vector<4x32xf32>
    %491 = math.tanh %490 : vector<4x32xf32>
    %cst_111 = arith.constant 1.000000e+00 : f32
    %492 = vector.broadcast %cst_111 : f32 to vector<4x32xf32>
    %493 = arith.subf %492, %486 : vector<4x32xf32>
    %494 = arith.mulf %493, %491 : vector<4x32xf32>
    %495 = arith.mulf %486, %431 : vector<4x32xf32>
    %496 = arith.addf %494, %495 : vector<4x32xf32>
    %c8_i32_112 = arith.constant 8 : i32
    %497 = arith.muli %arg0, %c8_i32_112 : i32
    %498 = arith.addi %497, %c4_i32 : i32
    %c0_i32_113 = arith.constant 0 : i32
    %499 = arith.subi %c0_i32_113, %arg0 : i32
    %c8_i32_114 = arith.constant 8 : i32
    %500 = arith.muli %499, %c8_i32_114 : i32
    %c7_i32_115 = arith.constant 7 : i32
    %501 = arith.subi %c7_i32_115, %c4_i32 : i32
    %502 = arith.addi %500, %501 : i32
    %503 = vector.broadcast %498 : i32 to vector<4x1xi32>
    %504 = arith.cmpi slt, %503, %3 : vector<4x1xi32>
    %505 = arith.extui %504 : vector<4x1xi1> to vector<4x1xi32>
    %506 = arith.sitofp %505 : vector<4x1xi32> to vector<4x1xf32>
    %507 = vector.broadcast %502 : i32 to vector<4x1xi32>
    %508 = arith.cmpi slt, %507, %3 : vector<4x1xi32>
    %509 = arith.extui %508 : vector<4x1xi1> to vector<4x1xi32>
    %510 = arith.sitofp %509 : vector<4x1xi32> to vector<4x1xf32>
    %511 = vector.broadcast %506 : vector<4x1xf32> to vector<4x32xf32>
    %512 = arith.mulf %511, %469 : vector<4x32xf32>
    %513 = arith.index_cast %c4_i32 : i32 to index
    %c0_116 = arith.constant 0 : index
    %c0_117 = arith.constant 0 : index
    %514 = vector.load %arg6[%513, %c0_116, %c0_117] : memref<8x4x32xf32, #tpu.memory_space<vmem>>, vector<1x4x32xf32>
    %515 = vector.shape_cast %514 : vector<1x4x32xf32> to vector<4x32xf32>
    %516 = vector.shape_cast %512 : vector<4x32xf32> to vector<1x4x32xf32>
    tpu.vector_store %arg6[%513, %c0_116, %c0_117], %516 {strides = array<i32>} : memref<8x4x32xf32, #tpu.memory_space<vmem>>, vector<1x4x32xf32>,
    %517 = vector.broadcast %510 : vector<4x1xf32> to vector<4x32xf32>
    %518 = arith.mulf %517, %496 : vector<4x32xf32>
    %c7_i32_118 = arith.constant 7 : i32
    %519 = arith.subi %c7_i32_118, %c4_i32 : i32
    %520 = arith.index_cast %519 : i32 to index
    %c0_119 = arith.constant 0 : index
    %c0_120 = arith.constant 0 : index
    %521 = vector.load %arg7[%520, %c0_119, %c0_120] : memref<8x4x32xf32, #tpu.memory_space<vmem>>, vector<1x4x32xf32>
    %522 = vector.shape_cast %521 : vector<1x4x32xf32> to vector<4x32xf32>
    %523 = vector.shape_cast %518 : vector<4x32xf32> to vector<1x4x32xf32>
    tpu.vector_store %arg7[%520, %c0_119, %c0_120], %523 {strides = array<i32>} : memref<8x4x32xf32, #tpu.memory_space<vmem>>, vector<1x4x32xf32>,
    %524 = vector.broadcast %506 : vector<4x1xf32> to vector<4x32xf32>
    %525 = arith.mulf %524, %469 : vector<4x32xf32>
    %cst_121 = arith.constant 1.000000e+00 : f32
    %526 = vector.broadcast %cst_121 : f32 to vector<4x1xf32>
    %527 = arith.subf %526, %506 : vector<4x1xf32>
    %528 = vector.broadcast %527 : vector<4x1xf32> to vector<4x32xf32>
    %529 = arith.mulf %528, %424 : vector<4x32xf32>
    %530 = arith.addf %525, %529 : vector<4x32xf32>
    %531 = vector.broadcast %510 : vector<4x1xf32> to vector<4x32xf32>
    %532 = arith.mulf %531, %496 : vector<4x32xf32>
    %cst_122 = arith.constant 1.000000e+00 : f32
    %533 = vector.broadcast %cst_122 : f32 to vector<4x1xf32>
    %534 = arith.subf %533, %510 : vector<4x1xf32>
    %535 = vector.broadcast %534 : vector<4x1xf32> to vector<4x32xf32>
    %536 = arith.mulf %535, %431 : vector<4x32xf32>
    %537 = arith.addf %532, %536 : vector<4x32xf32>
    %c5_i32 = arith.constant 5 : i32
    %538 = tpu.concatenate %530, %537 in 1 : vector<4x32xf32>, vector<4x32xf32> -> vector<4x64xf32>
    %cst_123 = arith.constant dense<0.000000e+00> : vector<4x192xf32>
    %539 = tpu.matmul %538, %4, %cst_123 {dimension_numbers = #tpu.dot_dimension_numbers<[1], [0], [0], [1], [0, 0, 1, 1], [], []>} : vector<4x64xf32>, vector<64x192xf32>, vector<4x192xf32> -> vector<4x192xf32>
    %540 = vector.broadcast %5 : vector<1x192xf32> to vector<4x192xf32>
    %541 = arith.addf %539, %540 : vector<4x192xf32>
    %542 = arith.index_cast %c5_i32 : i32 to index
    %c0_124 = arith.constant 0 : index
    %c0_125 = arith.constant 0 : index
    %543 = vector.load %arg2[%542, %c0_124, %c0_125] : memref<8x4x96xf32, #tpu.memory_space<vmem>>, vector<1x4x96xf32>
    %544 = vector.shape_cast %543 : vector<1x4x96xf32> to vector<4x96xf32>
    %c7_i32_126 = arith.constant 7 : i32
    %545 = arith.subi %c7_i32_126, %c5_i32 : i32
    %546 = arith.index_cast %545 : i32 to index
    %c0_127 = arith.constant 0 : index
    %c0_128 = arith.constant 0 : index
    %547 = vector.load %arg3[%546, %c0_127, %c0_128] : memref<8x4x96xf32, #tpu.memory_space<vmem>>, vector<1x4x96xf32>
    %548 = vector.shape_cast %547 : vector<1x4x96xf32> to vector<4x96xf32>
    %549 = vector.extract_strided_slice %541 {offsets = [0, 0], sizes = [4, 96], strides = [1, 1]} : vector<4x192xf32> to vector<4x96xf32>
    %550 = vector.extract_strided_slice %544 {offsets = [0, 0], sizes = [4, 32], strides = [1, 1]} : vector<4x96xf32> to vector<4x32xf32>
    %551 = vector.extract_strided_slice %549 {offsets = [0, 0], sizes = [4, 32], strides = [1, 1]} : vector<4x96xf32> to vector<4x32xf32>
    %552 = arith.addf %550, %551 : vector<4x32xf32>
    %553 = arith.negf %552 : vector<4x32xf32>
    %554 = math.exp %553 : vector<4x32xf32>
    %cst_129 = arith.constant 1.000000e+00 : f32
    %555 = vector.broadcast %cst_129 : f32 to vector<4x32xf32>
    %556 = arith.addf %555, %554 : vector<4x32xf32>
    %557 = arith.divf %555, %556 : vector<4x32xf32>
    %558 = vector.extract_strided_slice %544 {offsets = [0, 32], sizes = [4, 32], strides = [1, 1]} : vector<4x96xf32> to vector<4x32xf32>
    %559 = vector.extract_strided_slice %549 {offsets = [0, 32], sizes = [4, 32], strides = [1, 1]} : vector<4x96xf32> to vector<4x32xf32>
    %560 = arith.addf %558, %559 : vector<4x32xf32>
    %561 = arith.negf %560 : vector<4x32xf32>
    %562 = math.exp %561 : vector<4x32xf32>
    %cst_130 = arith.constant 1.000000e+00 : f32
    %563 = vector.broadcast %cst_130 : f32 to vector<4x32xf32>
    %564 = arith.addf %563, %562 : vector<4x32xf32>
    %565 = arith.divf %563, %564 : vector<4x32xf32>
    %566 = vector.extract_strided_slice %544 {offsets = [0, 64], sizes = [4, 32], strides = [1, 1]} : vector<4x96xf32> to vector<4x32xf32>
    %567 = vector.extract_strided_slice %549 {offsets = [0, 64], sizes = [4, 32], strides = [1, 1]} : vector<4x96xf32> to vector<4x32xf32>
    %568 = arith.mulf %557, %567 : vector<4x32xf32>
    %569 = arith.addf %566, %568 : vector<4x32xf32>
    %570 = math.tanh %569 : vector<4x32xf32>
    %cst_131 = arith.constant 1.000000e+00 : f32
    %571 = vector.broadcast %cst_131 : f32 to vector<4x32xf32>
    %572 = arith.subf %571, %565 : vector<4x32xf32>
    %573 = arith.mulf %572, %570 : vector<4x32xf32>
    %574 = arith.mulf %565, %530 : vector<4x32xf32>
    %575 = arith.addf %573, %574 : vector<4x32xf32>
    %576 = vector.extract_strided_slice %541 {offsets = [0, 96], sizes = [4, 96], strides = [1, 1]} : vector<4x192xf32> to vector<4x96xf32>
    %577 = vector.extract_strided_slice %548 {offsets = [0, 0], sizes = [4, 32], strides = [1, 1]} : vector<4x96xf32> to vector<4x32xf32>
    %578 = vector.extract_strided_slice %576 {offsets = [0, 0], sizes = [4, 32], strides = [1, 1]} : vector<4x96xf32> to vector<4x32xf32>
    %579 = arith.addf %577, %578 : vector<4x32xf32>
    %580 = arith.negf %579 : vector<4x32xf32>
    %581 = math.exp %580 : vector<4x32xf32>
    %cst_132 = arith.constant 1.000000e+00 : f32
    %582 = vector.broadcast %cst_132 : f32 to vector<4x32xf32>
    %583 = arith.addf %582, %581 : vector<4x32xf32>
    %584 = arith.divf %582, %583 : vector<4x32xf32>
    %585 = vector.extract_strided_slice %548 {offsets = [0, 32], sizes = [4, 32], strides = [1, 1]} : vector<4x96xf32> to vector<4x32xf32>
    %586 = vector.extract_strided_slice %576 {offsets = [0, 32], sizes = [4, 32], strides = [1, 1]} : vector<4x96xf32> to vector<4x32xf32>
    %587 = arith.addf %585, %586 : vector<4x32xf32>
    %588 = arith.negf %587 : vector<4x32xf32>
    %589 = math.exp %588 : vector<4x32xf32>
    %cst_133 = arith.constant 1.000000e+00 : f32
    %590 = vector.broadcast %cst_133 : f32 to vector<4x32xf32>
    %591 = arith.addf %590, %589 : vector<4x32xf32>
    %592 = arith.divf %590, %591 : vector<4x32xf32>
    %593 = vector.extract_strided_slice %548 {offsets = [0, 64], sizes = [4, 32], strides = [1, 1]} : vector<4x96xf32> to vector<4x32xf32>
    %594 = vector.extract_strided_slice %576 {offsets = [0, 64], sizes = [4, 32], strides = [1, 1]} : vector<4x96xf32> to vector<4x32xf32>
    %595 = arith.mulf %584, %594 : vector<4x32xf32>
    %596 = arith.addf %593, %595 : vector<4x32xf32>
    %597 = math.tanh %596 : vector<4x32xf32>
    %cst_134 = arith.constant 1.000000e+00 : f32
    %598 = vector.broadcast %cst_134 : f32 to vector<4x32xf32>
    %599 = arith.subf %598, %592 : vector<4x32xf32>
    %600 = arith.mulf %599, %597 : vector<4x32xf32>
    %601 = arith.mulf %592, %537 : vector<4x32xf32>
    %602 = arith.addf %600, %601 : vector<4x32xf32>
    %c8_i32_135 = arith.constant 8 : i32
    %603 = arith.muli %arg0, %c8_i32_135 : i32
    %604 = arith.addi %603, %c5_i32 : i32
    %c0_i32_136 = arith.constant 0 : i32
    %605 = arith.subi %c0_i32_136, %arg0 : i32
    %c8_i32_137 = arith.constant 8 : i32
    %606 = arith.muli %605, %c8_i32_137 : i32
    %c7_i32_138 = arith.constant 7 : i32
    %607 = arith.subi %c7_i32_138, %c5_i32 : i32
    %608 = arith.addi %606, %607 : i32
    %609 = vector.broadcast %604 : i32 to vector<4x1xi32>
    %610 = arith.cmpi slt, %609, %3 : vector<4x1xi32>
    %611 = arith.extui %610 : vector<4x1xi1> to vector<4x1xi32>
    %612 = arith.sitofp %611 : vector<4x1xi32> to vector<4x1xf32>
    %613 = vector.broadcast %608 : i32 to vector<4x1xi32>
    %614 = arith.cmpi slt, %613, %3 : vector<4x1xi32>
    %615 = arith.extui %614 : vector<4x1xi1> to vector<4x1xi32>
    %616 = arith.sitofp %615 : vector<4x1xi32> to vector<4x1xf32>
    %617 = vector.broadcast %612 : vector<4x1xf32> to vector<4x32xf32>
    %618 = arith.mulf %617, %575 : vector<4x32xf32>
    %619 = arith.index_cast %c5_i32 : i32 to index
    %c0_139 = arith.constant 0 : index
    %c0_140 = arith.constant 0 : index
    %620 = vector.load %arg6[%619, %c0_139, %c0_140] : memref<8x4x32xf32, #tpu.memory_space<vmem>>, vector<1x4x32xf32>
    %621 = vector.shape_cast %620 : vector<1x4x32xf32> to vector<4x32xf32>
    %622 = vector.shape_cast %618 : vector<4x32xf32> to vector<1x4x32xf32>
    tpu.vector_store %arg6[%619, %c0_139, %c0_140], %622 {strides = array<i32>} : memref<8x4x32xf32, #tpu.memory_space<vmem>>, vector<1x4x32xf32>,
    %623 = vector.broadcast %616 : vector<4x1xf32> to vector<4x32xf32>
    %624 = arith.mulf %623, %602 : vector<4x32xf32>
    %c7_i32_141 = arith.constant 7 : i32
    %625 = arith.subi %c7_i32_141, %c5_i32 : i32
    %626 = arith.index_cast %625 : i32 to index
    %c0_142 = arith.constant 0 : index
    %c0_143 = arith.constant 0 : index
    %627 = vector.load %arg7[%626, %c0_142, %c0_143] : memref<8x4x32xf32, #tpu.memory_space<vmem>>, vector<1x4x32xf32>
    %628 = vector.shape_cast %627 : vector<1x4x32xf32> to vector<4x32xf32>
    %629 = vector.shape_cast %624 : vector<4x32xf32> to vector<1x4x32xf32>
    tpu.vector_store %arg7[%626, %c0_142, %c0_143], %629 {strides = array<i32>} : memref<8x4x32xf32, #tpu.memory_space<vmem>>, vector<1x4x32xf32>,
    %630 = vector.broadcast %612 : vector<4x1xf32> to vector<4x32xf32>
    %631 = arith.mulf %630, %575 : vector<4x32xf32>
    %cst_144 = arith.constant 1.000000e+00 : f32
    %632 = vector.broadcast %cst_144 : f32 to vector<4x1xf32>
    %633 = arith.subf %632, %612 : vector<4x1xf32>
    %634 = vector.broadcast %633 : vector<4x1xf32> to vector<4x32xf32>
    %635 = arith.mulf %634, %530 : vector<4x32xf32>
    %636 = arith.addf %631, %635 : vector<4x32xf32>
    %637 = vector.broadcast %616 : vector<4x1xf32> to vector<4x32xf32>
    %638 = arith.mulf %637, %602 : vector<4x32xf32>
    %cst_145 = arith.constant 1.000000e+00 : f32
    %639 = vector.broadcast %cst_145 : f32 to vector<4x1xf32>
    %640 = arith.subf %639, %616 : vector<4x1xf32>
    %641 = vector.broadcast %640 : vector<4x1xf32> to vector<4x32xf32>
    %642 = arith.mulf %641, %537 : vector<4x32xf32>
    %643 = arith.addf %638, %642 : vector<4x32xf32>
    %c6_i32 = arith.constant 6 : i32
    %644 = tpu.concatenate %636, %643 in 1 : vector<4x32xf32>, vector<4x32xf32> -> vector<4x64xf32>
    %cst_146 = arith.constant dense<0.000000e+00> : vector<4x192xf32>
    %645 = tpu.matmul %644, %4, %cst_146 {dimension_numbers = #tpu.dot_dimension_numbers<[1], [0], [0], [1], [0, 0, 1, 1], [], []>} : vector<4x64xf32>, vector<64x192xf32>, vector<4x192xf32> -> vector<4x192xf32>
    %646 = vector.broadcast %5 : vector<1x192xf32> to vector<4x192xf32>
    %647 = arith.addf %645, %646 : vector<4x192xf32>
    %648 = arith.index_cast %c6_i32 : i32 to index
    %c0_147 = arith.constant 0 : index
    %c0_148 = arith.constant 0 : index
    %649 = vector.load %arg2[%648, %c0_147, %c0_148] : memref<8x4x96xf32, #tpu.memory_space<vmem>>, vector<1x4x96xf32>
    %650 = vector.shape_cast %649 : vector<1x4x96xf32> to vector<4x96xf32>
    %c7_i32_149 = arith.constant 7 : i32
    %651 = arith.subi %c7_i32_149, %c6_i32 : i32
    %652 = arith.index_cast %651 : i32 to index
    %c0_150 = arith.constant 0 : index
    %c0_151 = arith.constant 0 : index
    %653 = vector.load %arg3[%652, %c0_150, %c0_151] : memref<8x4x96xf32, #tpu.memory_space<vmem>>, vector<1x4x96xf32>
    %654 = vector.shape_cast %653 : vector<1x4x96xf32> to vector<4x96xf32>
    %655 = vector.extract_strided_slice %647 {offsets = [0, 0], sizes = [4, 96], strides = [1, 1]} : vector<4x192xf32> to vector<4x96xf32>
    %656 = vector.extract_strided_slice %650 {offsets = [0, 0], sizes = [4, 32], strides = [1, 1]} : vector<4x96xf32> to vector<4x32xf32>
    %657 = vector.extract_strided_slice %655 {offsets = [0, 0], sizes = [4, 32], strides = [1, 1]} : vector<4x96xf32> to vector<4x32xf32>
    %658 = arith.addf %656, %657 : vector<4x32xf32>
    %659 = arith.negf %658 : vector<4x32xf32>
    %660 = math.exp %659 : vector<4x32xf32>
    %cst_152 = arith.constant 1.000000e+00 : f32
    %661 = vector.broadcast %cst_152 : f32 to vector<4x32xf32>
    %662 = arith.addf %661, %660 : vector<4x32xf32>
    %663 = arith.divf %661, %662 : vector<4x32xf32>
    %664 = vector.extract_strided_slice %650 {offsets = [0, 32], sizes = [4, 32], strides = [1, 1]} : vector<4x96xf32> to vector<4x32xf32>
    %665 = vector.extract_strided_slice %655 {offsets = [0, 32], sizes = [4, 32], strides = [1, 1]} : vector<4x96xf32> to vector<4x32xf32>
    %666 = arith.addf %664, %665 : vector<4x32xf32>
    %667 = arith.negf %666 : vector<4x32xf32>
    %668 = math.exp %667 : vector<4x32xf32>
    %cst_153 = arith.constant 1.000000e+00 : f32
    %669 = vector.broadcast %cst_153 : f32 to vector<4x32xf32>
    %670 = arith.addf %669, %668 : vector<4x32xf32>
    %671 = arith.divf %669, %670 : vector<4x32xf32>
    %672 = vector.extract_strided_slice %650 {offsets = [0, 64], sizes = [4, 32], strides = [1, 1]} : vector<4x96xf32> to vector<4x32xf32>
    %673 = vector.extract_strided_slice %655 {offsets = [0, 64], sizes = [4, 32], strides = [1, 1]} : vector<4x96xf32> to vector<4x32xf32>
    %674 = arith.mulf %663, %673 : vector<4x32xf32>
    %675 = arith.addf %672, %674 : vector<4x32xf32>
    %676 = math.tanh %675 : vector<4x32xf32>
    %cst_154 = arith.constant 1.000000e+00 : f32
    %677 = vector.broadcast %cst_154 : f32 to vector<4x32xf32>
    %678 = arith.subf %677, %671 : vector<4x32xf32>
    %679 = arith.mulf %678, %676 : vector<4x32xf32>
    %680 = arith.mulf %671, %636 : vector<4x32xf32>
    %681 = arith.addf %679, %680 : vector<4x32xf32>
    %682 = vector.extract_strided_slice %647 {offsets = [0, 96], sizes = [4, 96], strides = [1, 1]} : vector<4x192xf32> to vector<4x96xf32>
    %683 = vector.extract_strided_slice %654 {offsets = [0, 0], sizes = [4, 32], strides = [1, 1]} : vector<4x96xf32> to vector<4x32xf32>
    %684 = vector.extract_strided_slice %682 {offsets = [0, 0], sizes = [4, 32], strides = [1, 1]} : vector<4x96xf32> to vector<4x32xf32>
    %685 = arith.addf %683, %684 : vector<4x32xf32>
    %686 = arith.negf %685 : vector<4x32xf32>
    %687 = math.exp %686 : vector<4x32xf32>
    %cst_155 = arith.constant 1.000000e+00 : f32
    %688 = vector.broadcast %cst_155 : f32 to vector<4x32xf32>
    %689 = arith.addf %688, %687 : vector<4x32xf32>
    %690 = arith.divf %688, %689 : vector<4x32xf32>
    %691 = vector.extract_strided_slice %654 {offsets = [0, 32], sizes = [4, 32], strides = [1, 1]} : vector<4x96xf32> to vector<4x32xf32>
    %692 = vector.extract_strided_slice %682 {offsets = [0, 32], sizes = [4, 32], strides = [1, 1]} : vector<4x96xf32> to vector<4x32xf32>
    %693 = arith.addf %691, %692 : vector<4x32xf32>
    %694 = arith.negf %693 : vector<4x32xf32>
    %695 = math.exp %694 : vector<4x32xf32>
    %cst_156 = arith.constant 1.000000e+00 : f32
    %696 = vector.broadcast %cst_156 : f32 to vector<4x32xf32>
    %697 = arith.addf %696, %695 : vector<4x32xf32>
    %698 = arith.divf %696, %697 : vector<4x32xf32>
    %699 = vector.extract_strided_slice %654 {offsets = [0, 64], sizes = [4, 32], strides = [1, 1]} : vector<4x96xf32> to vector<4x32xf32>
    %700 = vector.extract_strided_slice %682 {offsets = [0, 64], sizes = [4, 32], strides = [1, 1]} : vector<4x96xf32> to vector<4x32xf32>
    %701 = arith.mulf %690, %700 : vector<4x32xf32>
    %702 = arith.addf %699, %701 : vector<4x32xf32>
    %703 = math.tanh %702 : vector<4x32xf32>
    %cst_157 = arith.constant 1.000000e+00 : f32
    %704 = vector.broadcast %cst_157 : f32 to vector<4x32xf32>
    %705 = arith.subf %704, %698 : vector<4x32xf32>
    %706 = arith.mulf %705, %703 : vector<4x32xf32>
    %707 = arith.mulf %698, %643 : vector<4x32xf32>
    %708 = arith.addf %706, %707 : vector<4x32xf32>
    %c8_i32_158 = arith.constant 8 : i32
    %709 = arith.muli %arg0, %c8_i32_158 : i32
    %710 = arith.addi %709, %c6_i32 : i32
    %c0_i32_159 = arith.constant 0 : i32
    %711 = arith.subi %c0_i32_159, %arg0 : i32
    %c8_i32_160 = arith.constant 8 : i32
    %712 = arith.muli %711, %c8_i32_160 : i32
    %c7_i32_161 = arith.constant 7 : i32
    %713 = arith.subi %c7_i32_161, %c6_i32 : i32
    %714 = arith.addi %712, %713 : i32
    %715 = vector.broadcast %710 : i32 to vector<4x1xi32>
    %716 = arith.cmpi slt, %715, %3 : vector<4x1xi32>
    %717 = arith.extui %716 : vector<4x1xi1> to vector<4x1xi32>
    %718 = arith.sitofp %717 : vector<4x1xi32> to vector<4x1xf32>
    %719 = vector.broadcast %714 : i32 to vector<4x1xi32>
    %720 = arith.cmpi slt, %719, %3 : vector<4x1xi32>
    %721 = arith.extui %720 : vector<4x1xi1> to vector<4x1xi32>
    %722 = arith.sitofp %721 : vector<4x1xi32> to vector<4x1xf32>
    %723 = vector.broadcast %718 : vector<4x1xf32> to vector<4x32xf32>
    %724 = arith.mulf %723, %681 : vector<4x32xf32>
    %725 = arith.index_cast %c6_i32 : i32 to index
    %c0_162 = arith.constant 0 : index
    %c0_163 = arith.constant 0 : index
    %726 = vector.load %arg6[%725, %c0_162, %c0_163] : memref<8x4x32xf32, #tpu.memory_space<vmem>>, vector<1x4x32xf32>
    %727 = vector.shape_cast %726 : vector<1x4x32xf32> to vector<4x32xf32>
    %728 = vector.shape_cast %724 : vector<4x32xf32> to vector<1x4x32xf32>
    tpu.vector_store %arg6[%725, %c0_162, %c0_163], %728 {strides = array<i32>} : memref<8x4x32xf32, #tpu.memory_space<vmem>>, vector<1x4x32xf32>,
    %729 = vector.broadcast %722 : vector<4x1xf32> to vector<4x32xf32>
    %730 = arith.mulf %729, %708 : vector<4x32xf32>
    %c7_i32_164 = arith.constant 7 : i32
    %731 = arith.subi %c7_i32_164, %c6_i32 : i32
    %732 = arith.index_cast %731 : i32 to index
    %c0_165 = arith.constant 0 : index
    %c0_166 = arith.constant 0 : index
    %733 = vector.load %arg7[%732, %c0_165, %c0_166] : memref<8x4x32xf32, #tpu.memory_space<vmem>>, vector<1x4x32xf32>
    %734 = vector.shape_cast %733 : vector<1x4x32xf32> to vector<4x32xf32>
    %735 = vector.shape_cast %730 : vector<4x32xf32> to vector<1x4x32xf32>
    tpu.vector_store %arg7[%732, %c0_165, %c0_166], %735 {strides = array<i32>} : memref<8x4x32xf32, #tpu.memory_space<vmem>>, vector<1x4x32xf32>,
    %736 = vector.broadcast %718 : vector<4x1xf32> to vector<4x32xf32>
    %737 = arith.mulf %736, %681 : vector<4x32xf32>
    %cst_167 = arith.constant 1.000000e+00 : f32
    %738 = vector.broadcast %cst_167 : f32 to vector<4x1xf32>
    %739 = arith.subf %738, %718 : vector<4x1xf32>
    %740 = vector.broadcast %739 : vector<4x1xf32> to vector<4x32xf32>
    %741 = arith.mulf %740, %636 : vector<4x32xf32>
    %742 = arith.addf %737, %741 : vector<4x32xf32>
    %743 = vector.broadcast %722 : vector<4x1xf32> to vector<4x32xf32>
    %744 = arith.mulf %743, %708 : vector<4x32xf32>
    %cst_168 = arith.constant 1.000000e+00 : f32
    %745 = vector.broadcast %cst_168 : f32 to vector<4x1xf32>
    %746 = arith.subf %745, %722 : vector<4x1xf32>
    %747 = vector.broadcast %746 : vector<4x1xf32> to vector<4x32xf32>
    %748 = arith.mulf %747, %643 : vector<4x32xf32>
    %749 = arith.addf %744, %748 : vector<4x32xf32>
    %c7_i32_169 = arith.constant 7 : i32
    %750 = tpu.concatenate %742, %749 in 1 : vector<4x32xf32>, vector<4x32xf32> -> vector<4x64xf32>
    %cst_170 = arith.constant dense<0.000000e+00> : vector<4x192xf32>
    %751 = tpu.matmul %750, %4, %cst_170 {dimension_numbers = #tpu.dot_dimension_numbers<[1], [0], [0], [1], [0, 0, 1, 1], [], []>} : vector<4x64xf32>, vector<64x192xf32>, vector<4x192xf32> -> vector<4x192xf32>
    %752 = vector.broadcast %5 : vector<1x192xf32> to vector<4x192xf32>
    %753 = arith.addf %751, %752 : vector<4x192xf32>
    %754 = arith.index_cast %c7_i32_169 : i32 to index
    %c0_171 = arith.constant 0 : index
    %c0_172 = arith.constant 0 : index
    %755 = vector.load %arg2[%754, %c0_171, %c0_172] : memref<8x4x96xf32, #tpu.memory_space<vmem>>, vector<1x4x96xf32>
    %756 = vector.shape_cast %755 : vector<1x4x96xf32> to vector<4x96xf32>
    %c7_i32_173 = arith.constant 7 : i32
    %757 = arith.subi %c7_i32_173, %c7_i32_169 : i32
    %758 = arith.index_cast %757 : i32 to index
    %c0_174 = arith.constant 0 : index
    %c0_175 = arith.constant 0 : index
    %759 = vector.load %arg3[%758, %c0_174, %c0_175] : memref<8x4x96xf32, #tpu.memory_space<vmem>>, vector<1x4x96xf32>
    %760 = vector.shape_cast %759 : vector<1x4x96xf32> to vector<4x96xf32>
    %761 = vector.extract_strided_slice %753 {offsets = [0, 0], sizes = [4, 96], strides = [1, 1]} : vector<4x192xf32> to vector<4x96xf32>
    %762 = vector.extract_strided_slice %756 {offsets = [0, 0], sizes = [4, 32], strides = [1, 1]} : vector<4x96xf32> to vector<4x32xf32>
    %763 = vector.extract_strided_slice %761 {offsets = [0, 0], sizes = [4, 32], strides = [1, 1]} : vector<4x96xf32> to vector<4x32xf32>
    %764 = arith.addf %762, %763 : vector<4x32xf32>
    %765 = arith.negf %764 : vector<4x32xf32>
    %766 = math.exp %765 : vector<4x32xf32>
    %cst_176 = arith.constant 1.000000e+00 : f32
    %767 = vector.broadcast %cst_176 : f32 to vector<4x32xf32>
    %768 = arith.addf %767, %766 : vector<4x32xf32>
    %769 = arith.divf %767, %768 : vector<4x32xf32>
    %770 = vector.extract_strided_slice %756 {offsets = [0, 32], sizes = [4, 32], strides = [1, 1]} : vector<4x96xf32> to vector<4x32xf32>
    %771 = vector.extract_strided_slice %761 {offsets = [0, 32], sizes = [4, 32], strides = [1, 1]} : vector<4x96xf32> to vector<4x32xf32>
    %772 = arith.addf %770, %771 : vector<4x32xf32>
    %773 = arith.negf %772 : vector<4x32xf32>
    %774 = math.exp %773 : vector<4x32xf32>
    %cst_177 = arith.constant 1.000000e+00 : f32
    %775 = vector.broadcast %cst_177 : f32 to vector<4x32xf32>
    %776 = arith.addf %775, %774 : vector<4x32xf32>
    %777 = arith.divf %775, %776 : vector<4x32xf32>
    %778 = vector.extract_strided_slice %756 {offsets = [0, 64], sizes = [4, 32], strides = [1, 1]} : vector<4x96xf32> to vector<4x32xf32>
    %779 = vector.extract_strided_slice %761 {offsets = [0, 64], sizes = [4, 32], strides = [1, 1]} : vector<4x96xf32> to vector<4x32xf32>
    %780 = arith.mulf %769, %779 : vector<4x32xf32>
    %781 = arith.addf %778, %780 : vector<4x32xf32>
    %782 = math.tanh %781 : vector<4x32xf32>
    %cst_178 = arith.constant 1.000000e+00 : f32
    %783 = vector.broadcast %cst_178 : f32 to vector<4x32xf32>
    %784 = arith.subf %783, %777 : vector<4x32xf32>
    %785 = arith.mulf %784, %782 : vector<4x32xf32>
    %786 = arith.mulf %777, %742 : vector<4x32xf32>
    %787 = arith.addf %785, %786 : vector<4x32xf32>
    %788 = vector.extract_strided_slice %753 {offsets = [0, 96], sizes = [4, 96], strides = [1, 1]} : vector<4x192xf32> to vector<4x96xf32>
    %789 = vector.extract_strided_slice %760 {offsets = [0, 0], sizes = [4, 32], strides = [1, 1]} : vector<4x96xf32> to vector<4x32xf32>
    %790 = vector.extract_strided_slice %788 {offsets = [0, 0], sizes = [4, 32], strides = [1, 1]} : vector<4x96xf32> to vector<4x32xf32>
    %791 = arith.addf %789, %790 : vector<4x32xf32>
    %792 = arith.negf %791 : vector<4x32xf32>
    %793 = math.exp %792 : vector<4x32xf32>
    %cst_179 = arith.constant 1.000000e+00 : f32
    %794 = vector.broadcast %cst_179 : f32 to vector<4x32xf32>
    %795 = arith.addf %794, %793 : vector<4x32xf32>
    %796 = arith.divf %794, %795 : vector<4x32xf32>
    %797 = vector.extract_strided_slice %760 {offsets = [0, 32], sizes = [4, 32], strides = [1, 1]} : vector<4x96xf32> to vector<4x32xf32>
    %798 = vector.extract_strided_slice %788 {offsets = [0, 32], sizes = [4, 32], strides = [1, 1]} : vector<4x96xf32> to vector<4x32xf32>
    %799 = arith.addf %797, %798 : vector<4x32xf32>
    %800 = arith.negf %799 : vector<4x32xf32>
    %801 = math.exp %800 : vector<4x32xf32>
    %cst_180 = arith.constant 1.000000e+00 : f32
    %802 = vector.broadcast %cst_180 : f32 to vector<4x32xf32>
    %803 = arith.addf %802, %801 : vector<4x32xf32>
    %804 = arith.divf %802, %803 : vector<4x32xf32>
    %805 = vector.extract_strided_slice %760 {offsets = [0, 64], sizes = [4, 32], strides = [1, 1]} : vector<4x96xf32> to vector<4x32xf32>
    %806 = vector.extract_strided_slice %788 {offsets = [0, 64], sizes = [4, 32], strides = [1, 1]} : vector<4x96xf32> to vector<4x32xf32>
    %807 = arith.mulf %796, %806 : vector<4x32xf32>
    %808 = arith.addf %805, %807 : vector<4x32xf32>
    %809 = math.tanh %808 : vector<4x32xf32>
    %cst_181 = arith.constant 1.000000e+00 : f32
    %810 = vector.broadcast %cst_181 : f32 to vector<4x32xf32>
    %811 = arith.subf %810, %804 : vector<4x32xf32>
    %812 = arith.mulf %811, %809 : vector<4x32xf32>
    %813 = arith.mulf %804, %749 : vector<4x32xf32>
    %814 = arith.addf %812, %813 : vector<4x32xf32>
    %c8_i32_182 = arith.constant 8 : i32
    %815 = arith.muli %arg0, %c8_i32_182 : i32
    %816 = arith.addi %815, %c7_i32_169 : i32
    %c0_i32_183 = arith.constant 0 : i32
    %817 = arith.subi %c0_i32_183, %arg0 : i32
    %c8_i32_184 = arith.constant 8 : i32
    %818 = arith.muli %817, %c8_i32_184 : i32
    %c7_i32_185 = arith.constant 7 : i32
    %819 = arith.subi %c7_i32_185, %c7_i32_169 : i32
    %820 = arith.addi %818, %819 : i32
    %821 = vector.broadcast %816 : i32 to vector<4x1xi32>
    %822 = arith.cmpi slt, %821, %3 : vector<4x1xi32>
    %823 = arith.extui %822 : vector<4x1xi1> to vector<4x1xi32>
    %824 = arith.sitofp %823 : vector<4x1xi32> to vector<4x1xf32>
    %825 = vector.broadcast %820 : i32 to vector<4x1xi32>
    %826 = arith.cmpi slt, %825, %3 : vector<4x1xi32>
    %827 = arith.extui %826 : vector<4x1xi1> to vector<4x1xi32>
    %828 = arith.sitofp %827 : vector<4x1xi32> to vector<4x1xf32>
    %829 = vector.broadcast %824 : vector<4x1xf32> to vector<4x32xf32>
    %830 = arith.mulf %829, %787 : vector<4x32xf32>
    %831 = arith.index_cast %c7_i32_169 : i32 to index
    %c0_186 = arith.constant 0 : index
    %c0_187 = arith.constant 0 : index
    %832 = vector.load %arg6[%831, %c0_186, %c0_187] : memref<8x4x32xf32, #tpu.memory_space<vmem>>, vector<1x4x32xf32>
    %833 = vector.shape_cast %832 : vector<1x4x32xf32> to vector<4x32xf32>
    %834 = vector.shape_cast %830 : vector<4x32xf32> to vector<1x4x32xf32>
    tpu.vector_store %arg6[%831, %c0_186, %c0_187], %834 {strides = array<i32>} : memref<8x4x32xf32, #tpu.memory_space<vmem>>, vector<1x4x32xf32>,
    %835 = vector.broadcast %828 : vector<4x1xf32> to vector<4x32xf32>
    %836 = arith.mulf %835, %814 : vector<4x32xf32>
    %c7_i32_188 = arith.constant 7 : i32
    %837 = arith.subi %c7_i32_188, %c7_i32_169 : i32
    %838 = arith.index_cast %837 : i32 to index
    %c0_189 = arith.constant 0 : index
    %c0_190 = arith.constant 0 : index
    %839 = vector.load %arg7[%838, %c0_189, %c0_190] : memref<8x4x32xf32, #tpu.memory_space<vmem>>, vector<1x4x32xf32>
    %840 = vector.shape_cast %839 : vector<1x4x32xf32> to vector<4x32xf32>
    %841 = vector.shape_cast %836 : vector<4x32xf32> to vector<1x4x32xf32>
    tpu.vector_store %arg7[%838, %c0_189, %c0_190], %841 {strides = array<i32>} : memref<8x4x32xf32, #tpu.memory_space<vmem>>, vector<1x4x32xf32>,
    %842 = vector.broadcast %824 : vector<4x1xf32> to vector<4x32xf32>
    %843 = arith.mulf %842, %787 : vector<4x32xf32>
    %cst_191 = arith.constant 1.000000e+00 : f32
    %844 = vector.broadcast %cst_191 : f32 to vector<4x1xf32>
    %845 = arith.subf %844, %824 : vector<4x1xf32>
    %846 = vector.broadcast %845 : vector<4x1xf32> to vector<4x32xf32>
    %847 = arith.mulf %846, %742 : vector<4x32xf32>
    %848 = arith.addf %843, %847 : vector<4x32xf32>
    %849 = vector.broadcast %828 : vector<4x1xf32> to vector<4x32xf32>
    %850 = arith.mulf %849, %814 : vector<4x32xf32>
    %cst_192 = arith.constant 1.000000e+00 : f32
    %851 = vector.broadcast %cst_192 : f32 to vector<4x1xf32>
    %852 = arith.subf %851, %828 : vector<4x1xf32>
    %853 = vector.broadcast %852 : vector<4x1xf32> to vector<4x32xf32>
    %854 = arith.mulf %853, %749 : vector<4x32xf32>
    %855 = arith.addf %850, %854 : vector<4x32xf32>
    %c8_i32_193 = arith.constant 8 : i32
    %c0_194 = arith.constant 0 : index
    %c0_195 = arith.constant 0 : index
    %856 = vector.load %arg10[%c0_194, %c0_195] : memref<4x32xf32, #tpu.memory_space<vmem>>, vector<4x32xf32>
    tpu.vector_store %arg10[%c0_194, %c0_195], %848 {strides = array<i32>} : memref<4x32xf32, #tpu.memory_space<vmem>>, vector<4x32xf32>,
    %c0_196 = arith.constant 0 : index
    %c0_197 = arith.constant 0 : index
    %857 = vector.load %arg11[%c0_196, %c0_197] : memref<4x32xf32, #tpu.memory_space<vmem>>, vector<4x32xf32>
    tpu.vector_store %arg11[%c0_196, %c0_197], %855 {strides = array<i32>} : memref<4x32xf32, #tpu.memory_space<vmem>>, vector<4x32xf32>,
    %c0_i32_198 = arith.constant 0 : i32
    %858 = arith.cmpi eq, %arg0, %c0_i32_198 : i32
    %859 = arith.extui %858 : i1 to i32
    %c0_i32_199 = arith.constant 0 : i32
    %860 = arith.cmpi ne, %859, %c0_i32_199 : i32
    scf.if %860 {
      %c0_200 = arith.constant 0 : index
      %c0_201 = arith.constant 0 : index
      %861 = vector.load %arg8[%c0_200, %c0_201] : memref<4x32xf32, #tpu.memory_space<vmem>>, vector<4x32xf32>
      tpu.vector_store %arg8[%c0_200, %c0_201], %848 {strides = array<i32>} : memref<4x32xf32, #tpu.memory_space<vmem>>, vector<4x32xf32>,
      %c0_202 = arith.constant 0 : index
      %c0_203 = arith.constant 0 : index
      %862 = vector.load %arg9[%c0_202, %c0_203] : memref<4x32xf32, #tpu.memory_space<vmem>>, vector<4x32xf32>
      tpu.vector_store %arg9[%c0_202, %c0_203], %855 {strides = array<i32>} : memref<4x32xf32, #tpu.memory_space<vmem>>, vector<4x32xf32>,
    } else {
    }
    return
  }
  func.func @transform_0(%arg0: i32) -> (i32, i32) {
    %c0_i32 = arith.constant 0 : i32
    %c0_i32_0 = arith.constant 0 : i32
    %c0_i32_1 = arith.constant 0 : i32
    return %c0_i32, %c0_i32_0 : i32, i32
  }
  func.func @transform_1(%arg0: i32) -> (i32, i32, i32) {
    %c0_i32 = arith.constant 0 : i32
    %c0_i32_0 = arith.constant 0 : i32
    %c0_i32_1 = arith.constant 0 : i32
    return %arg0, %c0_i32, %c0_i32_0 : i32, i32, i32
  }
  func.func @transform_2(%arg0: i32) -> (i32, i32, i32) {
    %c0_i32 = arith.constant 0 : i32
    %0 = arith.subi %c0_i32, %arg0 : i32
    %c0_i32_0 = arith.constant 0 : i32
    %c0_i32_1 = arith.constant 0 : i32
    %c0_i32_2 = arith.constant 0 : i32
    return %0, %c0_i32_0, %c0_i32_1 : i32, i32, i32
  }
  func.func @transform_3(%arg0: i32) -> (i32, i32) {
    %c0_i32 = arith.constant 0 : i32
    %c0_i32_0 = arith.constant 0 : i32
    %c0_i32_1 = arith.constant 0 : i32
    return %c0_i32, %c0_i32_0 : i32, i32
  }
  func.func @transform_4(%arg0: i32) -> (i32, i32) {
    %c0_i32 = arith.constant 0 : i32
    %c0_i32_0 = arith.constant 0 : i32
    %c0_i32_1 = arith.constant 0 : i32
    return %c0_i32, %c0_i32_0 : i32, i32
  }
  func.func @transform_5(%arg0: i32) -> (i32, i32, i32) {
    %c0_i32 = arith.constant 0 : i32
    %c0_i32_0 = arith.constant 0 : i32
    %c0_i32_1 = arith.constant 0 : i32
    return %arg0, %c0_i32, %c0_i32_0 : i32, i32, i32
  }
  func.func @transform_6(%arg0: i32) -> (i32, i32, i32) {
    %c0_i32 = arith.constant 0 : i32
    %0 = arith.subi %c0_i32, %arg0 : i32
    %c0_i32_0 = arith.constant 0 : i32
    %c0_i32_1 = arith.constant 0 : i32
    %c0_i32_2 = arith.constant 0 : i32
    return %0, %c0_i32_0, %c0_i32_1 : i32, i32, i32
  }
  func.func @transform_7(%arg0: i32) -> (i32, i32) {
    %c0_i32 = arith.constant 0 : i32
    %c0_i32_0 = arith.constant 0 : i32
    %c0_i32_1 = arith.constant 0 : i32
    return %c0_i32, %c0_i32_0 : i32, i32
  }
  func.func @transform_8(%arg0: i32) -> (i32, i32) {
    %c0_i32 = arith.constant 0 : i32
    %c0_i32_0 = arith.constant 0 : i32
    %c0_i32_1 = arith.constant 0 : i32
    return %c0_i32, %c0_i32_0 : i32, i32
  }
}

</mosaic_0001>

<llo_original>
// kernel: tpu_custom_call.1
$region0: #{tpu_custom_call.1}
  #allocation0 [shape = 'u32[]', space=smem, size = 0x4, offset = 0x4, fixed_abs, tag = 'smem constant byte address 0x4 - core index']
  #allocation1 [shape = 'u32[144,128]{1,0:T(1,128)}', space=vmem, size = 0x12000, scoped, tag = 'internal scratch']
  #allocation2 [shape = 'f32[4,32]{1,0:T(4,128)}', space=vmem, size = 0x800, scoped, tag = 'scratch operand']
  #allocation3 [shape = 'f32[4,32]{1,0:T(4,128)}', space=vmem, size = 0x800, scoped, tag = 'scratch operand']
  %s0 = inlined_call_operand.vmem [shape: s32[4,1], index: 0, kind: input, shape index: {}]
  %s1 = inlined_call_operand.hbm [shape: f32[8,4,96], index: 1, kind: input, shape index: {}]
  %s2 = inlined_call_operand.hbm [shape: f32[8,4,96], index: 2, kind: input, shape index: {}]
  %s3 = inlined_call_operand.hbm [shape: f32[64,192], index: 3, kind: input, shape index: {}]
  %s4 = inlined_call_operand.vmem [shape: f32[1,192], index: 4, kind: input, shape index: {}]
  %s5 = inlined_call_operand.hbm [shape: f32[8,4,32], index: 5, kind: output, shape index: {0}]
  %s6 = inlined_call_operand.hbm [shape: f32[8,4,32], index: 6, kind: output, shape index: {1}]
  %s7 = inlined_call_operand.hbm [shape: f32[4,32], index: 7, kind: output, shape index: {2}]
  %s8 = inlined_call_operand.hbm [shape: f32[4,32], index: 8, kind: output, shape index: {3}]
  %9 = xla_tuple %s5, %s6, %s7, %s8
  %s10 = sld [smem:[#allocation0]]
  $region74: #{tpu_custom_call.1} parent=0
    _
  %s12 = ssub.s32 1, %s10
  %s13 = scalar_select 0, %s12, %s10
  $region1: #{tpu_custom_call.1} parent=0
    #allocation4 [shape = 'u8[16384]{0}', space=vmem, size = 0x4000, scoped, tag = 'input window, operand 1, single buffered']
    #allocation5 [shape = 's32[1]{0}', space=sflag, size = 0x4, scoped, tag = 'scoped memory for tpu_custom_call.1']
    #allocation6 [shape = 's32[1]{0}', space=sflag, size = 0x4, scoped, tag = 'scoped memory for tpu_custom_call.1']
    #allocation7 [shape = 'u8[16384]{0}', space=vmem, size = 0x4000, scoped, tag = 'input window, operand 2, single buffered']
    #allocation8 [shape = 's32[1]{0}', space=sflag, size = 0x4, scoped, tag = 'scoped memory for tpu_custom_call.1']
    #allocation9 [shape = 'u8[65536]{0}', space=vmem, size = 0x10000, scoped, tag = 'input window, operand 3, single buffered']
    #allocation10 [shape = 'u8[16384]{0}', space=vmem, size = 0x4000, scoped, tag = 'output window, operand 0, single buffered']
    #allocation11 [shape = 'u8[16384]{0}', space=vmem, size = 0x4000, scoped, tag = 'output window, operand 1, single buffered']
    #allocation12 [shape = 's32[1]{0}', space=sflag, size = 0x4, scoped, tag = 'scoped memory for tpu_custom_call.1']
    #allocation13 [shape = 'u8[2048]{0}', space=vmem, size = 0x800, scoped, tag = 'output window, operand 2, single buffered']
    #allocation14 [shape = 'u8[2048]{0}', space=vmem, size = 0x800, scoped, tag = 'output window, operand 3, single buffered']
    #allocation15 [shape = 's32[1]{0}', space=sflag, size = 0x4, scoped, tag = 'scoped memory for tpu_custom_call.1']
    %14 = vsyncpa [#allocation5], 0
    %15 = vsyncpa [#allocation8], 0
    %16 = vsyncpa [#allocation6], 0
    %17 = vsyncpa [#allocation12], 0
    %18 = vsyncpa [#allocation15], 0
    // Predicated region
    $region2: #{tpu_custom_call.1} parent=1 // pred_check
      _
    $region3: #{tpu_custom_call.1} parent=1 // pred_check_branch
      %20 = sbr.rel (0) target = $region5
    $region4: #{tpu_custom_call.1} parent=1 // pred_region
      _
    $region5: #{tpu_custom_call.1} parent=1 // pred_fallthru
      _
    // Predicated region
    $region6: #{tpu_custom_call.1} parent=1 // pred_check
      _
    $region7: #{tpu_custom_call.1} parent=1 // pred_check_branch
      %22 = sbr.rel (0) target = $region9
    $region8: #{tpu_custom_call.1} parent=1 // pred_region
      %s24 = ssub.s32 512, 512
      %25 = vsyncadd [#allocation5], %s24
      %s26 = sshll.u32 [#allocation4], 4
      %s27 = int_to_ptr.vmem [resolvable:$true] %s26
      %32 = dma.hbm_to_vmem [thread:$0]  %s1, 512, %s27, [#allocation5], 64, 64, 4
    $region9: #{tpu_custom_call.1} parent=1 // pred_fallthru
      _
    // Predicated region
    $region10: #{tpu_custom_call.1} parent=1 // pred_check
      _
    $region11: #{tpu_custom_call.1} parent=1 // pred_check_branch
      %34 = sbr.rel (0) target = $region13
    $region12: #{tpu_custom_call.1} parent=1 // pred_region
      %s35 = ssub.s32 0, 0
      %s36 = smul.u32 8, %s35
      %s38 = ssub.s32 512, 512
      %39 = vsyncadd [#allocation8], %s38
      %s40 = smul.addr %s36, 64
      %s41 = scalar_lea.hbm %s2, %s40
      %s42 = sshll.u32 [#allocation7], 4
      %s43 = int_to_ptr.vmem [resolvable:$true] %s42
      %48 = dma.hbm_to_vmem [thread:$0]  %s41, 512, %s43, [#allocation8], 64, 64, 4
    $region13: #{tpu_custom_call.1} parent=1 // pred_fallthru
      _
    // Predicated region
    $region14: #{tpu_custom_call.1} parent=1 // pred_check
      _
    $region15: #{tpu_custom_call.1} parent=1 // pred_check_branch
      %50 = sbr.rel (0) target = $region17
    $region16: #{tpu_custom_call.1} parent=1 // pred_region
      %s52 = ssub.s32 2048, 2048
      %53 = vsyncadd [#allocation8], %s52
      %s54 = sshll.u32 [#allocation9], 4
      %s55 = int_to_ptr.vmem [resolvable:$true] %s54
      %60 = dma.hbm_to_vmem [thread:$0]  %s3, 2048, %s55, [#allocation8], 256, 256, 16
    $region17: #{tpu_custom_call.1} parent=1 // pred_fallthru
      _
    // Predicated region
    $region18: #{tpu_custom_call.1} parent=1 // pred_check
      _
    $region19: #{tpu_custom_call.1} parent=1 // pred_check_branch
      %62 = sbr.rel (0) target = $region21
    $region20: #{tpu_custom_call.1} parent=1 // pred_region
      _
    $region21: #{tpu_custom_call.1} parent=1 // pred_fallthru
      _
    // Predicated region
    $region22: #{tpu_custom_call.1} parent=1 // pred_check
      _
    $region23: #{tpu_custom_call.1} parent=1 // pred_check_branch
      %64 = sbr.rel (0) target = $region25
    $region24: #{tpu_custom_call.1} parent=1 // pred_region
      %65 = dma.done [#allocation5], 512
    $region25: #{tpu_custom_call.1} parent=1 // pred_fallthru
      _
    // Predicated region
    $region26: #{tpu_custom_call.1} parent=1 // pred_check
      _
    $region27: #{tpu_custom_call.1} parent=1 // pred_check_branch
      %67 = sbr.rel (0) target = $region29
    $region28: #{tpu_custom_call.1} parent=1 // pred_region
      %68 = dma.done [#allocation8], 512
    $region29: #{tpu_custom_call.1} parent=1 // pred_fallthru
      _
    // Predicated region
    $region30: #{tpu_custom_call.1} parent=1 // pred_check
      _
    $region31: #{tpu_custom_call.1} parent=1 // pred_check_branch
      %70 = sbr.rel (0) target = $region33
    $region32: #{tpu_custom_call.1} parent=1 // pred_region
      %71 = dma.done [#allocation8], 2048
    $region33: #{tpu_custom_call.1} parent=1 // pred_fallthru
      _
    %s72 = ssub.s32 0, 0
    %s73 = smul.u32 8, %s72
    %s74 = ssub.s32 0, 0
    %s75 = smul.u32 8, %s74
    %p76 = scmp.eq.s32.totalorder 0, 0
    // Predicated region
    $region34: #{tpu_custom_call.1} parent=1 // pred_check
      %p77 = pneg %p76
    $region35: #{tpu_custom_call.1} parent=1 // pred_check_branch
      %79 = sbr.rel (%p77) target = $region37
    $region36: #{tpu_custom_call.1} parent=1 // pred_region
      %vm80 = vcmask 257024
      %81 = vst.msk [vmem:[#allocation2] sm:$0xf] %vm80, 0.0
      %82 = vst.msk [vmem:[#allocation3] sm:$0xf] %vm80, 0.0
    $region37: #{tpu_custom_call.1} parent=1 // pred_fallthru
      _
    %v83 = vld [vmem:[%s0] sm:$0xf]
    %v84 = vld [vmem:[#allocation9] sm:$0xff]
    %v85 = vld [vmem:[#allocation9 + $0x8] sm:$0xff]
    %v86 = vld [vmem:[#allocation9 + $0x10] sm:$0xff]
    %v87 = vld [vmem:[#allocation9 + $0x18] sm:$0xff]
    %v88 = vld [vmem:[#allocation9 + $0x20] sm:$0xff]
    %v89 = vld [vmem:[#allocation9 + $0x28] sm:$0xff]
    %v90 = vld [vmem:[#allocation9 + $0x30] sm:$0xff]
    %v91 = vld [vmem:[#allocation9 + $0x38] sm:$0xff]
    %v92 = vld [vmem:[#allocation9 + $0x40] sm:$0xff]
    %v93 = vld [vmem:[#allocation9 + $0x48] sm:$0xff]
    %v94 = vld [vmem:[#allocation9 + $0x50] sm:$0xff]
    %v95 = vld [vmem:[#allocation9 + $0x58] sm:$0xff]
    %v96 = vld [vmem:[#allocation9 + $0x60] sm:$0xff]
    %v97 = vld [vmem:[#allocation9 + $0x68] sm:$0xff]
    %v98 = vld [vmem:[#allocation9 + $0x70] sm:$0xff]
    %v99 = vld [vmem:[#allocation9 + $0x78] sm:$0xff]
    %v100 = vld [vmem:[%s4] sm:$0x3]
    %v101 = vld [vmem:[#allocation2] sm:$0xf]
    %v102 = vld [vmem:[#allocation3] sm:$0xf]
    %104 = vrot.lane.b32.xlu0 %v102, 32
    %v105 = vpop.permute.xlu0 %104
    %vm107 = vcmask 261120
    %v108 = vsel %vm107, %v101, %v105
    %v110 = vlaneseq
    %v111 = vshrl.u32 %v110, 7
    %v112 = vsub.s32 0, %v111
    %v113 = vrot.slane %v100, %v112
    %v114 = vlaneseq
    %v115 = vshrl.u32 %v114, 7
    %v116 = vsub.s32 1, %v115
    %v117 = vrot.slane %v100, %v116
    %vm120 = vcmask 523264
    %v122 = vsel %vm120, %v108, 0
    %124 = vmatprep.subr.mxu0 %v85
    %125 = vmatpush1.msra.mxu0 %v84
    %126 = vmatprep.subr.mxu0 %v87
    %127 = vmatpush1.msra.mxu0 %v86
    %128 = vmatprep.subr.mxu0 %v89
    %129 = vmatpush1.msra.mxu0 %v88
    %130 = vmatprep.subr.mxu0 %v91
    %131 = vmatpush1.msra.mxu0 %v90
    %132 = vmatprep.subr.mxu0 %v93
    %133 = vmatpush1.msra.mxu0 %v92
    %134 = vmatprep.subr.mxu0 %v95
    %135 = vmatpush1.msra.mxu0 %v94
    %136 = vmatprep.subr.mxu0 %v97
    %137 = vmatpush1.msra.mxu0 %v96
    %138 = vmatprep.subr.mxu0 %v99
    %139 = vmatpush1.msra.mxu0 %v98
    %140 = vmatprep.subr.mxu0 0.0
    %141 = vmatpush1.msra.mxu0 0.0
    %142 = vmatprep.subr.mxu0 0.0
    %143 = vmatpush1.msra.mxu0 0.0
    %144 = vmatprep.subr.mxu0 0.0
    %145 = vmatpush1.msra.mxu0 0.0
    %146 = vmatprep.subr.mxu0 0.0
    %147 = vmatpush1.msra.mxu0 0.0
    %148 = vmatprep.subr.mxu0 0.0
    %149 = vmatpush1.msra.mxu0 0.0
    %150 = vmatprep.subr.mxu0 0.0
    %151 = vmatpush1.msra.mxu0 0.0
    %152 = vmatprep.subr.mxu0 0.0
    %153 = vmatpush1.msra.mxu0 0.0
    %154 = vmatprep.subr.mxu0 0.0
    %155 = vmatpush1.msra.mxu0 0.0
    %156 = vmatprep.subr.mxu0 0.0
    %157 = vmatpush1.msra.mxu0 0.0
    %158 = vmatprep.subr.mxu0 0.0
    %159 = vmatpush1.msra.mxu0 0.0
    %160 = vmatprep.subr.mxu0 0.0
    %161 = vmatpush1.msra.mxu0 0.0
    %162 = vmatprep.subr.mxu0 0.0
    %163 = vmatpush1.msra.mxu0 0.0
    %164 = vmatprep.subr.mxu0 0.0
    %165 = vmatpush1.msra.mxu0 0.0
    %166 = vmatprep.subr.mxu0 0.0
    %167 = vmatpush1.msra.mxu0 0.0
    %168 = vmatprep.subr.mxu0 0.0
    %169 = vmatpush1.msra.mxu0 0.0
    %170 = vmatprep.subr.mxu0 0.0
    %171 = vmatpush1.msra.mxu0 0.0
    %172 = vmatprep.subr.mxu0 0.0
    %173 = vmatpush1.msra.mxu0 0.0
    %174 = vmatprep.subr.mxu0 0.0
    %175 = vmatpush1.msra.mxu0 0.0
    %176 = vmatprep.subr.mxu0 0.0
    %177 = vmatpush1.msra.mxu0 0.0
    %178 = vmatprep.subr.mxu0 0.0
    %179 = vmatpush1.msra.mxu0 0.0
    %180 = vmatprep.subr.mxu0 0.0
    %181 = vmatpush1.msra.mxu0 0.0
    %182 = vmatprep.subr.mxu0 0.0
    %183 = vmatpush1.msra.mxu0 0.0
    %184 = vmatprep.subr.mxu0 0.0
    %185 = vmatpush1.msra.mxu0 0.0
    %186 = vmatprep.subr.mxu0 0.0
    %187 = vmatpush1.msra.mxu0 0.0
    %188 = vmatprep.mubr.f32.mxu0 0.0
    %189 = vmatmul.mubr.f32.gmra.mrb[0].mxu0 %v122
    %v190 = vpop.f32.mrb[0].mxu0
    %v191 = vadd.f32 %v113, %v190
    %v192 = vpop.f32.mrb[0].mxu0
    %v193 = vadd.f32 %v117, %v192
    %194 = vdwg.mxu0
    %v195 = vld [vmem:[#allocation4] sm:$0xf]
    %s196 = scalar_lea.vmem [#allocation7], 28
    %v197 = vld [vmem:[%s196] sm:$0xf]
    %v198 = vadd.f32 %v195, %v191
    %v199 = vxor.u32 %v198, 2147483648
    %v200 = vmul.f32 %v199, 1.442695
    %v201 = vpow.pop %v200
    %v202 = vadd.f32 %v201, 1.0
    %v203 = vrcp.pop %v202
    %v204 = vmul.f32 1.0, %v203
    %206 = vrot.lane.b32.xlu0 %v191, 64
    %v207 = vpop.permute.xlu0 %206
    %v209 = vmul.f32 %v204, %v207
    %211 = vrot.lane.b32.xlu0 %v209, 64
    %v212 = vpop.permute.xlu0 %211
    %v214 = vadd.f32 %v195, %v212
    %v215 = vtanh.pop %v214
    %v216 = vsub.f32 1.0, %v204
    %218 = vrot.lane.b32.xlu0 %v215, 96
    %v219 = vpop.permute.xlu0 %218
    %v221 = vmul.f32 %v216, %v219
    %223 = vrot.lane.b32.xlu0 %v101, 32
    %v224 = vpop.permute.xlu0 %223
    %v226 = vmul.f32 %v204, %v224
    %v227 = vadd.f32 %v221, %v226
    %228 = vrot.lane.b32.xlu0 %v191, 32
    %v229 = vpop.permute.xlu0 %228
    %v231 = vadd.f32 %v197, %v229
    %v232 = vxor.u32 %v231, 2147483648
    %v233 = vmul.f32 %v232, 1.442695
    %v234 = vpow.pop %v233
    %v235 = vadd.f32 %v234, 1.0
    %v236 = vrcp.pop %v235
    %v237 = vmul.f32 1.0, %v236
    %239 = vrot.lane.b32.xlu0 %v193, 32
    %v240 = vpop.permute.xlu0 %239
    %v242 = vadd.f32 %v197, %v240
    %v243 = vxor.u32 %v242, 2147483648
    %v244 = vmul.f32 %v243, 1.442695
    %v245 = vpow.pop %v244
    %v246 = vadd.f32 %v245, 1.0
    %v247 = vrcp.pop %v246
    %v248 = vmul.f32 1.0, %v247
    %249 = vrot.lane.b32.xlu0 %v193, 96
    %v250 = vpop.permute.xlu0 %249
    %v252 = vmul.f32 %v237, %v250
    %254 = vrot.lane.b32.xlu0 %v252, 64
    %v255 = vpop.permute.xlu0 %254
    %v257 = vadd.f32 %v197, %v255
    %v258 = vtanh.pop %v257
    %v259 = vsub.f32 1.0, %v248
    %261 = vrot.lane.b32.xlu0 %v258, 96
    %v262 = vpop.permute.xlu0 %261
    %v264 = vmul.f32 %v259, %v262
    %v265 = vmul.f32 %v248, %v105
    %v266 = vadd.f32 %v264, %v265
    %s267 = smul.u32 0, 8
    %s268 = ssub.s32 0, 0
    %s269 = smul.u32 %s268, 8
    %s270 = sadd.s32 %s269, 7
    %v271 = vstv %s267
    %vm272 = vcmp.lt.s32.totalorder %v271, %v83
    %v273 = vsel %vm272, 1, 0
    %v274 = vcvt.s32.f32 %v273
    %v275 = vstv %s270
    %vm276 = vcmp.lt.s32.totalorder %v275, %v83
    %v277 = vsel %vm276, 1, 0
    %v278 = vcvt.s32.f32 %v277
    %280 = vset.pattern.permute.xlu0 0
    %281 = vperm.xlu0 %280, %v274
    %v282 = vpop.permute.xlu0 %281
    %v284 = vmul.f32 %v282, %v227
    %286 = vrot.lane.b32.xlu0 %v284, 96
    %v287 = vpop.permute.xlu0 %286
    %vm289 = vcmask 257024
    %290 = vst.msk [vmem:[#allocation10] sm:$0xf] %vm289, %v287
    %292 = vset.pattern.permute.xlu0 0
    %293 = vperm.xlu0 %292, %v278
    %v294 = vpop.permute.xlu0 %293
    %v296 = vmul.f32 %v294, %v266
    %298 = vrot.lane.b32.xlu0 %v296, 96
    %v299 = vpop.permute.xlu0 %298
    %s301 = scalar_lea.vmem [#allocation11], 28
    %302 = vst.msk [vmem:[%s301] sm:$0xf] %vm289, %v299
    %v303 = vsub.f32 1.0, %v274
    %305 = vset.pattern.permute.xlu0 0
    %306 = vperm.xlu0 %305, %v303
    %v307 = vpop.permute.xlu0 %306
    %v309 = vmul.f32 %v307, %v101
    %311 = vrot.lane.b32.xlu0 %v309, 32
    %v312 = vpop.permute.xlu0 %311
    %v314 = vadd.f32 %v284, %v312
    %v315 = vsub.f32 1.0, %v278
    %317 = vset.pattern.permute.xlu0 0
    %318 = vperm.xlu0 %317, %v315
    %v319 = vpop.permute.xlu0 %318
    %v321 = vmul.f32 %v319, %v102
    %323 = vrot.lane.b32.xlu0 %v321, 32
    %v324 = vpop.permute.xlu0 %323
    %v326 = vadd.f32 %v296, %v324
    %328 = vrot.lane.b32.xlu0 %v314, 96
    %v329 = vpop.permute.xlu0 %328
    %v331 = vsel %vm107, %v329, %v326
    %v333 = vsel %vm120, %v331, 0
    %335 = vmatprep.subr.mxu0 %v85
    %336 = vmatpush1.msra.mxu0 %v84
    %337 = vmatprep.subr.mxu0 %v87
    %338 = vmatpush1.msra.mxu0 %v86
    %339 = vmatprep.subr.mxu0 %v89
    %340 = vmatpush1.msra.mxu0 %v88
    %341 = vmatprep.subr.mxu0 %v91
    %342 = vmatpush1.msra.mxu0 %v90
    %343 = vmatprep.subr.mxu0 %v93
    %344 = vmatpush1.msra.mxu0 %v92
    %345 = vmatprep.subr.mxu0 %v95
    %346 = vmatpush1.msra.mxu0 %v94
    %347 = vmatprep.subr.mxu0 %v97
    %348 = vmatpush1.msra.mxu0 %v96
    %349 = vmatprep.subr.mxu0 %v99
    %350 = vmatpush1.msra.mxu0 %v98
    %351 = vmatprep.subr.mxu0 0.0
    %352 = vmatpush1.msra.mxu0 0.0
    %353 = vmatprep.subr.mxu0 0.0
    %354 = vmatpush1.msra.mxu0 0.0
    %355 = vmatprep.subr.mxu0 0.0
    %356 = vmatpush1.msra.mxu0 0.0
    %357 = vmatprep.subr.mxu0 0.0
    %358 = vmatpush1.msra.mxu0 0.0
    %359 = vmatprep.subr.mxu0 0.0
    %360 = vmatpush1.msra.mxu0 0.0
    %361 = vmatprep.subr.mxu0 0.0
    %362 = vmatpush1.msra.mxu0 0.0
    %363 = vmatprep.subr.mxu0 0.0
    %364 = vmatpush1.msra.mxu0 0.0
    %365 = vmatprep.subr.mxu0 0.0
    %366 = vmatpush1.msra.mxu0 0.0
    %367 = vmatprep.subr.mxu0 0.0
    %368 = vmatpush1.msra.mxu0 0.0
    %369 = vmatprep.subr.mxu0 0.0
    %370 = vmatpush1.msra.mxu0 0.0
    %371 = vmatprep.subr.mxu0 0.0
    %372 = vmatpush1.msra.mxu0 0.0
    %373 = vmatprep.subr.mxu0 0.0
    %374 = vmatpush1.msra.mxu0 0.0
    %375 = vmatprep.subr.mxu0 0.0
    %376 = vmatpush1.msra.mxu0 0.0
    %377 = vmatprep.subr.mxu0 0.0
    %378 = vmatpush1.msra.mxu0 0.0
    %379 = vmatprep.subr.mxu0 0.0
    %380 = vmatpush1.msra.mxu0 0.0
    %381 = vmatprep.subr.mxu0 0.0
    %382 = vmatpush1.msra.mxu0 0.0
    %383 = vmatprep.subr.mxu0 0.0
    %384 = vmatpush1.msra.mxu0 0.0
    %385 = vmatprep.subr.mxu0 0.0
    %386 = vmatpush1.msra.mxu0 0.0
    %387 = vmatprep.subr.mxu0 0.0
    %388 = vmatpush1.msra.mxu0 0.0
    %389 = vmatprep.subr.mxu0 0.0
    %390 = vmatpush1.msra.mxu0 0.0
    %391 = vmatprep.subr.mxu0 0.0
    %392 = vmatpush1.msra.mxu0 0.0
    %393 = vmatprep.subr.mxu0 0.0
    %394 = vmatpush1.msra.mxu0 0.0
    %395 = vmatprep.subr.mxu0 0.0
    %396 = vmatpush1.msra.mxu0 0.0
    %397 = vmatprep.subr.mxu0 0.0
    %398 = vmatpush1.msra.mxu0 0.0
    %399 = vmatprep.mubr.f32.mxu0 0.0
    %400 = vmatmul.mubr.f32.gmra.mrb[0].mxu0 %v333
    %v401 = vpop.f32.mrb[0].mxu0
    %v402 = vadd.f32 %v113, %v401
    %v403 = vpop.f32.mrb[0].mxu0
    %v404 = vadd.f32 %v117, %v403
    %405 = vdwg.mxu0
    %s406 = scalar_lea.vmem [#allocation4], 4
    %v407 = vld [vmem:[%s406] sm:$0xf]
    %s408 = scalar_lea.vmem [#allocation7], 24
    %v409 = vld [vmem:[%s408] sm:$0xf]
    %v410 = vadd.f32 %v407, %v402
    %v411 = vxor.u32 %v410, 2147483648
    %v412 = vmul.f32 %v411, 1.442695
    %v413 = vpow.pop %v412
    %v414 = vadd.f32 %v413, 1.0
    %v415 = vrcp.pop %v414
    %v416 = vmul.f32 1.0, %v415
    %418 = vrot.lane.b32.xlu0 %v402, 64
    %v419 = vpop.permute.xlu0 %418
    %v421 = vmul.f32 %v416, %v419
    %423 = vrot.lane.b32.xlu0 %v421, 64
    %v424 = vpop.permute.xlu0 %423
    %v426 = vadd.f32 %v407, %v424
    %v427 = vtanh.pop %v426
    %v428 = vsub.f32 1.0, %v416
    %430 = vrot.lane.b32.xlu0 %v427, 96
    %v431 = vpop.permute.xlu0 %430
    %v433 = vmul.f32 %v428, %v431
    %v434 = vmul.f32 %v416, %v314
    %v435 = vadd.f32 %v433, %v434
    %436 = vrot.lane.b32.xlu0 %v402, 32
    %v437 = vpop.permute.xlu0 %436
    %v439 = vadd.f32 %v409, %v437
    %v440 = vxor.u32 %v439, 2147483648
    %v441 = vmul.f32 %v440, 1.442695
    %v442 = vpow.pop %v441
    %v443 = vadd.f32 %v442, 1.0
    %v444 = vrcp.pop %v443
    %v445 = vmul.f32 1.0, %v444
    %447 = vrot.lane.b32.xlu0 %v404, 32
    %v448 = vpop.permute.xlu0 %447
    %v450 = vadd.f32 %v409, %v448
    %v451 = vxor.u32 %v450, 2147483648
    %v452 = vmul.f32 %v451, 1.442695
    %v453 = vpow.pop %v452
    %v454 = vadd.f32 %v453, 1.0
    %v455 = vrcp.pop %v454
    %v456 = vmul.f32 1.0, %v455
    %457 = vrot.lane.b32.xlu0 %v404, 96
    %v458 = vpop.permute.xlu0 %457
    %v460 = vmul.f32 %v445, %v458
    %462 = vrot.lane.b32.xlu0 %v460, 64
    %v463 = vpop.permute.xlu0 %462
    %v465 = vadd.f32 %v409, %v463
    %v466 = vtanh.pop %v465
    %v467 = vsub.f32 1.0, %v456
    %469 = vrot.lane.b32.xlu0 %v466, 96
    %v470 = vpop.permute.xlu0 %469
    %v472 = vmul.f32 %v467, %v470
    %v473 = vmul.f32 %v456, %v326
    %v474 = vadd.f32 %v472, %v473
    %s475 = sadd.s32 %s267, 1
    %s476 = sadd.s32 %s269, 6
    %v477 = vstv %s475
    %vm478 = vcmp.lt.s32.totalorder %v477, %v83
    %v479 = vsel %vm478, 1, 0
    %v480 = vcvt.s32.f32 %v479
    %v481 = vstv %s476
    %vm482 = vcmp.lt.s32.totalorder %v481, %v83
    %v483 = vsel %vm482, 1, 0
    %v484 = vcvt.s32.f32 %v483
    %486 = vset.pattern.permute.xlu0 0
    %487 = vperm.xlu0 %486, %v480
    %v488 = vpop.permute.xlu0 %487
    %v490 = vmul.f32 %v488, %v435
    %492 = vrot.lane.b32.xlu0 %v490, 96
    %v493 = vpop.permute.xlu0 %492
    %s495 = scalar_lea.vmem [#allocation10], 4
    %496 = vst.msk [vmem:[%s495] sm:$0xf] %vm289, %v493
    %498 = vset.pattern.permute.xlu0 0
    %499 = vperm.xlu0 %498, %v484
    %v500 = vpop.permute.xlu0 %499
    %v502 = vmul.f32 %v500, %v474
    %504 = vrot.lane.b32.xlu0 %v502, 96
    %v505 = vpop.permute.xlu0 %504
    %s507 = scalar_lea.vmem [#allocation11], 24
    %508 = vst.msk [vmem:[%s507] sm:$0xf] %vm289, %v505
    %v509 = vsub.f32 1.0, %v480
    %511 = vset.pattern.permute.xlu0 0
    %512 = vperm.xlu0 %511, %v509
    %v513 = vpop.permute.xlu0 %512
    %v515 = vmul.f32 %v513, %v314
    %v516 = vadd.f32 %v490, %v515
    %v517 = vsub.f32 1.0, %v484
    %519 = vset.pattern.permute.xlu0 0
    %520 = vperm.xlu0 %519, %v517
    %v521 = vpop.permute.xlu0 %520
    %v523 = vmul.f32 %v521, %v326
    %v524 = vadd.f32 %v502, %v523
    %526 = vrot.lane.b32.xlu0 %v516, 96
    %v527 = vpop.permute.xlu0 %526
    %v529 = vsel %vm107, %v527, %v524
    %v531 = vsel %vm120, %v529, 0
    %533 = vmatprep.subr.mxu0 %v85
    %534 = vmatpush1.msra.mxu0 %v84
    %535 = vmatprep.subr.mxu0 %v87
    %536 = vmatpush1.msra.mxu0 %v86
    %537 = vmatprep.subr.mxu0 %v89
    %538 = vmatpush1.msra.mxu0 %v88
    %539 = vmatprep.subr.mxu0 %v91
    %540 = vmatpush1.msra.mxu0 %v90
    %541 = vmatprep.subr.mxu0 %v93
    %542 = vmatpush1.msra.mxu0 %v92
    %543 = vmatprep.subr.mxu0 %v95
    %544 = vmatpush1.msra.mxu0 %v94
    %545 = vmatprep.subr.mxu0 %v97
    %546 = vmatpush1.msra.mxu0 %v96
    %547 = vmatprep.subr.mxu0 %v99
    %548 = vmatpush1.msra.mxu0 %v98
    %549 = vmatprep.subr.mxu0 0.0
    %550 = vmatpush1.msra.mxu0 0.0
    %551 = vmatprep.subr.mxu0 0.0
    %552 = vmatpush1.msra.mxu0 0.0
    %553 = vmatprep.subr.mxu0 0.0
    %554 = vmatpush1.msra.mxu0 0.0
    %555 = vmatprep.subr.mxu0 0.0
    %556 = vmatpush1.msra.mxu0 0.0
    %557 = vmatprep.subr.mxu0 0.0
    %558 = vmatpush1.msra.mxu0 0.0
    %559 = vmatprep.subr.mxu0 0.0
    %560 = vmatpush1.msra.mxu0 0.0
    %561 = vmatprep.subr.mxu0 0.0
    %562 = vmatpush1.msra.mxu0 0.0
    %563 = vmatprep.subr.mxu0 0.0
    %564 = vmatpush1.msra.mxu0 0.0
    %565 = vmatprep.subr.mxu0 0.0
    %566 = vmatpush1.msra.mxu0 0.0
    %567 = vmatprep.subr.mxu0 0.0
    %568 = vmatpush1.msra.mxu0 0.0
    %569 = vmatprep.subr.mxu0 0.0
    %570 = vmatpush1.msra.mxu0 0.0
    %571 = vmatprep.subr.mxu0 0.0
    %572 = vmatpush1.msra.mxu0 0.0
    %573 = vmatprep.subr.mxu0 0.0
    %574 = vmatpush1.msra.mxu0 0.0
    %575 = vmatprep.subr.mxu0 0.0
    %576 = vmatpush1.msra.mxu0 0.0
    %577 = vmatprep.subr.mxu0 0.0
    %578 = vmatpush1.msra.mxu0 0.0
    %579 = vmatprep.subr.mxu0 0.0
    %580 = vmatpush1.msra.mxu0 0.0
    %581 = vmatprep.subr.mxu0 0.0
    %582 = vmatpush1.msra.mxu0 0.0
    %583 = vmatprep.subr.mxu0 0.0
    %584 = vmatpush1.msra.mxu0 0.0
    %585 = vmatprep.subr.mxu0 0.0
    %586 = vmatpush1.msra.mxu0 0.0
    %587 = vmatprep.subr.mxu0 0.0
    %588 = vmatpush1.msra.mxu0 0.0
    %589 = vmatprep.subr.mxu0 0.0
    %590 = vmatpush1.msra.mxu0 0.0
    %591 = vmatprep.subr.mxu0 0.0
    %592 = vmatpush1.msra.mxu0 0.0
    %593 = vmatprep.subr.mxu0 0.0
    %594 = vmatpush1.msra.mxu0 0.0
    %595 = vmatprep.subr.mxu0 0.0
    %596 = vmatpush1.msra.mxu0 0.0
    %597 = vmatprep.mubr.f32.mxu0 0.0
    %598 = vmatmul.mubr.f32.gmra.mrb[0].mxu0 %v531
    %v599 = vpop.f32.mrb[0].mxu0
    %v600 = vadd.f32 %v113, %v599
    %v601 = vpop.f32.mrb[0].mxu0
    %v602 = vadd.f32 %v117, %v601
    %603 = vdwg.mxu0
    %s604 = scalar_lea.vmem [#allocation4], 8
    %v605 = vld [vmem:[%s604] sm:$0xf]
    %s606 = scalar_lea.vmem [#allocation7], 20
    %v607 = vld [vmem:[%s606] sm:$0xf]
    %v608 = vadd.f32 %v605, %v600
    %v609 = vxor.u32 %v608, 2147483648
    %v610 = vmul.f32 %v609, 1.442695
    %v611 = vpow.pop %v610
    %v612 = vadd.f32 %v611, 1.0
    %v613 = vrcp.pop %v612
    %v614 = vmul.f32 1.0, %v613
    %616 = vrot.lane.b32.xlu0 %v600, 64
    %v617 = vpop.permute.xlu0 %616
    %v619 = vmul.f32 %v614, %v617
    %621 = vrot.lane.b32.xlu0 %v619, 64
    %v622 = vpop.permute.xlu0 %621
    %v624 = vadd.f32 %v605, %v622
    %v625 = vtanh.pop %v624
    %v626 = vsub.f32 1.0, %v614
    %628 = vrot.lane.b32.xlu0 %v625, 96
    %v629 = vpop.permute.xlu0 %628
    %v631 = vmul.f32 %v626, %v629
    %v632 = vmul.f32 %v614, %v516
    %v633 = vadd.f32 %v631, %v632
    %634 = vrot.lane.b32.xlu0 %v600, 32
    %v635 = vpop.permute.xlu0 %634
    %v637 = vadd.f32 %v607, %v635
    %v638 = vxor.u32 %v637, 2147483648
    %v639 = vmul.f32 %v638, 1.442695
    %v640 = vpow.pop %v639
    %v641 = vadd.f32 %v640, 1.0
    %v642 = vrcp.pop %v641
    %v643 = vmul.f32 1.0, %v642
    %645 = vrot.lane.b32.xlu0 %v602, 32
    %v646 = vpop.permute.xlu0 %645
    %v648 = vadd.f32 %v607, %v646
    %v649 = vxor.u32 %v648, 2147483648
    %v650 = vmul.f32 %v649, 1.442695
    %v651 = vpow.pop %v650
    %v652 = vadd.f32 %v651, 1.0
    %v653 = vrcp.pop %v652
    %v654 = vmul.f32 1.0, %v653
    %655 = vrot.lane.b32.xlu0 %v602, 96
    %v656 = vpop.permute.xlu0 %655
    %v658 = vmul.f32 %v643, %v656
    %660 = vrot.lane.b32.xlu0 %v658, 64
    %v661 = vpop.permute.xlu0 %660
    %v663 = vadd.f32 %v607, %v661
    %v664 = vtanh.pop %v663
    %v665 = vsub.f32 1.0, %v654
    %667 = vrot.lane.b32.xlu0 %v664, 96
    %v668 = vpop.permute.xlu0 %667
    %v670 = vmul.f32 %v665, %v668
    %v671 = vmul.f32 %v654, %v524
    %v672 = vadd.f32 %v670, %v671
    %s673 = sadd.s32 %s267, 2
    %s674 = sadd.s32 %s269, 5
    %v675 = vstv %s673
    %vm676 = vcmp.lt.s32.totalorder %v675, %v83
    %v677 = vsel %vm676, 1, 0
    %v678 = vcvt.s32.f32 %v677
    %v679 = vstv %s674
    %vm680 = vcmp.lt.s32.totalorder %v679, %v83
    %v681 = vsel %vm680, 1, 0
    %v682 = vcvt.s32.f32 %v681
    %684 = vset.pattern.permute.xlu0 0
    %685 = vperm.xlu0 %684, %v678
    %v686 = vpop.permute.xlu0 %685
    %v688 = vmul.f32 %v686, %v633
    %690 = vrot.lane.b32.xlu0 %v688, 96
    %v691 = vpop.permute.xlu0 %690
    %s693 = scalar_lea.vmem [#allocation10], 8
    %694 = vst.msk [vmem:[%s693] sm:$0xf] %vm289, %v691
    %696 = vset.pattern.permute.xlu0 0
    %697 = vperm.xlu0 %696, %v682
    %v698 = vpop.permute.xlu0 %697
    %v700 = vmul.f32 %v698, %v672
    %702 = vrot.lane.b32.xlu0 %v700, 96
    %v703 = vpop.permute.xlu0 %702
    %s705 = scalar_lea.vmem [#allocation11], 20
    %706 = vst.msk [vmem:[%s705] sm:$0xf] %vm289, %v703
    %v707 = vsub.f32 1.0, %v678
    %709 = vset.pattern.permute.xlu0 0
    %710 = vperm.xlu0 %709, %v707
    %v711 = vpop.permute.xlu0 %710
    %v713 = vmul.f32 %v711, %v516
    %v714 = vadd.f32 %v688, %v713
    %v715 = vsub.f32 1.0, %v682
    %717 = vset.pattern.permute.xlu0 0
    %718 = vperm.xlu0 %717, %v715
    %v719 = vpop.permute.xlu0 %718
    %v721 = vmul.f32 %v719, %v524
    %v722 = vadd.f32 %v700, %v721
    %724 = vrot.lane.b32.xlu0 %v714, 96
    %v725 = vpop.permute.xlu0 %724
    %v727 = vsel %vm107, %v725, %v722
    %v729 = vsel %vm120, %v727, 0
    %731 = vmatprep.subr.mxu0 %v85
    %732 = vmatpush1.msra.mxu0 %v84
    %733 = vmatprep.subr.mxu0 %v87
    %734 = vmatpush1.msra.mxu0 %v86
    %735 = vmatprep.subr.mxu0 %v89
    %736 = vmatpush1.msra.mxu0 %v88
    %737 = vmatprep.subr.mxu0 %v91
    %738 = vmatpush1.msra.mxu0 %v90
    %739 = vmatprep.subr.mxu0 %v93
    %740 = vmatpush1.msra.mxu0 %v92
    %741 = vmatprep.subr.mxu0 %v95
    %742 = vmatpush1.msra.mxu0 %v94
    %743 = vmatprep.subr.mxu0 %v97
    %744 = vmatpush1.msra.mxu0 %v96
    %745 = vmatprep.subr.mxu0 %v99
    %746 = vmatpush1.msra.mxu0 %v98
    %747 = vmatprep.subr.mxu0 0.0
    %748 = vmatpush1.msra.mxu0 0.0
    %749 = vmatprep.subr.mxu0 0.0
    %750 = vmatpush1.msra.mxu0 0.0
    %751 = vmatprep.subr.mxu0 0.0
    %752 = vmatpush1.msra.mxu0 0.0
    %753 = vmatprep.subr.mxu0 0.0
    %754 = vmatpush1.msra.mxu0 0.0
    %755 = vmatprep.subr.mxu0 0.0
    %756 = vmatpush1.msra.mxu0 0.0
    %757 = vmatprep.subr.mxu0 0.0
    %758 = vmatpush1.msra.mxu0 0.0
    %759 = vmatprep.subr.mxu0 0.0
    %760 = vmatpush1.msra.mxu0 0.0
    %761 = vmatprep.subr.mxu0 0.0
    %762 = vmatpush1.msra.mxu0 0.0
    %763 = vmatprep.subr.mxu0 0.0
    %764 = vmatpush1.msra.mxu0 0.0
    %765 = vmatprep.subr.mxu0 0.0
    %766 = vmatpush1.msra.mxu0 0.0
    %767 = vmatprep.subr.mxu0 0.0
    %768 = vmatpush1.msra.mxu0 0.0
    %769 = vmatprep.subr.mxu0 0.0
    %770 = vmatpush1.msra.mxu0 0.0
    %771 = vmatprep.subr.mxu0 0.0
    %772 = vmatpush1.msra.mxu0 0.0
    %773 = vmatprep.subr.mxu0 0.0
    %774 = vmatpush1.msra.mxu0 0.0
    %775 = vmatprep.subr.mxu0 0.0
    %776 = vmatpush1.msra.mxu0 0.0
    %777 = vmatprep.subr.mxu0 0.0
    %778 = vmatpush1.msra.mxu0 0.0
    %779 = vmatprep.subr.mxu0 0.0
    %780 = vmatpush1.msra.mxu0 0.0
    %781 = vmatprep.subr.mxu0 0.0
    %782 = vmatpush1.msra.mxu0 0.0
    %783 = vmatprep.subr.mxu0 0.0
    %784 = vmatpush1.msra.mxu0 0.0
    %785 = vmatprep.subr.mxu0 0.0
    %786 = vmatpush1.msra.mxu0 0.0
    %787 = vmatprep.subr.mxu0 0.0
    %788 = vmatpush1.msra.mxu0 0.0
    %789 = vmatprep.subr.mxu0 0.0
    %790 = vmatpush1.msra.mxu0 0.0
    %791 = vmatprep.subr.mxu0 0.0
    %792 = vmatpush1.msra.mxu0 0.0
    %793 = vmatprep.subr.mxu0 0.0
    %794 = vmatpush1.msra.mxu0 0.0
    %795 = vmatprep.mubr.f32.mxu0 0.0
    %796 = vmatmul.mubr.f32.gmra.mrb[0].mxu0 %v729
    %v797 = vpop.f32.mrb[0].mxu0
    %v798 = vadd.f32 %v113, %v797
    %v799 = vpop.f32.mrb[0].mxu0
    %v800 = vadd.f32 %v117, %v799
    %801 = vdwg.mxu0
    %s802 = scalar_lea.vmem [#allocation4], 12
    %v803 = vld [vmem:[%s802] sm:$0xf]
    %s804 = scalar_lea.vmem [#allocation7], 16
    %v805 = vld [vmem:[%s804] sm:$0xf]
    %v806 = vadd.f32 %v803, %v798
    %v807 = vxor.u32 %v806, 2147483648
    %v808 = vmul.f32 %v807, 1.442695
    %v809 = vpow.pop %v808
    %v810 = vadd.f32 %v809, 1.0
    %v811 = vrcp.pop %v810
    %v812 = vmul.f32 1.0, %v811
    %814 = vrot.lane.b32.xlu0 %v798, 64
    %v815 = vpop.permute.xlu0 %814
    %v817 = vmul.f32 %v812, %v815
    %819 = vrot.lane.b32.xlu0 %v817, 64
    %v820 = vpop.permute.xlu0 %819
    %v822 = vadd.f32 %v803, %v820
    %v823 = vtanh.pop %v822
    %v824 = vsub.f32 1.0, %v812
    %826 = vrot.lane.b32.xlu0 %v823, 96
    %v827 = vpop.permute.xlu0 %826
    %v829 = vmul.f32 %v824, %v827
    %v830 = vmul.f32 %v812, %v714
    %v831 = vadd.f32 %v829, %v830
    %832 = vrot.lane.b32.xlu0 %v798, 32
    %v833 = vpop.permute.xlu0 %832
    %v835 = vadd.f32 %v805, %v833
    %v836 = vxor.u32 %v835, 2147483648
    %v837 = vmul.f32 %v836, 1.442695
    %v838 = vpow.pop %v837
    %v839 = vadd.f32 %v838, 1.0
    %v840 = vrcp.pop %v839
    %v841 = vmul.f32 1.0, %v840
    %843 = vrot.lane.b32.xlu0 %v800, 32
    %v844 = vpop.permute.xlu0 %843
    %v846 = vadd.f32 %v805, %v844
    %v847 = vxor.u32 %v846, 2147483648
    %v848 = vmul.f32 %v847, 1.442695
    %v849 = vpow.pop %v848
    %v850 = vadd.f32 %v849, 1.0
    %v851 = vrcp.pop %v850
    %v852 = vmul.f32 1.0, %v851
    %853 = vrot.lane.b32.xlu0 %v800, 96
    %v854 = vpop.permute.xlu0 %853
    %v856 = vmul.f32 %v841, %v854
    %858 = vrot.lane.b32.xlu0 %v856, 64
    %v859 = vpop.permute.xlu0 %858
    %v861 = vadd.f32 %v805, %v859
    %v862 = vtanh.pop %v861
    %v863 = vsub.f32 1.0, %v852
    %865 = vrot.lane.b32.xlu0 %v862, 96
    %v866 = vpop.permute.xlu0 %865
    %v868 = vmul.f32 %v863, %v866
    %v869 = vmul.f32 %v852, %v722
    %v870 = vadd.f32 %v868, %v869
    %s871 = sadd.s32 %s267, 3
    %s872 = sadd.s32 %s269, 4
    %v873 = vstv %s871
    %vm874 = vcmp.lt.s32.totalorder %v873, %v83
    %v875 = vsel %vm874, 1, 0
    %v876 = vcvt.s32.f32 %v875
    %v877 = vstv %s872
    %vm878 = vcmp.lt.s32.totalorder %v877, %v83
    %v879 = vsel %vm878, 1, 0
    %v880 = vcvt.s32.f32 %v879
    %882 = vset.pattern.permute.xlu0 0
    %883 = vperm.xlu0 %882, %v876
    %v884 = vpop.permute.xlu0 %883
    %v886 = vmul.f32 %v884, %v831
    %888 = vrot.lane.b32.xlu0 %v886, 96
    %v889 = vpop.permute.xlu0 %888
    %s891 = scalar_lea.vmem [#allocation10], 12
    %892 = vst.msk [vmem:[%s891] sm:$0xf] %vm289, %v889
    %894 = vset.pattern.permute.xlu0 0
    %895 = vperm.xlu0 %894, %v880
    %v896 = vpop.permute.xlu0 %895
    %v898 = vmul.f32 %v896, %v870
    %900 = vrot.lane.b32.xlu0 %v898, 96
    %v901 = vpop.permute.xlu0 %900
    %s903 = scalar_lea.vmem [#allocation11], 16
    %904 = vst.msk [vmem:[%s903] sm:$0xf] %vm289, %v901
    %v905 = vsub.f32 1.0, %v876
    %907 = vset.pattern.permute.xlu0 0
    %908 = vperm.xlu0 %907, %v905
    %v909 = vpop.permute.xlu0 %908
    %v911 = vmul.f32 %v909, %v714
    %v912 = vadd.f32 %v886, %v911
    %v913 = vsub.f32 1.0, %v880
    %915 = vset.pattern.permute.xlu0 0
    %916 = vperm.xlu0 %915, %v913
    %v917 = vpop.permute.xlu0 %916
    %v919 = vmul.f32 %v917, %v722
    %v920 = vadd.f32 %v898, %v919
    %922 = vrot.lane.b32.xlu0 %v912, 96
    %v923 = vpop.permute.xlu0 %922
    %v925 = vsel %vm107, %v923, %v920
    %v927 = vsel %vm120, %v925, 0
    %929 = vmatprep.subr.mxu0 %v85
    %930 = vmatpush1.msra.mxu0 %v84
    %931 = vmatprep.subr.mxu0 %v87
    %932 = vmatpush1.msra.mxu0 %v86
    %933 = vmatprep.subr.mxu0 %v89
    %934 = vmatpush1.msra.mxu0 %v88
    %935 = vmatprep.subr.mxu0 %v91
    %936 = vmatpush1.msra.mxu0 %v90
    %937 = vmatprep.subr.mxu0 %v93
    %938 = vmatpush1.msra.mxu0 %v92
    %939 = vmatprep.subr.mxu0 %v95
    %940 = vmatpush1.msra.mxu0 %v94
    %941 = vmatprep.subr.mxu0 %v97
    %942 = vmatpush1.msra.mxu0 %v96
    %943 = vmatprep.subr.mxu0 %v99
    %944 = vmatpush1.msra.mxu0 %v98
    %945 = vmatprep.subr.mxu0 0.0
    %946 = vmatpush1.msra.mxu0 0.0
    %947 = vmatprep.subr.mxu0 0.0
    %948 = vmatpush1.msra.mxu0 0.0
    %949 = vmatprep.subr.mxu0 0.0
    %950 = vmatpush1.msra.mxu0 0.0
    %951 = vmatprep.subr.mxu0 0.0
    %952 = vmatpush1.msra.mxu0 0.0
    %953 = vmatprep.subr.mxu0 0.0
    %954 = vmatpush1.msra.mxu0 0.0
    %955 = vmatprep.subr.mxu0 0.0
    %956 = vmatpush1.msra.mxu0 0.0
    %957 = vmatprep.subr.mxu0 0.0
    %958 = vmatpush1.msra.mxu0 0.0
    %959 = vmatprep.subr.mxu0 0.0
    %960 = vmatpush1.msra.mxu0 0.0
    %961 = vmatprep.subr.mxu0 0.0
    %962 = vmatpush1.msra.mxu0 0.0
    %963 = vmatprep.subr.mxu0 0.0
    %964 = vmatpush1.msra.mxu0 0.0
    %965 = vmatprep.subr.mxu0 0.0
    %966 = vmatpush1.msra.mxu0 0.0
    %967 = vmatprep.subr.mxu0 0.0
    %968 = vmatpush1.msra.mxu0 0.0
    %969 = vmatprep.subr.mxu0 0.0
    %970 = vmatpush1.msra.mxu0 0.0
    %971 = vmatprep.subr.mxu0 0.0
    %972 = vmatpush1.msra.mxu0 0.0
    %973 = vmatprep.subr.mxu0 0.0
    %974 = vmatpush1.msra.mxu0 0.0
    %975 = vmatprep.subr.mxu0 0.0
    %976 = vmatpush1.msra.mxu0 0.0
    %977 = vmatprep.subr.mxu0 0.0
    %978 = vmatpush1.msra.mxu0 0.0
    %979 = vmatprep.subr.mxu0 0.0
    %980 = vmatpush1.msra.mxu0 0.0
    %981 = vmatprep.subr.mxu0 0.0
    %982 = vmatpush1.msra.mxu0 0.0
    %983 = vmatprep.subr.mxu0 0.0
    %984 = vmatpush1.msra.mxu0 0.0
    %985 = vmatprep.subr.mxu0 0.0
    %986 = vmatpush1.msra.mxu0 0.0
    %987 = vmatprep.subr.mxu0 0.0
    %988 = vmatpush1.msra.mxu0 0.0
    %989 = vmatprep.subr.mxu0 0.0
    %990 = vmatpush1.msra.mxu0 0.0
    %991 = vmatprep.subr.mxu0 0.0
    %992 = vmatpush1.msra.mxu0 0.0
    %993 = vmatprep.mubr.f32.mxu0 0.0
    %994 = vmatmul.mubr.f32.gmra.mrb[0].mxu0 %v927
    %v995 = vpop.f32.mrb[0].mxu0
    %v996 = vadd.f32 %v113, %v995
    %v997 = vpop.f32.mrb[0].mxu0
    %v998 = vadd.f32 %v117, %v997
    %999 = vdwg.mxu0
    %s1000 = scalar_lea.vmem [#allocation4], 16
    %v1001 = vld [vmem:[%s1000] sm:$0xf]
    %s1002 = scalar_lea.vmem [#allocation7], 12
    %v1003 = vld [vmem:[%s1002] sm:$0xf]
    %v1004 = vadd.f32 %v1001, %v996
    %v1005 = vxor.u32 %v1004, 2147483648
    %v1006 = vmul.f32 %v1005, 1.442695
    %v1007 = vpow.pop %v1006
    %v1008 = vadd.f32 %v1007, 1.0
    %v1009 = vrcp.pop %v1008
    %v1010 = vmul.f32 1.0, %v1009
    %1012 = vrot.lane.b32.xlu0 %v996, 64
    %v1013 = vpop.permute.xlu0 %1012
    %v1015 = vmul.f32 %v1010, %v1013
    %1017 = vrot.lane.b32.xlu0 %v1015, 64
    %v1018 = vpop.permute.xlu0 %1017
    %v1020 = vadd.f32 %v1001, %v1018
    %v1021 = vtanh.pop %v1020
    %v1022 = vsub.f32 1.0, %v1010
    %1024 = vrot.lane.b32.xlu0 %v1021, 96
    %v1025 = vpop.permute.xlu0 %1024
    %v1027 = vmul.f32 %v1022, %v1025
    %v1028 = vmul.f32 %v1010, %v912
    %v1029 = vadd.f32 %v1027, %v1028
    %1030 = vrot.lane.b32.xlu0 %v996, 32
    %v1031 = vpop.permute.xlu0 %1030
    %v1033 = vadd.f32 %v1003, %v1031
    %v1034 = vxor.u32 %v1033, 2147483648
    %v1035 = vmul.f32 %v1034, 1.442695
    %v1036 = vpow.pop %v1035
    %v1037 = vadd.f32 %v1036, 1.0
    %v1038 = vrcp.pop %v1037
    %v1039 = vmul.f32 1.0, %v1038
    %1041 = vrot.lane.b32.xlu0 %v998, 32
    %v1042 = vpop.permute.xlu0 %1041
    %v1044 = vadd.f32 %v1003, %v1042
    %v1045 = vxor.u32 %v1044, 2147483648
    %v1046 = vmul.f32 %v1045, 1.442695
    %v1047 = vpow.pop %v1046
    %v1048 = vadd.f32 %v1047, 1.0
    %v1049 = vrcp.pop %v1048
    %v1050 = vmul.f32 1.0, %v1049
    %1051 = vrot.lane.b32.xlu0 %v998, 96
    %v1052 = vpop.permute.xlu0 %1051
    %v1054 = vmul.f32 %v1039, %v1052
    %1056 = vrot.lane.b32.xlu0 %v1054, 64
    %v1057 = vpop.permute.xlu0 %1056
    %v1059 = vadd.f32 %v1003, %v1057
    %v1060 = vtanh.pop %v1059
    %v1061 = vsub.f32 1.0, %v1050
    %1063 = vrot.lane.b32.xlu0 %v1060, 96
    %v1064 = vpop.permute.xlu0 %1063
    %v1066 = vmul.f32 %v1061, %v1064
    %v1067 = vmul.f32 %v1050, %v920
    %v1068 = vadd.f32 %v1066, %v1067
    %s1069 = sadd.s32 %s267, 4
    %s1070 = sadd.s32 %s269, 3
    %v1071 = vstv %s1069
    %vm1072 = vcmp.lt.s32.totalorder %v1071, %v83
    %v1073 = vsel %vm1072, 1, 0
    %v1074 = vcvt.s32.f32 %v1073
    %v1075 = vstv %s1070
    %vm1076 = vcmp.lt.s32.totalorder %v1075, %v83
    %v1077 = vsel %vm1076, 1, 0
    %v1078 = vcvt.s32.f32 %v1077
    %1080 = vset.pattern.permute.xlu0 0
    %1081 = vperm.xlu0 %1080, %v1074
    %v1082 = vpop.permute.xlu0 %1081
    %v1084 = vmul.f32 %v1082, %v1029
    %1086 = vrot.lane.b32.xlu0 %v1084, 96
    %v1087 = vpop.permute.xlu0 %1086
    %s1089 = scalar_lea.vmem [#allocation10], 16
    %1090 = vst.msk [vmem:[%s1089] sm:$0xf] %vm289, %v1087
    %1092 = vset.pattern.permute.xlu0 0
    %1093 = vperm.xlu0 %1092, %v1078
    %v1094 = vpop.permute.xlu0 %1093
    %v1096 = vmul.f32 %v1094, %v1068
    %1098 = vrot.lane.b32.xlu0 %v1096, 96
    %v1099 = vpop.permute.xlu0 %1098
    %s1101 = scalar_lea.vmem [#allocation11], 12
    %1102 = vst.msk [vmem:[%s1101] sm:$0xf] %vm289, %v1099
    %v1103 = vsub.f32 1.0, %v1074
    %1105 = vset.pattern.permute.xlu0 0
    %1106 = vperm.xlu0 %1105, %v1103
    %v1107 = vpop.permute.xlu0 %1106
    %v1109 = vmul.f32 %v1107, %v912
    %v1110 = vadd.f32 %v1084, %v1109
    %v1111 = vsub.f32 1.0, %v1078
    %1113 = vset.pattern.permute.xlu0 0
    %1114 = vperm.xlu0 %1113, %v1111
    %v1115 = vpop.permute.xlu0 %1114
    %v1117 = vmul.f32 %v1115, %v920
    %v1118 = vadd.f32 %v1096, %v1117
    %1120 = vrot.lane.b32.xlu0 %v1110, 96
    %v1121 = vpop.permute.xlu0 %1120
    %v1123 = vsel %vm107, %v1121, %v1118
    %v1125 = vsel %vm120, %v1123, 0
    %1127 = vmatprep.subr.mxu0 %v85
    %1128 = vmatpush1.msra.mxu0 %v84
    %1129 = vmatprep.subr.mxu0 %v87
    %1130 = vmatpush1.msra.mxu0 %v86
    %1131 = vmatprep.subr.mxu0 %v89
    %1132 = vmatpush1.msra.mxu0 %v88
    %1133 = vmatprep.subr.mxu0 %v91
    %1134 = vmatpush1.msra.mxu0 %v90
    %1135 = vmatprep.subr.mxu0 %v93
    %1136 = vmatpush1.msra.mxu0 %v92
    %1137 = vmatprep.subr.mxu0 %v95
    %1138 = vmatpush1.msra.mxu0 %v94
    %1139 = vmatprep.subr.mxu0 %v97
    %1140 = vmatpush1.msra.mxu0 %v96
    %1141 = vmatprep.subr.mxu0 %v99
    %1142 = vmatpush1.msra.mxu0 %v98
    %1143 = vmatprep.subr.mxu0 0.0
    %1144 = vmatpush1.msra.mxu0 0.0
    %1145 = vmatprep.subr.mxu0 0.0
    %1146 = vmatpush1.msra.mxu0 0.0
    %1147 = vmatprep.subr.mxu0 0.0
    %1148 = vmatpush1.msra.mxu0 0.0
    %1149 = vmatprep.subr.mxu0 0.0
    %1150 = vmatpush1.msra.mxu0 0.0
    %1151 = vmatprep.subr.mxu0 0.0
    %1152 = vmatpush1.msra.mxu0 0.0
    %1153 = vmatprep.subr.mxu0 0.0
    %1154 = vmatpush1.msra.mxu0 0.0
    %1155 = vmatprep.subr.mxu0 0.0
    %1156 = vmatpush1.msra.mxu0 0.0
    %1157 = vmatprep.subr.mxu0 0.0
    %1158 = vmatpush1.msra.mxu0 0.0
    %1159 = vmatprep.subr.mxu0 0.0
    %1160 = vmatpush1.msra.mxu0 0.0
    %1161 = vmatprep.subr.mxu0 0.0
    %1162 = vmatpush1.msra.mxu0 0.0
    %1163 = vmatprep.subr.mxu0 0.0
    %1164 = vmatpush1.msra.mxu0 0.0
    %1165 = vmatprep.subr.mxu0 0.0
    %1166 = vmatpush1.msra.mxu0 0.0
    %1167 = vmatprep.subr.mxu0 0.0
    %1168 = vmatpush1.msra.mxu0 0.0
    %1169 = vmatprep.subr.mxu0 0.0
    %1170 = vmatpush1.msra.mxu0 0.0
    %1171 = vmatprep.subr.mxu0 0.0
    %1172 = vmatpush1.msra.mxu0 0.0
    %1173 = vmatprep.subr.mxu0 0.0
    %1174 = vmatpush1.msra.mxu0 0.0
    %1175 = vmatprep.subr.mxu0 0.0
    %1176 = vmatpush1.msra.mxu0 0.0
    %1177 = vmatprep.subr.mxu0 0.0
    %1178 = vmatpush1.msra.mxu0 0.0
    %1179 = vmatprep.subr.mxu0 0.0
    %1180 = vmatpush1.msra.mxu0 0.0
    %1181 = vmatprep.subr.mxu0 0.0
    %1182 = vmatpush1.msra.mxu0 0.0
    %1183 = vmatprep.subr.mxu0 0.0
    %1184 = vmatpush1.msra.mxu0 0.0
    %1185 = vmatprep.subr.mxu0 0.0
    %1186 = vmatpush1.msra.mxu0 0.0
    %1187 = vmatprep.subr.mxu0 0.0
    %1188 = vmatpush1.msra.mxu0 0.0
    %1189 = vmatprep.subr.mxu0 0.0
    %1190 = vmatpush1.msra.mxu0 0.0
    %1191 = vmatprep.mubr.f32.mxu0 0.0
    %1192 = vmatmul.mubr.f32.gmra.mrb[0].mxu0 %v1125
    %v1193 = vpop.f32.mrb[0].mxu0
    %v1194 = vadd.f32 %v113, %v1193
    %v1195 = vpop.f32.mrb[0].mxu0
    %v1196 = vadd.f32 %v117, %v1195
    %1197 = vdwg.mxu0
    %s1198 = scalar_lea.vmem [#allocation4], 20
    %v1199 = vld [vmem:[%s1198] sm:$0xf]
    %s1200 = scalar_lea.vmem [#allocation7], 8
    %v1201 = vld [vmem:[%s1200] sm:$0xf]
    %v1202 = vadd.f32 %v1199, %v1194
    %v1203 = vxor.u32 %v1202, 2147483648
    %v1204 = vmul.f32 %v1203, 1.442695
    %v1205 = vpow.pop %v1204
    %v1206 = vadd.f32 %v1205, 1.0
    %v1207 = vrcp.pop %v1206
    %v1208 = vmul.f32 1.0, %v1207
    %1210 = vrot.lane.b32.xlu0 %v1194, 64
    %v1211 = vpop.permute.xlu0 %1210
    %v1213 = vmul.f32 %v1208, %v1211
    %1215 = vrot.lane.b32.xlu0 %v1213, 64
    %v1216 = vpop.permute.xlu0 %1215
    %v1218 = vadd.f32 %v1199, %v1216
    %v1219 = vtanh.pop %v1218
    %v1220 = vsub.f32 1.0, %v1208
    %1222 = vrot.lane.b32.xlu0 %v1219, 96
    %v1223 = vpop.permute.xlu0 %1222
    %v1225 = vmul.f32 %v1220, %v1223
    %v1226 = vmul.f32 %v1208, %v1110
    %v1227 = vadd.f32 %v1225, %v1226
    %1228 = vrot.lane.b32.xlu0 %v1194, 32
    %v1229 = vpop.permute.xlu0 %1228
    %v1231 = vadd.f32 %v1201, %v1229
    %v1232 = vxor.u32 %v1231, 2147483648
    %v1233 = vmul.f32 %v1232, 1.442695
    %v1234 = vpow.pop %v1233
    %v1235 = vadd.f32 %v1234, 1.0
    %v1236 = vrcp.pop %v1235
    %v1237 = vmul.f32 1.0, %v1236
    %1239 = vrot.lane.b32.xlu0 %v1196, 32
    %v1240 = vpop.permute.xlu0 %1239
    %v1242 = vadd.f32 %v1201, %v1240
    %v1243 = vxor.u32 %v1242, 2147483648
    %v1244 = vmul.f32 %v1243, 1.442695
    %v1245 = vpow.pop %v1244
    %v1246 = vadd.f32 %v1245, 1.0
    %v1247 = vrcp.pop %v1246
    %v1248 = vmul.f32 1.0, %v1247
    %1249 = vrot.lane.b32.xlu0 %v1196, 96
    %v1250 = vpop.permute.xlu0 %1249
    %v1252 = vmul.f32 %v1237, %v1250
    %1254 = vrot.lane.b32.xlu0 %v1252, 64
    %v1255 = vpop.permute.xlu0 %1254
    %v1257 = vadd.f32 %v1201, %v1255
    %v1258 = vtanh.pop %v1257
    %v1259 = vsub.f32 1.0, %v1248
    %1261 = vrot.lane.b32.xlu0 %v1258, 96
    %v1262 = vpop.permute.xlu0 %1261
    %v1264 = vmul.f32 %v1259, %v1262
    %v1265 = vmul.f32 %v1248, %v1118
    %v1266 = vadd.f32 %v1264, %v1265
    %s1267 = sadd.s32 %s267, 5
    %s1268 = sadd.s32 %s269, 2
    %v1269 = vstv %s1267
    %vm1270 = vcmp.lt.s32.totalorder %v1269, %v83
    %v1271 = vsel %vm1270, 1, 0
    %v1272 = vcvt.s32.f32 %v1271
    %v1273 = vstv %s1268
    %vm1274 = vcmp.lt.s32.totalorder %v1273, %v83
    %v1275 = vsel %vm1274, 1, 0
    %v1276 = vcvt.s32.f32 %v1275
    %1278 = vset.pattern.permute.xlu0 0
    %1279 = vperm.xlu0 %1278, %v1272
    %v1280 = vpop.permute.xlu0 %1279
    %v1282 = vmul.f32 %v1280, %v1227
    %1284 = vrot.lane.b32.xlu0 %v1282, 96
    %v1285 = vpop.permute.xlu0 %1284
    %s1287 = scalar_lea.vmem [#allocation10], 20
    %1288 = vst.msk [vmem:[%s1287] sm:$0xf] %vm289, %v1285
    %1290 = vset.pattern.permute.xlu0 0
    %1291 = vperm.xlu0 %1290, %v1276
    %v1292 = vpop.permute.xlu0 %1291
    %v1294 = vmul.f32 %v1292, %v1266
    %1296 = vrot.lane.b32.xlu0 %v1294, 96
    %v1297 = vpop.permute.xlu0 %1296
    %s1299 = scalar_lea.vmem [#allocation11], 8
    %1300 = vst.msk [vmem:[%s1299] sm:$0xf] %vm289, %v1297
    %v1301 = vsub.f32 1.0, %v1272
    %1303 = vset.pattern.permute.xlu0 0
    %1304 = vperm.xlu0 %1303, %v1301
    %v1305 = vpop.permute.xlu0 %1304
    %v1307 = vmul.f32 %v1305, %v1110
    %v1308 = vadd.f32 %v1282, %v1307
    %v1309 = vsub.f32 1.0, %v1276
    %1311 = vset.pattern.permute.xlu0 0
    %1312 = vperm.xlu0 %1311, %v1309
    %v1313 = vpop.permute.xlu0 %1312
    %v1315 = vmul.f32 %v1313, %v1118
    %v1316 = vadd.f32 %v1294, %v1315
    %1318 = vrot.lane.b32.xlu0 %v1308, 96
    %v1319 = vpop.permute.xlu0 %1318
    %v1321 = vsel %vm107, %v1319, %v1316
    %v1323 = vsel %vm120, %v1321, 0
    %1325 = vmatprep.subr.mxu0 %v85
    %1326 = vmatpush1.msra.mxu0 %v84
    %1327 = vmatprep.subr.mxu0 %v87
    %1328 = vmatpush1.msra.mxu0 %v86
    %1329 = vmatprep.subr.mxu0 %v89
    %1330 = vmatpush1.msra.mxu0 %v88
    %1331 = vmatprep.subr.mxu0 %v91
    %1332 = vmatpush1.msra.mxu0 %v90
    %1333 = vmatprep.subr.mxu0 %v93
    %1334 = vmatpush1.msra.mxu0 %v92
    %1335 = vmatprep.subr.mxu0 %v95
    %1336 = vmatpush1.msra.mxu0 %v94
    %1337 = vmatprep.subr.mxu0 %v97
    %1338 = vmatpush1.msra.mxu0 %v96
    %1339 = vmatprep.subr.mxu0 %v99
    %1340 = vmatpush1.msra.mxu0 %v98
    %1341 = vmatprep.subr.mxu0 0.0
    %1342 = vmatpush1.msra.mxu0 0.0
    %1343 = vmatprep.subr.mxu0 0.0
    %1344 = vmatpush1.msra.mxu0 0.0
    %1345 = vmatprep.subr.mxu0 0.0
    %1346 = vmatpush1.msra.mxu0 0.0
    %1347 = vmatprep.subr.mxu0 0.0
    %1348 = vmatpush1.msra.mxu0 0.0
    %1349 = vmatprep.subr.mxu0 0.0
    %1350 = vmatpush1.msra.mxu0 0.0
    %1351 = vmatprep.subr.mxu0 0.0
    %1352 = vmatpush1.msra.mxu0 0.0
    %1353 = vmatprep.subr.mxu0 0.0
    %1354 = vmatpush1.msra.mxu0 0.0
    %1355 = vmatprep.subr.mxu0 0.0
    %1356 = vmatpush1.msra.mxu0 0.0
    %1357 = vmatprep.subr.mxu0 0.0
    %1358 = vmatpush1.msra.mxu0 0.0
    %1359 = vmatprep.subr.mxu0 0.0
    %1360 = vmatpush1.msra.mxu0 0.0
    %1361 = vmatprep.subr.mxu0 0.0
    %1362 = vmatpush1.msra.mxu0 0.0
    %1363 = vmatprep.subr.mxu0 0.0
    %1364 = vmatpush1.msra.mxu0 0.0
    %1365 = vmatprep.subr.mxu0 0.0
    %1366 = vmatpush1.msra.mxu0 0.0
    %1367 = vmatprep.subr.mxu0 0.0
    %1368 = vmatpush1.msra.mxu0 0.0
    %1369 = vmatprep.subr.mxu0 0.0
    %1370 = vmatpush1.msra.mxu0 0.0
    %1371 = vmatprep.subr.mxu0 0.0
    %1372 = vmatpush1.msra.mxu0 0.0
    %1373 = vmatprep.subr.mxu0 0.0
    %1374 = vmatpush1.msra.mxu0 0.0
    %1375 = vmatprep.subr.mxu0 0.0
    %1376 = vmatpush1.msra.mxu0 0.0
    %1377 = vmatprep.subr.mxu0 0.0
    %1378 = vmatpush1.msra.mxu0 0.0
    %1379 = vmatprep.subr.mxu0 0.0
    %1380 = vmatpush1.msra.mxu0 0.0
    %1381 = vmatprep.subr.mxu0 0.0
    %1382 = vmatpush1.msra.mxu0 0.0
    %1383 = vmatprep.subr.mxu0 0.0
    %1384 = vmatpush1.msra.mxu0 0.0
    %1385 = vmatprep.subr.mxu0 0.0
    %1386 = vmatpush1.msra.mxu0 0.0
    %1387 = vmatprep.subr.mxu0 0.0
    %1388 = vmatpush1.msra.mxu0 0.0
    %1389 = vmatprep.mubr.f32.mxu0 0.0
    %1390 = vmatmul.mubr.f32.gmra.mrb[0].mxu0 %v1323
    %v1391 = vpop.f32.mrb[0].mxu0
    %v1392 = vadd.f32 %v113, %v1391
    %v1393 = vpop.f32.mrb[0].mxu0
    %v1394 = vadd.f32 %v117, %v1393
    %1395 = vdwg.mxu0
    %s1396 = scalar_lea.vmem [#allocation4], 24
    %v1397 = vld [vmem:[%s1396] sm:$0xf]
    %s1398 = scalar_lea.vmem [#allocation7], 4
    %v1399 = vld [vmem:[%s1398] sm:$0xf]
    %v1400 = vadd.f32 %v1397, %v1392
    %v1401 = vxor.u32 %v1400, 2147483648
    %v1402 = vmul.f32 %v1401, 1.442695
    %v1403 = vpow.pop %v1402
    %v1404 = vadd.f32 %v1403, 1.0
    %v1405 = vrcp.pop %v1404
    %v1406 = vmul.f32 1.0, %v1405
    %1408 = vrot.lane.b32.xlu0 %v1392, 64
    %v1409 = vpop.permute.xlu0 %1408
    %v1411 = vmul.f32 %v1406, %v1409
    %1413 = vrot.lane.b32.xlu0 %v1411, 64
    %v1414 = vpop.permute.xlu0 %1413
    %v1416 = vadd.f32 %v1397, %v1414
    %v1417 = vtanh.pop %v1416
    %v1418 = vsub.f32 1.0, %v1406
    %1420 = vrot.lane.b32.xlu0 %v1417, 96
    %v1421 = vpop.permute.xlu0 %1420
    %v1423 = vmul.f32 %v1418, %v1421
    %v1424 = vmul.f32 %v1406, %v1308
    %v1425 = vadd.f32 %v1423, %v1424
    %1426 = vrot.lane.b32.xlu0 %v1392, 32
    %v1427 = vpop.permute.xlu0 %1426
    %v1429 = vadd.f32 %v1399, %v1427
    %v1430 = vxor.u32 %v1429, 2147483648
    %v1431 = vmul.f32 %v1430, 1.442695
    %v1432 = vpow.pop %v1431
    %v1433 = vadd.f32 %v1432, 1.0
    %v1434 = vrcp.pop %v1433
    %v1435 = vmul.f32 1.0, %v1434
    %1437 = vrot.lane.b32.xlu0 %v1394, 32
    %v1438 = vpop.permute.xlu0 %1437
    %v1440 = vadd.f32 %v1399, %v1438
    %v1441 = vxor.u32 %v1440, 2147483648
    %v1442 = vmul.f32 %v1441, 1.442695
    %v1443 = vpow.pop %v1442
    %v1444 = vadd.f32 %v1443, 1.0
    %v1445 = vrcp.pop %v1444
    %v1446 = vmul.f32 1.0, %v1445
    %1447 = vrot.lane.b32.xlu0 %v1394, 96
    %v1448 = vpop.permute.xlu0 %1447
    %v1450 = vmul.f32 %v1435, %v1448
    %1452 = vrot.lane.b32.xlu0 %v1450, 64
    %v1453 = vpop.permute.xlu0 %1452
    %v1455 = vadd.f32 %v1399, %v1453
    %v1456 = vtanh.pop %v1455
    %v1457 = vsub.f32 1.0, %v1446
    %1459 = vrot.lane.b32.xlu0 %v1456, 96
    %v1460 = vpop.permute.xlu0 %1459
    %v1462 = vmul.f32 %v1457, %v1460
    %v1463 = vmul.f32 %v1446, %v1316
    %v1464 = vadd.f32 %v1462, %v1463
    %s1465 = sadd.s32 %s267, 6
    %s1466 = sadd.s32 %s269, 1
    %v1467 = vstv %s1465
    %vm1468 = vcmp.lt.s32.totalorder %v1467, %v83
    %v1469 = vsel %vm1468, 1, 0
    %v1470 = vcvt.s32.f32 %v1469
    %v1471 = vstv %s1466
    %vm1472 = vcmp.lt.s32.totalorder %v1471, %v83
    %v1473 = vsel %vm1472, 1, 0
    %v1474 = vcvt.s32.f32 %v1473
    %1476 = vset.pattern.permute.xlu0 0
    %1477 = vperm.xlu0 %1476, %v1470
    %v1478 = vpop.permute.xlu0 %1477
    %v1480 = vmul.f32 %v1478, %v1425
    %1482 = vrot.lane.b32.xlu0 %v1480, 96
    %v1483 = vpop.permute.xlu0 %1482
    %s1485 = scalar_lea.vmem [#allocation10], 24
    %1486 = vst.msk [vmem:[%s1485] sm:$0xf] %vm289, %v1483
    %1488 = vset.pattern.permute.xlu0 0
    %1489 = vperm.xlu0 %1488, %v1474
    %v1490 = vpop.permute.xlu0 %1489
    %v1492 = vmul.f32 %v1490, %v1464
    %1494 = vrot.lane.b32.xlu0 %v1492, 96
    %v1495 = vpop.permute.xlu0 %1494
    %s1497 = scalar_lea.vmem [#allocation11], 4
    %1498 = vst.msk [vmem:[%s1497] sm:$0xf] %vm289, %v1495
    %v1499 = vsub.f32 1.0, %v1470
    %1501 = vset.pattern.permute.xlu0 0
    %1502 = vperm.xlu0 %1501, %v1499
    %v1503 = vpop.permute.xlu0 %1502
    %v1505 = vmul.f32 %v1503, %v1308
    %v1506 = vadd.f32 %v1480, %v1505
    %v1507 = vsub.f32 1.0, %v1474
    %1509 = vset.pattern.permute.xlu0 0
    %1510 = vperm.xlu0 %1509, %v1507
    %v1511 = vpop.permute.xlu0 %1510
    %v1513 = vmul.f32 %v1511, %v1316
    %v1514 = vadd.f32 %v1492, %v1513
    %1516 = vrot.lane.b32.xlu0 %v1506, 96
    %v1517 = vpop.permute.xlu0 %1516
    %v1519 = vsel %vm107, %v1517, %v1514
    %v1521 = vsel %vm120, %v1519, 0
    %1523 = vmatprep.subr.mxu0 %v85
    %1524 = vmatpush1.msra.mxu0 %v84
    %1525 = vmatprep.subr.mxu0 %v87
    %1526 = vmatpush1.msra.mxu0 %v86
    %1527 = vmatprep.subr.mxu0 %v89
    %1528 = vmatpush1.msra.mxu0 %v88
    %1529 = vmatprep.subr.mxu0 %v91
    %1530 = vmatpush1.msra.mxu0 %v90
    %1531 = vmatprep.subr.mxu0 %v93
    %1532 = vmatpush1.msra.mxu0 %v92
    %1533 = vmatprep.subr.mxu0 %v95
    %1534 = vmatpush1.msra.mxu0 %v94
    %1535 = vmatprep.subr.mxu0 %v97
    %1536 = vmatpush1.msra.mxu0 %v96
    %1537 = vmatprep.subr.mxu0 %v99
    %1538 = vmatpush1.msra.mxu0 %v98
    %1539 = vmatprep.subr.mxu0 0.0
    %1540 = vmatpush1.msra.mxu0 0.0
    %1541 = vmatprep.subr.mxu0 0.0
    %1542 = vmatpush1.msra.mxu0 0.0
    %1543 = vmatprep.subr.mxu0 0.0
    %1544 = vmatpush1.msra.mxu0 0.0
    %1545 = vmatprep.subr.mxu0 0.0
    %1546 = vmatpush1.msra.mxu0 0.0
    %1547 = vmatprep.subr.mxu0 0.0
    %1548 = vmatpush1.msra.mxu0 0.0
    %1549 = vmatprep.subr.mxu0 0.0
    %1550 = vmatpush1.msra.mxu0 0.0
    %1551 = vmatprep.subr.mxu0 0.0
    %1552 = vmatpush1.msra.mxu0 0.0
    %1553 = vmatprep.subr.mxu0 0.0
    %1554 = vmatpush1.msra.mxu0 0.0
    %1555 = vmatprep.subr.mxu0 0.0
    %1556 = vmatpush1.msra.mxu0 0.0
    %1557 = vmatprep.subr.mxu0 0.0
    %1558 = vmatpush1.msra.mxu0 0.0
    %1559 = vmatprep.subr.mxu0 0.0
    %1560 = vmatpush1.msra.mxu0 0.0
    %1561 = vmatprep.subr.mxu0 0.0
    %1562 = vmatpush1.msra.mxu0 0.0
    %1563 = vmatprep.subr.mxu0 0.0
    %1564 = vmatpush1.msra.mxu0 0.0
    %1565 = vmatprep.subr.mxu0 0.0
    %1566 = vmatpush1.msra.mxu0 0.0
    %1567 = vmatprep.subr.mxu0 0.0
    %1568 = vmatpush1.msra.mxu0 0.0
    %1569 = vmatprep.subr.mxu0 0.0
    %1570 = vmatpush1.msra.mxu0 0.0
    %1571 = vmatprep.subr.mxu0 0.0
    %1572 = vmatpush1.msra.mxu0 0.0
    %1573 = vmatprep.subr.mxu0 0.0
    %1574 = vmatpush1.msra.mxu0 0.0
    %1575 = vmatprep.subr.mxu0 0.0
    %1576 = vmatpush1.msra.mxu0 0.0
    %1577 = vmatprep.subr.mxu0 0.0
    %1578 = vmatpush1.msra.mxu0 0.0
    %1579 = vmatprep.subr.mxu0 0.0
    %1580 = vmatpush1.msra.mxu0 0.0
    %1581 = vmatprep.subr.mxu0 0.0
    %1582 = vmatpush1.msra.mxu0 0.0
    %1583 = vmatprep.subr.mxu0 0.0
    %1584 = vmatpush1.msra.mxu0 0.0
    %1585 = vmatprep.subr.mxu0 0.0
    %1586 = vmatpush1.msra.mxu0 0.0
    %1587 = vmatprep.mubr.f32.mxu0 0.0
    %1588 = vmatmul.mubr.f32.gmra.mrb[0].mxu0 %v1521
    %v1589 = vpop.f32.mrb[0].mxu0
    %v1590 = vadd.f32 %v113, %v1589
    %v1591 = vpop.f32.mrb[0].mxu0
    %v1592 = vadd.f32 %v117, %v1591
    %1593 = vdwg.mxu0
    %s1594 = scalar_lea.vmem [#allocation4], 28
    %v1595 = vld [vmem:[%s1594] sm:$0xf]
    %v1596 = vld [vmem:[#allocation7] sm:$0xf]
    %v1597 = vadd.f32 %v1595, %v1590
    %v1598 = vxor.u32 %v1597, 2147483648
    %v1599 = vmul.f32 %v1598, 1.442695
    %v1600 = vpow.pop %v1599
    %v1601 = vadd.f32 %v1600, 1.0
    %v1602 = vrcp.pop %v1601
    %v1603 = vmul.f32 1.0, %v1602
    %1605 = vrot.lane.b32.xlu0 %v1590, 64
    %v1606 = vpop.permute.xlu0 %1605
    %v1608 = vmul.f32 %v1603, %v1606
    %1610 = vrot.lane.b32.xlu0 %v1608, 64
    %v1611 = vpop.permute.xlu0 %1610
    %v1613 = vadd.f32 %v1595, %v1611
    %v1614 = vtanh.pop %v1613
    %v1615 = vsub.f32 1.0, %v1603
    %1617 = vrot.lane.b32.xlu0 %v1614, 96
    %v1618 = vpop.permute.xlu0 %1617
    %v1620 = vmul.f32 %v1615, %v1618
    %v1621 = vmul.f32 %v1603, %v1506
    %v1622 = vadd.f32 %v1620, %v1621
    %1623 = vrot.lane.b32.xlu0 %v1590, 32
    %v1624 = vpop.permute.xlu0 %1623
    %v1626 = vadd.f32 %v1596, %v1624
    %v1627 = vxor.u32 %v1626, 2147483648
    %v1628 = vmul.f32 %v1627, 1.442695
    %v1629 = vpow.pop %v1628
    %v1630 = vadd.f32 %v1629, 1.0
    %v1631 = vrcp.pop %v1630
    %v1632 = vmul.f32 1.0, %v1631
    %1634 = vrot.lane.b32.xlu0 %v1592, 32
    %v1635 = vpop.permute.xlu0 %1634
    %v1637 = vadd.f32 %v1596, %v1635
    %v1638 = vxor.u32 %v1637, 2147483648
    %v1639 = vmul.f32 %v1638, 1.442695
    %v1640 = vpow.pop %v1639
    %v1641 = vadd.f32 %v1640, 1.0
    %v1642 = vrcp.pop %v1641
    %v1643 = vmul.f32 1.0, %v1642
    %1644 = vrot.lane.b32.xlu0 %v1592, 96
    %v1645 = vpop.permute.xlu0 %1644
    %v1647 = vmul.f32 %v1632, %v1645
    %1649 = vrot.lane.b32.xlu0 %v1647, 64
    %v1650 = vpop.permute.xlu0 %1649
    %v1652 = vadd.f32 %v1596, %v1650
    %v1653 = vtanh.pop %v1652
    %v1654 = vsub.f32 1.0, %v1643
    %1656 = vrot.lane.b32.xlu0 %v1653, 96
    %v1657 = vpop.permute.xlu0 %1656
    %v1659 = vmul.f32 %v1654, %v1657
    %v1660 = vmul.f32 %v1643, %v1514
    %v1661 = vadd.f32 %v1659, %v1660
    %s1662 = sadd.s32 %s267, 7
    %v1663 = vstv %s1662
    %vm1664 = vcmp.lt.s32.totalorder %v1663, %v83
    %v1665 = vsel %vm1664, 1, 0
    %v1666 = vcvt.s32.f32 %v1665
    %v1667 = vstv %s269
    %vm1668 = vcmp.lt.s32.totalorder %v1667, %v83
    %v1669 = vsel %vm1668, 1, 0
    %v1670 = vcvt.s32.f32 %v1669
    %1672 = vset.pattern.permute.xlu0 0
    %1673 = vperm.xlu0 %1672, %v1666
    %v1674 = vpop.permute.xlu0 %1673
    %v1676 = vmul.f32 %v1674, %v1622
    %1678 = vrot.lane.b32.xlu0 %v1676, 96
    %v1679 = vpop.permute.xlu0 %1678
    %s1681 = scalar_lea.vmem [#allocation10], 28
    %1682 = vst.msk [vmem:[%s1681] sm:$0xf] %vm289, %v1679
    %1684 = vset.pattern.permute.xlu0 0
    %1685 = vperm.xlu0 %1684, %v1670
    %v1686 = vpop.permute.xlu0 %1685
    %v1688 = vmul.f32 %v1686, %v1661
    %1690 = vrot.lane.b32.xlu0 %v1688, 96
    %v1691 = vpop.permute.xlu0 %1690
    %1693 = vst.msk [vmem:[#allocation11] sm:$0xf] %vm289, %v1691
    %v1694 = vsub.f32 1.0, %v1666
    %1696 = vset.pattern.permute.xlu0 0
    %1697 = vperm.xlu0 %1696, %v1694
    %v1698 = vpop.permute.xlu0 %1697
    %v1700 = vmul.f32 %v1698, %v1506
    %v1701 = vadd.f32 %v1676, %v1700
    %v1702 = vsub.f32 1.0, %v1670
    %1704 = vset.pattern.permute.xlu0 0
    %1705 = vperm.xlu0 %1704, %v1702
    %v1706 = vpop.permute.xlu0 %1705
    %v1708 = vmul.f32 %v1706, %v1514
    %v1709 = vadd.f32 %v1688, %v1708
    %1711 = vrot.lane.b32.xlu0 %v1701, 96
    %v1712 = vpop.permute.xlu0 %1711
    %1714 = vst.msk [vmem:[#allocation2] sm:$0xf] %vm289, %v1712
    %1716 = vrot.lane.b32.xlu0 %v1709, 96
    %v1717 = vpop.permute.xlu0 %1716
    %1719 = vst.msk [vmem:[#allocation3] sm:$0xf] %vm289, %v1717
    // Predicated region
    $region38: #{tpu_custom_call.1} parent=1 // pred_check
      %p1720 = pneg %p76
    $region39: #{tpu_custom_call.1} parent=1 // pred_check_branch
      %1722 = sbr.rel (%p1720) target = $region41
    $region40: #{tpu_custom_call.1} parent=1 // pred_region
      %1723 = vst.msk [vmem:[#allocation13] sm:$0xf] %vm289, %v1712
      %1724 = vst.msk [vmem:[#allocation14] sm:$0xf] %vm289, %v1717
    $region41: #{tpu_custom_call.1} parent=1 // pred_fallthru
      _
    // Predicated region
    $region42: #{tpu_custom_call.1} parent=1 // pred_check
      _
    $region43: #{tpu_custom_call.1} parent=1 // pred_check_branch
      %1726 = sbr.rel (0) target = $region45
    $region44: #{tpu_custom_call.1} parent=1 // pred_region
      %s1728 = ssub.s32 512, 512
      %1729 = vsyncadd [#allocation6], %s1728
      %s1730 = sshll.u32 [#allocation10], 4
      %s1731 = int_to_ptr.vmem [resolvable:$true] %s1730
      %1736 = dma.vmem_to_hbm [thread:$0]  %s1731, 512, %s5, [#allocation6], 64, 64, 4
    $region45: #{tpu_custom_call.1} parent=1 // pred_fallthru
      _
    // Predicated region
    $region46: #{tpu_custom_call.1} parent=1 // pred_check
      _
    $region47: #{tpu_custom_call.1} parent=1 // pred_check_branch
      %1738 = sbr.rel (0) target = $region49
    $region48: #{tpu_custom_call.1} parent=1 // pred_region
      %s1739 = ssub.s32 0, 0
      %s1740 = smul.u32 8, %s1739
      %s1742 = ssub.s32 512, 512
      %1743 = vsyncadd [#allocation12], %s1742
      %s1744 = smul.addr %s1740, 64
      %s1745 = scalar_lea.hbm %s6, %s1744
      %s1746 = sshll.u32 [#allocation11], 4
      %s1747 = int_to_ptr.vmem [resolvable:$true] %s1746
      %1752 = dma.vmem_to_hbm [thread:$0]  %s1747, 512, %s1745, [#allocation12], 64, 64, 4
    $region49: #{tpu_custom_call.1} parent=1 // pred_fallthru
      _
    // Predicated region
    $region50: #{tpu_custom_call.1} parent=1 // pred_check
      _
    $region51: #{tpu_custom_call.1} parent=1 // pred_check_branch
      %1754 = sbr.rel (0) target = $region53
    $region52: #{tpu_custom_call.1} parent=1 // pred_region
      %s1756 = ssub.s32 64, 64
      %1757 = vsyncadd [#allocation12], %s1756
      %s1759 = sshll.u32 [#allocation13], 4
      %s1760 = int_to_ptr.vmem [resolvable:$true] %s1759
      %1762 = dma.vmem_to_hbm [thread:$0]  %s1760, 64, %s7, [#allocation12]
    $region53: #{tpu_custom_call.1} parent=1 // pred_fallthru
      _
    // Predicated region
    $region54: #{tpu_custom_call.1} parent=1 // pred_check
      _
    $region55: #{tpu_custom_call.1} parent=1 // pred_check_branch
      %1764 = sbr.rel (0) target = $region57
    $region56: #{tpu_custom_call.1} parent=1 // pred_region
      %s1766 = ssub.s32 64, 64
      %1767 = vsyncadd [#allocation15], %s1766
      %s1769 = sshll.u32 [#allocation14], 4
      %s1770 = int_to_ptr.vmem [resolvable:$true] %s1769
      %1772 = dma.vmem_to_hbm [thread:$0]  %s1770, 64, %s8, [#allocation15]
    $region57: #{tpu_custom_call.1} parent=1 // pred_fallthru
      _
    // Predicated region
    $region58: #{tpu_custom_call.1} parent=1 // pred_check
      _
    $region59: #{tpu_custom_call.1} parent=1 // pred_check_branch
      %1774 = sbr.rel (0) target = $region61
    $region60: #{tpu_custom_call.1} parent=1 // pred_region
      %1775 = dma.done [#allocation6], 512
    $region61: #{tpu_custom_call.1} parent=1 // pred_fallthru
      _
    // Predicated region
    $region62: #{tpu_custom_call.1} parent=1 // pred_check
      _
    $region63: #{tpu_custom_call.1} parent=1 // pred_check_branch
      %1777 = sbr.rel (0) target = $region65
    $region64: #{tpu_custom_call.1} parent=1 // pred_region
      %1778 = dma.done [#allocation12], 512
    $region65: #{tpu_custom_call.1} parent=1 // pred_fallthru
      _
    // Predicated region
    $region66: #{tpu_custom_call.1} parent=1 // pred_check
      _
    $region67: #{tpu_custom_call.1} parent=1 // pred_check_branch
      %1780 = sbr.rel (0) target = $region69
    $region68: #{tpu_custom_call.1} parent=1 // pred_region
      %1781 = dma.done [#allocation12], 64
    $region69: #{tpu_custom_call.1} parent=1 // pred_fallthru
      _
    // Predicated region
    $region70: #{tpu_custom_call.1} parent=1 // pred_check
      _
    $region71: #{tpu_custom_call.1} parent=1 // pred_check_branch
      %1783 = sbr.rel (0) target = $region73
    $region72: #{tpu_custom_call.1} parent=1 // pred_region
      %1784 = dma.done [#allocation15], 64
    $region73: #{tpu_custom_call.1} parent=1 // pred_fallthru
      _
    %1785 = vsyncpa [#allocation5], 1
    %1786 = vsyncpa [#allocation8], 1
    %1787 = vsyncpa [#allocation6], 1
    %1788 = vsyncpa [#allocation12], 1
    %1789 = vsyncpa [#allocation15], 1

</llo_original>
